<compile_context>
chip_gen: v6e
topology: v6e:2x2x1
jax: 0.10.0
libtpu: 0.0.40
codegen_flags: <defaults>
</compile_context>

<pallas_src>
import jax
import jax.numpy as jnp
from jax.experimental import pallas as pl
from jax.experimental.pallas import tpu as pltpu

EPS = 1e-5
LANES = 128
VMEM_LIMIT = 32 * 1024 * 1024  # explicit scoped-VMEM budget, safe on v5e/v6e/v7x


def _round_up(x, m):
    return ((x + m - 1) // m) * m


# ---------------------------------------------------------------------------
# Pass 1: 3x3 conv (9 shifted MXU matmuls) + per-row-block BN partial stats.
# ---------------------------------------------------------------------------
def _conv3x3_stats_kernel(x0_ref, x1_ref, x2_ref, w_ref, y_ref, st_ref):
    """One output row (all batch images) of a 3x3 / stride 1 / pad 1 conv.

    x{k}_ref: (N, 1, Wp, Cpi) bf16 -- padded input row h+k  (Wp = W + 2)
    w_ref   : (9, Cpi, Cpo)   bf16 -- resident weights, index = ky*3 + kx
    y_ref   : (N, 1, W,  Cpo) f32  -- pre-BN conv output for output row h
    st_ref  : (1, 2, Cpo)     f32  -- per-row partial [sum ; sum-of-squares]
    """
    n, _, wp, cpi = x0_ref.shape
    w_out = wp - 2
    cpo = w_ref.shape[-1]

    rows = (x0_ref[...], x1_ref[...], x2_ref[...])
    acc = jnp.zeros((n * w_out, cpo), jnp.float32)
    for ky in range(3):
        x_row = rows[ky][:, 0, :, :]                          # (N, Wp, Cpi)
        for kx in range(3):
            patch = x_row[:, kx:kx + w_out, :].reshape(n * w_out, cpi)
            acc = acc + jnp.dot(patch, w_ref[ky * 3 + kx],
                                preferred_element_type=jnp.float32)

    y_ref[...] = acc.reshape(n, 1, w_out, cpo)
    s = jnp.sum(acc, axis=0, keepdims=True)                   # (1, Cpo)
    sq = jnp.sum(acc * acc, axis=0, keepdims=True)            # (1, Cpo)
    st_ref[...] = jnp.concatenate([s, sq], axis=0).reshape(1, 2, cpo)


def _conv3x3_with_stats(xp, w9):
    n, hp, wp, cpi = xp.shape
    h, w = hp - 2, wp - 2
    cpo = w9.shape[-1]

    flops = 2 * n * h * w * 9 * cpi * cpo
    bytes_accessed = (3 * xp.size * xp.dtype.itemsize
                      + w9.size * w9.dtype.itemsize
                      + (n * h * w * cpo + h * 2 * cpo) * 4)

    return pl.pallas_call(
        _conv3x3_stats_kernel,
        out_shape=(jax.ShapeDtypeStruct((n, h, w, cpo), jnp.float32),
                   jax.ShapeDtypeStruct((h, 2, cpo), jnp.float32)),
        grid=(h,),
        in_specs=[
            # Same padded array three times: rows h, h+1, h+2 (the 3x3 halo).
            pl.BlockSpec((n, 1, wp, cpi), lambda i: (0, i, 0, 0)),
            pl.BlockSpec((n, 1, wp, cpi), lambda i: (0, i + 1, 0, 0)),
            pl.BlockSpec((n, 1, wp, cpi), lambda i: (0, i + 2, 0, 0)),
            # Weights: constant index_map -> resident in VMEM, DMA'd once.
            pl.BlockSpec((9, cpi, cpo), lambda i: (0, 0, 0)),
        ],
        out_specs=(
            pl.BlockSpec((n, 1, w, cpo), lambda i: (0, i, 0, 0)),
            pl.BlockSpec((1, 2, cpo), lambda i: (i, 0, 0)),
        ),
        compiler_params=pltpu.CompilerParams(
            dimension_semantics=("parallel",),
            vmem_limit_bytes=VMEM_LIMIT),
        cost_estimate=pl.CostEstimate(flops=flops, transcendentals=0,
                                      bytes_accessed=bytes_accessed),
    )(xp, xp, xp, w9)


# ---------------------------------------------------------------------------
# Pass 2: y * scale + shift, ReLU (BN folded into a single FMA).
# ---------------------------------------------------------------------------
def _bn_relu_kernel(y_ref, sc_ref, sh_ref, o_ref):
    y = y_ref[...]
    o_ref[...] = jnp.maximum(y * sc_ref[...] + sh_ref[...], 0.0).astype(o_ref.dtype)


def _bn_relu_apply(y, scale, shift, out_dtype):
    n, h, w, cpo = y.shape
    # Largest divisor of H whose row-block tile stays within ~2 MiB.
    th = 1
    for cand in range(1, h + 1):
        if h % cand == 0 and n * cand * w * cpo * 4 <= (2 << 20):
            th = cand
    return pl.pallas_call(
        _bn_relu_kernel,
        out_shape=jax.ShapeDtypeStruct((n, h, w, cpo), out_dtype),
        grid=(h // th,),
        in_specs=[
            pl.BlockSpec((n, th, w, cpo), lambda i: (0, i, 0, 0)),
            pl.BlockSpec((1, 1, 1, cpo), lambda i: (0, 0, 0, 0)),   # resident
            pl.BlockSpec((1, 1, 1, cpo), lambda i: (0, 0, 0, 0)),   # resident
        ],
        out_specs=pl.BlockSpec((n, th, w, cpo), lambda i: (0, i, 0, 0)),
        compiler_params=pltpu.CompilerParams(
            dimension_semantics=("parallel",),
            vmem_limit_bytes=VMEM_LIMIT),
    )(y, scale.reshape(1, 1, 1, cpo), shift.reshape(1, 1, 1, cpo))


# ---------------------------------------------------------------------------
# One conv+BN+ReLU stage.
# ---------------------------------------------------------------------------
def _conv_bn_relu_stage(x, w_oihw, gamma, beta, out_dtype):
    """x: (N, H, W, Cpi) bf16, channel-padded (pad channels are exactly zero).

    Returns (N, H, W, Cpo) in out_dtype with Cpo = round_up(C_out, 128);
    the padded output channels are exactly zero.
    """
    n, h, w, cpi = x.shape
    c_out, c_in = w_oihw.shape[0], w_oihw.shape[1]
    cpo = _round_up(c_out, LANES)

    # (C_out, C_in, 3, 3) -> (9, Cpi, Cpo), zero-padded, bf16 MXU inputs.
    w9 = jnp.transpose(w_oihw, (2, 3, 1, 0)).reshape(9, c_in, c_out)
    w9 = jnp.pad(w9, ((0, 0), (0, cpi - c_in), (0, cpo - c_out)))
    w9 = w9.astype(jnp.bfloat16)

    # Spatial zero pad (the only extra activation materialization, ~1x volume).
    xp = jnp.pad(x, ((0, 0), (1, 1), (1, 1), (0, 0)))

    # Pass 1: conv (pre-BN, fp32 accumulation) + per-row-block partial stats.
    y, st = _conv3x3_with_stats(xp, w9)

    # Fold BatchNorm (training-mode batch stats) into one scale/shift FMA.
    # NOTE: the conv bias is dropped here -- a per-channel constant cancels
    # exactly against the batch mean in training-mode BatchNorm.
    cnt = float(n * h * w)
    mean = jnp.sum(st[:, 0, :], axis=0) / cnt
    var = jnp.maximum(jnp.sum(st[:, 1, :], axis=0) / cnt - mean * mean, 0.0)
    g = jnp.pad(gamma.astype(jnp.float32), (0, cpo - c_out))
    b = jnp.pad(beta.astype(jnp.float32), (0, cpo - c_out))
    scale = g * jax.lax.rsqrt(var + EPS)
    shift = b - mean * scale

    # Pass 2: normalize + affine + ReLU.
    return _bn_relu_apply(y, scale, shift, out_dtype)


# ---------------------------------------------------------------------------
# Public API (NCHW in/out, matching PyTorch).
# ---------------------------------------------------------------------------
def init_params(key, ch_in, ch_out, bilinear=False):
    ch_mid = ch_out if not bilinear else ch_in // 2
    k = jax.random.split(key, 8)
    return {
        "w1": 0.1 * jax.random.normal(k[0], (ch_mid, ch_in, 3, 3), jnp.float32),
        "b1": 0.1 * jax.random.normal(k[1], (ch_mid,), jnp.float32),
        "g1": 1.0 + 0.1 * jax.random.normal(k[2], (ch_mid,), jnp.float32),
        "be1": 0.1 * jax.random.normal(k[3], (ch_mid,), jnp.float32),
        "w2": 0.1 * jax.random.normal(k[4], (ch_out, ch_mid, 3, 3), jnp.float32),
        "b2": 0.1 * jax.random.normal(k[5], (ch_out,), jnp.float32),
        "g2": 1.0 + 0.1 * jax.random.normal(k[6], (ch_out,), jnp.float32),
        "be2": 0.1 * jax.random.normal(k[7], (ch_out,), jnp.float32),
    }


@jax.jit
def conv_block_forward(x_nchw, params):
    """Forward pass of conv_block. Input/output NCHW fp32, matching PyTorch."""
    # TODO(synk): the NCHW<->NHWC transposes could be dropped if the caller
    # supplies NHWC activations directly.
    n, c_in, h, w = x_nchw.shape
    c_out = params["w2"].shape[0]
    cpi = _round_up(c_in, LANES)

    x = jnp.transpose(x_nchw, (0, 2, 3, 1)).astype(jnp.float32)      # NHWC
    x = jnp.pad(x, ((0, 0), (0, 0), (0, 0), (0, cpi - c_in)))        # lane pad
    x = x.astype(jnp.bfloat16)

    h1 = _conv_bn_relu_stage(x, params["w1"], params["g1"], params["be1"],
                             out_dtype=jnp.bfloat16)    # bf16 inter-stage act
    h2 = _conv_bn_relu_stage(h1, params["w2"], params["g2"], params["be2"],
                             out_dtype=jnp.float32)

    return jnp.transpose(h2[..., :c_out], (0, 3, 1, 2))              # NCHW


# ------------------------- pure-JAX references (for checking) ---------------
def _reference_f32(x_nchw, params):
    """Exact fp32 conv_block forward (PyTorch training-mode BN semantics)."""
    def stage(x, w, b, g, be):
        y = jax.lax.conv_general_dilated(
            x, w, window_strides=(1, 1), padding=((1, 1), (1, 1)),
            dimension_numbers=("NCHW", "OIHW", "NCHW"))
        y = y + b[None, :, None, None]
        mean = jnp.mean(y, axis=(0, 2, 3), keepdims=True)
        var = jnp.mean((y - mean) ** 2, axis=(0, 2, 3), keepdims=True)
        y = (y - mean) * jax.lax.rsqrt(var + EPS)
        return jnp.maximum(g[None, :, None, None] * y + be[None, :, None, None], 0.0)

    h1 = stage(x_nchw, params["w1"], params["b1"], params["g1"], params["be1"])
    return stage(h1, params["w2"], params["b2"], params["g2"], params["be2"])


def _reference_mixed(x_nchw, params):
    """Same math at the kernel's precision: bf16 conv inputs, fp32 accumulation
    and elementwise, bf16 inter-stage activation."""
    def stage(x, w, b, g, be, bf16_out):
        y = jax.lax.conv_general_dilated(
            x.astype(jnp.bfloat16), w.astype(jnp.bfloat16),
            window_strides=(1, 1), padding=((1, 1), (1, 1)),
            dimension_numbers=("NCHW", "OIHW", "NCHW"),
            preferred_element_type=jnp.float32)
        y = y + b[None, :, None, None]
        mean = jnp.mean(y, axis=(0, 2, 3), keepdims=True)
        var = jnp.mean(y * y, axis=(0, 2, 3), keepdims=True) - mean * mean
        y = (y - mean) * jax.lax.rsqrt(var + EPS)
        out = jnp.maximum(g[None, :, None, None] * y + be[None, :, None, None], 0.0)
        return out.astype(jnp.bfloat16).astype(jnp.float32) if bf16_out else out

    h1 = stage(x_nchw, params["w1"], params["b1"], params["g1"], params["be1"], True)
    return stage(h1, params["w2"], params["b2"], params["g2"], params["be2"], False)


if __name__ == "__main__":
    key = jax.random.PRNGKey(0)
    kx, kp = jax.random.split(key)

    N, CH_IN, CH_OUT, H, W = 2, 4, 8, 16, 16
    x = jax.random.normal(kx, (N, CH_IN, H, W), jnp.float32)
    params = init_params(kp, CH_IN, CH_OUT, bilinear=False)

    out = jax.block_until_ready(conv_block_forward(x, params))
    assert out.shape == (N, CH_OUT, H, W), out.shape

    # Tight check against the same algorithm evaluated at the kernel's
    # precision (bf16 MXU inputs, fp32 accumulation).
    ref_mixed = jax.block_until_ready(_reference_mixed(x, params))
    assert jnp.allclose(out, ref_mixed, atol=1e-2, rtol=1e-2), \
        float(jnp.max(jnp.abs(out - ref_mixed)))

    # Loose sanity check against the exact fp32 PyTorch-equivalent reference
    # (difference is the standard bf16-matmul-with-fp32-accum tradeoff).
    ref_f32 = jax.block_until_ready(_reference_f32(x, params))
    assert jnp.allclose(out, ref_f32, atol=0.2, rtol=0.2), \
        float(jnp.max(jnp.abs(out - ref_f32)))

    print("KERNEL_OK")
</pallas_src>

<mosaic_0001>
module attributes {stable_mosaic.version = 11 : i64} {
  func.func @_conv3x3_stats_kernel(%arg0: i32, %arg1: memref<2x1x18x128xbf16, #tpu.memory_space<vmem>>, %arg2: memref<2x1x18x128xbf16, #tpu.memory_space<vmem>>, %arg3: memref<2x1x18x128xbf16, #tpu.memory_space<vmem>>, %arg4: memref<9x128x128xbf16, #tpu.memory_space<vmem>>, %arg5: memref<2x1x16x128xf32, #tpu.memory_space<vmem>>, %arg6: memref<1x2x128xf32, #tpu.memory_space<vmem>>) attributes {dimension_semantics = [#tpu.dimension_semantics<parallel>], iteration_bounds = array<i64: 16>, scalar_prefetch = 0 : i64, scratch_operands = 0 : i64, tpu.core_type = #tpu.core_type<tc>, window_params = [{transform_indices = @transform_0, window_bounds = array<i64: 2, 1, 18, 128>}, {transform_indices = @transform_1, window_bounds = array<i64: 2, 1, 18, 128>}, {transform_indices = @transform_2, window_bounds = array<i64: 2, 1, 18, 128>}, {pipeline_mode = #tpu.pipeline_mode<synchronous>, transform_indices = @transform_3, window_bounds = array<i64: 9, 128, 128>}, {transform_indices = @transform_4, window_bounds = array<i64: 2, 1, 16, 128>}, {transform_indices = @transform_5, window_bounds = array<i64: 1, 2, 128>}]} {
    %c0 = arith.constant 0 : index
    %c0_0 = arith.constant 0 : index
    %c0_1 = arith.constant 0 : index
    %c0_2 = arith.constant 0 : index
    %0 = vector.load %arg1[%c0, %c0_0, %c0_1, %c0_2] : memref<2x1x18x128xbf16, #tpu.memory_space<vmem>>, vector<2x1x18x128xbf16>
    %c0_3 = arith.constant 0 : index
    %c0_4 = arith.constant 0 : index
    %c0_5 = arith.constant 0 : index
    %c0_6 = arith.constant 0 : index
    %1 = vector.load %arg2[%c0_3, %c0_4, %c0_5, %c0_6] : memref<2x1x18x128xbf16, #tpu.memory_space<vmem>>, vector<2x1x18x128xbf16>
    %c0_7 = arith.constant 0 : index
    %c0_8 = arith.constant 0 : index
    %c0_9 = arith.constant 0 : index
    %c0_10 = arith.constant 0 : index
    %2 = vector.load %arg3[%c0_7, %c0_8, %c0_9, %c0_10] : memref<2x1x18x128xbf16, #tpu.memory_space<vmem>>, vector<2x1x18x128xbf16>
    %cst = arith.constant 0.000000e+00 : f32
    %3 = vector.broadcast %cst : f32 to vector<32x128xf32>
    %4 = vector.shape_cast %0 : vector<2x1x18x128xbf16> to vector<2x18x128xbf16>
    %5 = vector.extract_strided_slice %4 {offsets = [0, 0, 0], sizes = [2, 16, 128], strides = [1, 1, 1]} : vector<2x18x128xbf16> to vector<2x16x128xbf16>
    %6 = vector.shape_cast %5 : vector<2x16x128xbf16> to vector<32x128xbf16>
    %c0_11 = arith.constant 0 : index
    %c0_12 = arith.constant 0 : index
    %c0_13 = arith.constant 0 : index
    %7 = vector.load %arg4[%c0_11, %c0_12, %c0_13] : memref<9x128x128xbf16, #tpu.memory_space<vmem>>, vector<1x128x128xbf16>
    %8 = vector.shape_cast %7 : vector<1x128x128xbf16> to vector<128x128xbf16>
    %cst_14 = arith.constant dense<0.000000e+00> : vector<32x128xf32>
    %9 = tpu.matmul %6, %8, %cst_14 {dimension_numbers = #tpu.dot_dimension_numbers<[1], [0], [0], [1], [0, 0, 1, 1], [], []>} : vector<32x128xbf16>, vector<128x128xbf16>, vector<32x128xf32> -> vector<32x128xf32>
    %10 = arith.addf %3, %9 : vector<32x128xf32>
    %11 = vector.extract_strided_slice %4 {offsets = [0, 1, 0], sizes = [2, 16, 128], strides = [1, 1, 1]} : vector<2x18x128xbf16> to vector<2x16x128xbf16>
    %12 = vector.shape_cast %11 : vector<2x16x128xbf16> to vector<32x128xbf16>
    %c1 = arith.constant 1 : index
    %c0_15 = arith.constant 0 : index
    %c0_16 = arith.constant 0 : index
    %13 = vector.load %arg4[%c1, %c0_15, %c0_16] : memref<9x128x128xbf16, #tpu.memory_space<vmem>>, vector<1x128x128xbf16>
    %14 = vector.shape_cast %13 : vector<1x128x128xbf16> to vector<128x128xbf16>
    %cst_17 = arith.constant dense<0.000000e+00> : vector<32x128xf32>
    %15 = tpu.matmul %12, %14, %cst_17 {dimension_numbers = #tpu.dot_dimension_numbers<[1], [0], [0], [1], [0, 0, 1, 1], [], []>} : vector<32x128xbf16>, vector<128x128xbf16>, vector<32x128xf32> -> vector<32x128xf32>
    %16 = arith.addf %10, %15 : vector<32x128xf32>
    %17 = vector.extract_strided_slice %4 {offsets = [0, 2, 0], sizes = [2, 16, 128], strides = [1, 1, 1]} : vector<2x18x128xbf16> to vector<2x16x128xbf16>
    %18 = vector.shape_cast %17 : vector<2x16x128xbf16> to vector<32x128xbf16>
    %c2 = arith.constant 2 : index
    %c0_18 = arith.constant 0 : index
    %c0_19 = arith.constant 0 : index
    %19 = vector.load %arg4[%c2, %c0_18, %c0_19] : memref<9x128x128xbf16, #tpu.memory_space<vmem>>, vector<1x128x128xbf16>
    %20 = vector.shape_cast %19 : vector<1x128x128xbf16> to vector<128x128xbf16>
    %cst_20 = arith.constant dense<0.000000e+00> : vector<32x128xf32>
    %21 = tpu.matmul %18, %20, %cst_20 {dimension_numbers = #tpu.dot_dimension_numbers<[1], [0], [0], [1], [0, 0, 1, 1], [], []>} : vector<32x128xbf16>, vector<128x128xbf16>, vector<32x128xf32> -> vector<32x128xf32>
    %22 = arith.addf %16, %21 : vector<32x128xf32>
    %23 = vector.shape_cast %1 : vector<2x1x18x128xbf16> to vector<2x18x128xbf16>
    %24 = vector.extract_strided_slice %23 {offsets = [0, 0, 0], sizes = [2, 16, 128], strides = [1, 1, 1]} : vector<2x18x128xbf16> to vector<2x16x128xbf16>
    %25 = vector.shape_cast %24 : vector<2x16x128xbf16> to vector<32x128xbf16>
    %c3 = arith.constant 3 : index
    %c0_21 = arith.constant 0 : index
    %c0_22 = arith.constant 0 : index
    %26 = vector.load %arg4[%c3, %c0_21, %c0_22] : memref<9x128x128xbf16, #tpu.memory_space<vmem>>, vector<1x128x128xbf16>
    %27 = vector.shape_cast %26 : vector<1x128x128xbf16> to vector<128x128xbf16>
    %cst_23 = arith.constant dense<0.000000e+00> : vector<32x128xf32>
    %28 = tpu.matmul %25, %27, %cst_23 {dimension_numbers = #tpu.dot_dimension_numbers<[1], [0], [0], [1], [0, 0, 1, 1], [], []>} : vector<32x128xbf16>, vector<128x128xbf16>, vector<32x128xf32> -> vector<32x128xf32>
    %29 = arith.addf %22, %28 : vector<32x128xf32>
    %30 = vector.extract_strided_slice %23 {offsets = [0, 1, 0], sizes = [2, 16, 128], strides = [1, 1, 1]} : vector<2x18x128xbf16> to vector<2x16x128xbf16>
    %31 = vector.shape_cast %30 : vector<2x16x128xbf16> to vector<32x128xbf16>
    %c4 = arith.constant 4 : index
    %c0_24 = arith.constant 0 : index
    %c0_25 = arith.constant 0 : index
    %32 = vector.load %arg4[%c4, %c0_24, %c0_25] : memref<9x128x128xbf16, #tpu.memory_space<vmem>>, vector<1x128x128xbf16>
    %33 = vector.shape_cast %32 : vector<1x128x128xbf16> to vector<128x128xbf16>
    %cst_26 = arith.constant dense<0.000000e+00> : vector<32x128xf32>
    %34 = tpu.matmul %31, %33, %cst_26 {dimension_numbers = #tpu.dot_dimension_numbers<[1], [0], [0], [1], [0, 0, 1, 1], [], []>} : vector<32x128xbf16>, vector<128x128xbf16>, vector<32x128xf32> -> vector<32x128xf32>
    %35 = arith.addf %29, %34 : vector<32x128xf32>
    %36 = vector.extract_strided_slice %23 {offsets = [0, 2, 0], sizes = [2, 16, 128], strides = [1, 1, 1]} : vector<2x18x128xbf16> to vector<2x16x128xbf16>
    %37 = vector.shape_cast %36 : vector<2x16x128xbf16> to vector<32x128xbf16>
    %c5 = arith.constant 5 : index
    %c0_27 = arith.constant 0 : index
    %c0_28 = arith.constant 0 : index
    %38 = vector.load %arg4[%c5, %c0_27, %c0_28] : memref<9x128x128xbf16, #tpu.memory_space<vmem>>, vector<1x128x128xbf16>
    %39 = vector.shape_cast %38 : vector<1x128x128xbf16> to vector<128x128xbf16>
    %cst_29 = arith.constant dense<0.000000e+00> : vector<32x128xf32>
    %40 = tpu.matmul %37, %39, %cst_29 {dimension_numbers = #tpu.dot_dimension_numbers<[1], [0], [0], [1], [0, 0, 1, 1], [], []>} : vector<32x128xbf16>, vector<128x128xbf16>, vector<32x128xf32> -> vector<32x128xf32>
    %41 = arith.addf %35, %40 : vector<32x128xf32>
    %42 = vector.shape_cast %2 : vector<2x1x18x128xbf16> to vector<2x18x128xbf16>
    %43 = vector.extract_strided_slice %42 {offsets = [0, 0, 0], sizes = [2, 16, 128], strides = [1, 1, 1]} : vector<2x18x128xbf16> to vector<2x16x128xbf16>
    %44 = vector.shape_cast %43 : vector<2x16x128xbf16> to vector<32x128xbf16>
    %c6 = arith.constant 6 : index
    %c0_30 = arith.constant 0 : index
    %c0_31 = arith.constant 0 : index
    %45 = vector.load %arg4[%c6, %c0_30, %c0_31] : memref<9x128x128xbf16, #tpu.memory_space<vmem>>, vector<1x128x128xbf16>
    %46 = vector.shape_cast %45 : vector<1x128x128xbf16> to vector<128x128xbf16>
    %cst_32 = arith.constant dense<0.000000e+00> : vector<32x128xf32>
    %47 = tpu.matmul %44, %46, %cst_32 {dimension_numbers = #tpu.dot_dimension_numbers<[1], [0], [0], [1], [0, 0, 1, 1], [], []>} : vector<32x128xbf16>, vector<128x128xbf16>, vector<32x128xf32> -> vector<32x128xf32>
    %48 = arith.addf %41, %47 : vector<32x128xf32>
    %49 = vector.extract_strided_slice %42 {offsets = [0, 1, 0], sizes = [2, 16, 128], strides = [1, 1, 1]} : vector<2x18x128xbf16> to vector<2x16x128xbf16>
    %50 = vector.shape_cast %49 : vector<2x16x128xbf16> to vector<32x128xbf16>
    %c7 = arith.constant 7 : index
    %c0_33 = arith.constant 0 : index
    %c0_34 = arith.constant 0 : index
    %51 = vector.load %arg4[%c7, %c0_33, %c0_34] : memref<9x128x128xbf16, #tpu.memory_space<vmem>>, vector<1x128x128xbf16>
    %52 = vector.shape_cast %51 : vector<1x128x128xbf16> to vector<128x128xbf16>
    %cst_35 = arith.constant dense<0.000000e+00> : vector<32x128xf32>
    %53 = tpu.matmul %50, %52, %cst_35 {dimension_numbers = #tpu.dot_dimension_numbers<[1], [0], [0], [1], [0, 0, 1, 1], [], []>} : vector<32x128xbf16>, vector<128x128xbf16>, vector<32x128xf32> -> vector<32x128xf32>
    %54 = arith.addf %48, %53 : vector<32x128xf32>
    %55 = vector.extract_strided_slice %42 {offsets = [0, 2, 0], sizes = [2, 16, 128], strides = [1, 1, 1]} : vector<2x18x128xbf16> to vector<2x16x128xbf16>
    %56 = vector.shape_cast %55 : vector<2x16x128xbf16> to vector<32x128xbf16>
    %c8 = arith.constant 8 : index
    %c0_36 = arith.constant 0 : index
    %c0_37 = arith.constant 0 : index
    %57 = vector.load %arg4[%c8, %c0_36, %c0_37] : memref<9x128x128xbf16, #tpu.memory_space<vmem>>, vector<1x128x128xbf16>
    %58 = vector.shape_cast %57 : vector<1x128x128xbf16> to vector<128x128xbf16>
    %cst_38 = arith.constant dense<0.000000e+00> : vector<32x128xf32>
    %59 = tpu.matmul %56, %58, %cst_38 {dimension_numbers = #tpu.dot_dimension_numbers<[1], [0], [0], [1], [0, 0, 1, 1], [], []>} : vector<32x128xbf16>, vector<128x128xbf16>, vector<32x128xf32> -> vector<32x128xf32>
    %60 = arith.addf %54, %59 : vector<32x128xf32>
    %61 = vector.shape_cast %60 : vector<32x128xf32> to vector<2x1x16x128xf32>
    %c0_39 = arith.constant 0 : index
    %c0_40 = arith.constant 0 : index
    %c0_41 = arith.constant 0 : index
    %c0_42 = arith.constant 0 : index
    %62 = vector.load %arg5[%c0_39, %c0_40, %c0_41, %c0_42] : memref<2x1x16x128xf32, #tpu.memory_space<vmem>>, vector<2x1x16x128xf32>
    tpu.vector_store %arg5[%c0_39, %c0_40, %c0_41, %c0_42], %61 {strides = array<i32>} : memref<2x1x16x128xf32, #tpu.memory_space<vmem>>, vector<2x1x16x128xf32>,
    %cst_43 = arith.constant dense<0.000000e+00> : vector<128xf32>
    %63 = vector.multi_reduction <add>, %60, %cst_43 [0] : vector<32x128xf32> to vector<128xf32>
    %64 = vector.shape_cast %63 : vector<128xf32> to vector<1x128xf32>
    %65 = arith.mulf %60, %60 : vector<32x128xf32>
    %cst_44 = arith.constant dense<0.000000e+00> : vector<128xf32>
    %66 = vector.multi_reduction <add>, %65, %cst_44 [0] : vector<32x128xf32> to vector<128xf32>
    %67 = vector.shape_cast %66 : vector<128xf32> to vector<1x128xf32>
    %68 = tpu.concatenate %64, %67 in 0 : vector<1x128xf32>, vector<1x128xf32> -> vector<2x128xf32>
    %69 = vector.shape_cast %68 : vector<2x128xf32> to vector<1x2x128xf32>
    %c0_45 = arith.constant 0 : index
    %c0_46 = arith.constant 0 : index
    %c0_47 = arith.constant 0 : index
    %70 = vector.load %arg6[%c0_45, %c0_46, %c0_47] : memref<1x2x128xf32, #tpu.memory_space<vmem>>, vector<1x2x128xf32>
    tpu.vector_store %arg6[%c0_45, %c0_46, %c0_47], %69 {strides = array<i32>} : memref<1x2x128xf32, #tpu.memory_space<vmem>>, vector<1x2x128xf32>,
    return
  }
  func.func @transform_0(%arg0: i32) -> (i32, i32, i32, i32) {
    %c0_i32 = arith.constant 0 : i32
    %c0_i32_0 = arith.constant 0 : i32
    %c0_i32_1 = arith.constant 0 : i32
    %c0_i32_2 = arith.constant 0 : i32
    return %c0_i32, %arg0, %c0_i32_0, %c0_i32_1 : i32, i32, i32, i32
  }
  func.func @transform_1(%arg0: i32) -> (i32, i32, i32, i32) {
    %c1_i32 = arith.constant 1 : i32
    %0 = arith.addi %arg0, %c1_i32 : i32
    %c0_i32 = arith.constant 0 : i32
    %c0_i32_0 = arith.constant 0 : i32
    %c0_i32_1 = arith.constant 0 : i32
    %c0_i32_2 = arith.constant 0 : i32
    return %c0_i32, %0, %c0_i32_0, %c0_i32_1 : i32, i32, i32, i32
  }
  func.func @transform_2(%arg0: i32) -> (i32, i32, i32, i32) {
    %c2_i32 = arith.constant 2 : i32
    %0 = arith.addi %arg0, %c2_i32 : i32
    %c0_i32 = arith.constant 0 : i32
    %c0_i32_0 = arith.constant 0 : i32
    %c0_i32_1 = arith.constant 0 : i32
    %c0_i32_2 = arith.constant 0 : i32
    return %c0_i32, %0, %c0_i32_0, %c0_i32_1 : i32, i32, i32, i32
  }
  func.func @transform_3(%arg0: i32) -> (i32, i32, i32) {
    %c0_i32 = arith.constant 0 : i32
    %c0_i32_0 = arith.constant 0 : i32
    %c0_i32_1 = arith.constant 0 : i32
    %c0_i32_2 = arith.constant 0 : i32
    return %c0_i32, %c0_i32_0, %c0_i32_1 : i32, i32, i32
  }
  func.func @transform_4(%arg0: i32) -> (i32, i32, i32, i32) {
    %c0_i32 = arith.constant 0 : i32
    %c0_i32_0 = arith.constant 0 : i32
    %c0_i32_1 = arith.constant 0 : i32
    %c0_i32_2 = arith.constant 0 : i32
    return %c0_i32, %arg0, %c0_i32_0, %c0_i32_1 : i32, i32, i32, i32
  }
  func.func @transform_5(%arg0: i32) -> (i32, i32, i32) {
    %c0_i32 = arith.constant 0 : i32
    %c0_i32_0 = arith.constant 0 : i32
    %c0_i32_1 = arith.constant 0 : i32
    return %arg0, %c0_i32, %c0_i32_0 : i32, i32, i32
  }
}

module attributes {stable_mosaic.version = 11 : i64} {
  func.func @_bn_relu_kernel(%arg0: i32, %arg1: memref<2x16x16x128xf32, #tpu.memory_space<vmem>>, %arg2: memref<1x1x1x128xf32, #tpu.memory_space<vmem>>, %arg3: memref<1x1x1x128xf32, #tpu.memory_space<vmem>>, %arg4: memref<2x16x16x128xbf16, #tpu.memory_space<vmem>>) attributes {dimension_semantics = [#tpu.dimension_semantics<parallel>], iteration_bounds = array<i64: 1>, scalar_prefetch = 0 : i64, scratch_operands = 0 : i64, tpu.core_type = #tpu.core_type<tc>, window_params = [{transform_indices = @transform_0, window_bounds = array<i64: 2, 16, 16, 128>}, {pipeline_mode = #tpu.pipeline_mode<synchronous>, transform_indices = @transform_1, window_bounds = array<i64: 1, 1, 1, 128>}, {pipeline_mode = #tpu.pipeline_mode<synchronous>, transform_indices = @transform_2, window_bounds = array<i64: 1, 1, 1, 128>}, {transform_indices = @transform_3, window_bounds = array<i64: 2, 16, 16, 128>}]} {
    %c0 = arith.constant 0 : index
    %c0_0 = arith.constant 0 : index
    %c0_1 = arith.constant 0 : index
    %c0_2 = arith.constant 0 : index
    %0 = vector.load %arg1[%c0, %c0_0, %c0_1, %c0_2] : memref<2x16x16x128xf32, #tpu.memory_space<vmem>>, vector<2x16x16x128xf32>
    %c0_3 = arith.constant 0 : index
    %c0_4 = arith.constant 0 : index
    %c0_5 = arith.constant 0 : index
    %c0_6 = arith.constant 0 : index
    %1 = vector.load %arg2[%c0_3, %c0_4, %c0_5, %c0_6] : memref<1x1x1x128xf32, #tpu.memory_space<vmem>>, vector<1x1x1x128xf32>
    %2 = vector.broadcast %1 : vector<1x1x1x128xf32> to vector<2x16x16x128xf32>
    %3 = arith.mulf %0, %2 : vector<2x16x16x128xf32>
    %c0_7 = arith.constant 0 : index
    %c0_8 = arith.constant 0 : index
    %c0_9 = arith.constant 0 : index
    %c0_10 = arith.constant 0 : index
    %4 = vector.load %arg3[%c0_7, %c0_8, %c0_9, %c0_10] : memref<1x1x1x128xf32, #tpu.memory_space<vmem>>, vector<1x1x1x128xf32>
    %5 = vector.broadcast %4 : vector<1x1x1x128xf32> to vector<2x16x16x128xf32>
    %6 = arith.addf %3, %5 : vector<2x16x16x128xf32>
    %cst = arith.constant 0.000000e+00 : f32
    %7 = vector.broadcast %cst : f32 to vector<2x16x16x128xf32>
    %8 = arith.maximumf %6, %7 : vector<2x16x16x128xf32>
    %9 = arith.truncf %8 : vector<2x16x16x128xf32> to vector<2x16x16x128xbf16>
    %c0_11 = arith.constant 0 : index
    %c0_12 = arith.constant 0 : index
    %c0_13 = arith.constant 0 : index
    %c0_14 = arith.constant 0 : index
    %10 = vector.load %arg4[%c0_11, %c0_12, %c0_13, %c0_14] : memref<2x16x16x128xbf16, #tpu.memory_space<vmem>>, vector<2x16x16x128xbf16>
    tpu.vector_store %arg4[%c0_11, %c0_12, %c0_13, %c0_14], %9 {strides = array<i32>} : memref<2x16x16x128xbf16, #tpu.memory_space<vmem>>, vector<2x16x16x128xbf16>,
    return
  }
  func.func @transform_0(%arg0: i32) -> (i32, i32, i32, i32) {
    %c0_i32 = arith.constant 0 : i32
    %c0_i32_0 = arith.constant 0 : i32
    %c0_i32_1 = arith.constant 0 : i32
    %c0_i32_2 = arith.constant 0 : i32
    return %c0_i32, %arg0, %c0_i32_0, %c0_i32_1 : i32, i32, i32, i32
  }
  func.func @transform_1(%arg0: i32) -> (i32, i32, i32, i32) {
    %c0_i32 = arith.constant 0 : i32
    %c0_i32_0 = arith.constant 0 : i32
    %c0_i32_1 = arith.constant 0 : i32
    %c0_i32_2 = arith.constant 0 : i32
    %c0_i32_3 = arith.constant 0 : i32
    return %c0_i32, %c0_i32_0, %c0_i32_1, %c0_i32_2 : i32, i32, i32, i32
  }
  func.func @transform_2(%arg0: i32) -> (i32, i32, i32, i32) {
    %c0_i32 = arith.constant 0 : i32
    %c0_i32_0 = arith.constant 0 : i32
    %c0_i32_1 = arith.constant 0 : i32
    %c0_i32_2 = arith.constant 0 : i32
    %c0_i32_3 = arith.constant 0 : i32
    return %c0_i32, %c0_i32_0, %c0_i32_1, %c0_i32_2 : i32, i32, i32, i32
  }
  func.func @transform_3(%arg0: i32) -> (i32, i32, i32, i32) {
    %c0_i32 = arith.constant 0 : i32
    %c0_i32_0 = arith.constant 0 : i32
    %c0_i32_1 = arith.constant 0 : i32
    %c0_i32_2 = arith.constant 0 : i32
    return %c0_i32, %arg0, %c0_i32_0, %c0_i32_1 : i32, i32, i32, i32
  }
}

module attributes {stable_mosaic.version = 11 : i64} {
  func.func @_bn_relu_kernel(%arg0: i32, %arg1: memref<2x16x16x128xf32, #tpu.memory_space<vmem>>, %arg2: memref<1x1x1x128xf32, #tpu.memory_space<vmem>>, %arg3: memref<1x1x1x128xf32, #tpu.memory_space<vmem>>, %arg4: memref<2x16x16x128xf32, #tpu.memory_space<vmem>>) attributes {dimension_semantics = [#tpu.dimension_semantics<parallel>], iteration_bounds = array<i64: 1>, scalar_prefetch = 0 : i64, scratch_operands = 0 : i64, tpu.core_type = #tpu.core_type<tc>, window_params = [{transform_indices = @transform_0, window_bounds = array<i64: 2, 16, 16, 128>}, {pipeline_mode = #tpu.pipeline_mode<synchronous>, transform_indices = @transform_1, window_bounds = array<i64: 1, 1, 1, 128>}, {pipeline_mode = #tpu.pipeline_mode<synchronous>, transform_indices = @transform_2, window_bounds = array<i64: 1, 1, 1, 128>}, {transform_indices = @transform_3, window_bounds = array<i64: 2, 16, 16, 128>}]} {
    %c0 = arith.constant 0 : index
    %c0_0 = arith.constant 0 : index
    %c0_1 = arith.constant 0 : index
    %c0_2 = arith.constant 0 : index
    %0 = vector.load %arg1[%c0, %c0_0, %c0_1, %c0_2] : memref<2x16x16x128xf32, #tpu.memory_space<vmem>>, vector<2x16x16x128xf32>
    %c0_3 = arith.constant 0 : index
    %c0_4 = arith.constant 0 : index
    %c0_5 = arith.constant 0 : index
    %c0_6 = arith.constant 0 : index
    %1 = vector.load %arg2[%c0_3, %c0_4, %c0_5, %c0_6] : memref<1x1x1x128xf32, #tpu.memory_space<vmem>>, vector<1x1x1x128xf32>
    %2 = vector.broadcast %1 : vector<1x1x1x128xf32> to vector<2x16x16x128xf32>
    %3 = arith.mulf %0, %2 : vector<2x16x16x128xf32>
    %c0_7 = arith.constant 0 : index
    %c0_8 = arith.constant 0 : index
    %c0_9 = arith.constant 0 : index
    %c0_10 = arith.constant 0 : index
    %4 = vector.load %arg3[%c0_7, %c0_8, %c0_9, %c0_10] : memref<1x1x1x128xf32, #tpu.memory_space<vmem>>, vector<1x1x1x128xf32>
    %5 = vector.broadcast %4 : vector<1x1x1x128xf32> to vector<2x16x16x128xf32>
    %6 = arith.addf %3, %5 : vector<2x16x16x128xf32>
    %cst = arith.constant 0.000000e+00 : f32
    %7 = vector.broadcast %cst : f32 to vector<2x16x16x128xf32>
    %8 = arith.maximumf %6, %7 : vector<2x16x16x128xf32>
    %c0_11 = arith.constant 0 : index
    %c0_12 = arith.constant 0 : index
    %c0_13 = arith.constant 0 : index
    %c0_14 = arith.constant 0 : index
    %9 = vector.load %arg4[%c0_11, %c0_12, %c0_13, %c0_14] : memref<2x16x16x128xf32, #tpu.memory_space<vmem>>, vector<2x16x16x128xf32>
    tpu.vector_store %arg4[%c0_11, %c0_12, %c0_13, %c0_14], %8 {strides = array<i32>} : memref<2x16x16x128xf32, #tpu.memory_space<vmem>>, vector<2x16x16x128xf32>,
    return
  }
  func.func @transform_0(%arg0: i32) -> (i32, i32, i32, i32) {
    %c0_i32 = arith.constant 0 : i32
    %c0_i32_0 = arith.constant 0 : i32
    %c0_i32_1 = arith.constant 0 : i32
    %c0_i32_2 = arith.constant 0 : i32
    return %c0_i32, %arg0, %c0_i32_0, %c0_i32_1 : i32, i32, i32, i32
  }
  func.func @transform_1(%arg0: i32) -> (i32, i32, i32, i32) {
    %c0_i32 = arith.constant 0 : i32
    %c0_i32_0 = arith.constant 0 : i32
    %c0_i32_1 = arith.constant 0 : i32
    %c0_i32_2 = arith.constant 0 : i32
    %c0_i32_3 = arith.constant 0 : i32
    return %c0_i32, %c0_i32_0, %c0_i32_1, %c0_i32_2 : i32, i32, i32, i32
  }
  func.func @transform_2(%arg0: i32) -> (i32, i32, i32, i32) {
    %c0_i32 = arith.constant 0 : i32
    %c0_i32_0 = arith.constant 0 : i32
    %c0_i32_1 = arith.constant 0 : i32
    %c0_i32_2 = arith.constant 0 : i32
    %c0_i32_3 = arith.constant 0 : i32
    return %c0_i32, %c0_i32_0, %c0_i32_1, %c0_i32_2 : i32, i32, i32, i32
  }
  func.func @transform_3(%arg0: i32) -> (i32, i32, i32, i32) {
    %c0_i32 = arith.constant 0 : i32
    %c0_i32_0 = arith.constant 0 : i32
    %c0_i32_1 = arith.constant 0 : i32
    %c0_i32_2 = arith.constant 0 : i32
    return %c0_i32, %arg0, %c0_i32_0, %c0_i32_1 : i32, i32, i32, i32
  }
}

</mosaic_0001>

<llo_original>
// kernel: conv_block_forward.5
$region0: #{conv_block_forward.5}
  #allocation0 [shape = 'u32[]', space=smem, size = 0x4, offset = 0x4, fixed_abs, tag = 'smem constant byte address 0x4 - core index']
  #allocation1 [shape = 'u32[144,128]{1,0:T(1,128)}', space=vmem, size = 0x12000, scoped, tag = 'internal scratch']
  %s0 = inlined_call_operand.vmem [shape: f32[2,16,16,128], index: 0, kind: input, shape index: {}]
  %s1 = inlined_call_operand.vmem [shape: f32[1,1,1,128], index: 1, kind: input, shape index: {}]
  %s2 = inlined_call_operand.vmem [shape: f32[1,1,1,128], index: 2, kind: input, shape index: {}]
  %s3 = inlined_call_operand.vmem [shape: bf16[2,16,16,128], index: 3, kind: output, shape index: {}]
  %s4 = sld [smem:[#allocation0]]
  $region22: #{conv_block_forward.5} parent=0
    _
  %s6 = ssub.s32 1, %s4
  %s7 = scalar_select 0, %s6, %s4
  // Predicated region
  $region2: #{conv_block_forward.5} parent=0 // pred_check
    _
  $region3: #{conv_block_forward.5} parent=0 // pred_check_branch
    %9 = sbr.rel (0) target = $region5
  $region4: #{conv_block_forward.5} parent=0 // pred_region
    _
  $region5: #{conv_block_forward.5} parent=0 // pred_fallthru
    _
  // Predicated region
  $region6: #{conv_block_forward.5} parent=0 // pred_check
    _
  $region7: #{conv_block_forward.5} parent=0 // pred_check_branch
    %11 = sbr.rel (0) target = $region9
  $region8: #{conv_block_forward.5} parent=0 // pred_region
    _
  $region9: #{conv_block_forward.5} parent=0 // pred_fallthru
    _
  // Predicated region
  $region10: #{conv_block_forward.5} parent=0 // pred_check
    _
  $region11: #{conv_block_forward.5} parent=0 // pred_check_branch
    %13 = sbr.rel (0) target = $region13
  $region12: #{conv_block_forward.5} parent=0 // pred_region
    _
  $region13: #{conv_block_forward.5} parent=0 // pred_fallthru
    _
  %v14 = vld [vmem:[%s0] sm:$0xff]
  %v15 = vld [vmem:[%s0 + $0x8] sm:$0xff]
  %v16 = vld [vmem:[%s0 + $0x10] sm:$0xff]
  %v17 = vld [vmem:[%s0 + $0x18] sm:$0xff]
  %v18 = vld [vmem:[%s0 + $0x20] sm:$0xff]
  %v19 = vld [vmem:[%s0 + $0x28] sm:$0xff]
  %v20 = vld [vmem:[%s0 + $0x30] sm:$0xff]
  %v21 = vld [vmem:[%s0 + $0x38] sm:$0xff]
  %v22 = vld [vmem:[%s0 + $0x40] sm:$0xff]
  %v23 = vld [vmem:[%s0 + $0x48] sm:$0xff]
  %v24 = vld [vmem:[%s0 + $0x50] sm:$0xff]
  %v25 = vld [vmem:[%s0 + $0x58] sm:$0xff]
  %v26 = vld [vmem:[%s0 + $0x60] sm:$0xff]
  %v27 = vld [vmem:[%s0 + $0x68] sm:$0xff]
  %v28 = vld [vmem:[%s0 + $0x70] sm:$0xff]
  %v29 = vld [vmem:[%s0 + $0x78] sm:$0xff]
  %v30 = vld [vmem:[%s0 + $0x80] sm:$0xff]
  %v31 = vld [vmem:[%s0 + $0x88] sm:$0xff]
  %v32 = vld [vmem:[%s0 + $0x90] sm:$0xff]
  %v33 = vld [vmem:[%s0 + $0x98] sm:$0xff]
  %v34 = vld [vmem:[%s0 + $0xa0] sm:$0xff]
  %v35 = vld [vmem:[%s0 + $0xa8] sm:$0xff]
  %v36 = vld [vmem:[%s0 + $0xb0] sm:$0xff]
  %v37 = vld [vmem:[%s0 + $0xb8] sm:$0xff]
  %v38 = vld [vmem:[%s0 + $0xc0] sm:$0xff]
  %v39 = vld [vmem:[%s0 + $0xc8] sm:$0xff]
  %v40 = vld [vmem:[%s0 + $0xd0] sm:$0xff]
  %v41 = vld [vmem:[%s0 + $0xd8] sm:$0xff]
  %v42 = vld [vmem:[%s0 + $0xe0] sm:$0xff]
  %v43 = vld [vmem:[%s0 + $0xe8] sm:$0xff]
  %v44 = vld [vmem:[%s0 + $0xf0] sm:$0xff]
  %v45 = vld [vmem:[%s0 + $0xf8] sm:$0xff]
  %v46 = vld [vmem:[%s0 + $0x100] sm:$0xff]
  %v47 = vld [vmem:[%s0 + $0x108] sm:$0xff]
  %v48 = vld [vmem:[%s0 + $0x110] sm:$0xff]
  %v49 = vld [vmem:[%s0 + $0x118] sm:$0xff]
  %v50 = vld [vmem:[%s0 + $0x120] sm:$0xff]
  %v51 = vld [vmem:[%s0 + $0x128] sm:$0xff]
  %v52 = vld [vmem:[%s0 + $0x130] sm:$0xff]
  %v53 = vld [vmem:[%s0 + $0x138] sm:$0xff]
  %v54 = vld [vmem:[%s0 + $0x140] sm:$0xff]
  %v55 = vld [vmem:[%s0 + $0x148] sm:$0xff]
  %v56 = vld [vmem:[%s0 + $0x150] sm:$0xff]
  %v57 = vld [vmem:[%s0 + $0x158] sm:$0xff]
  %v58 = vld [vmem:[%s0 + $0x160] sm:$0xff]
  %v59 = vld [vmem:[%s0 + $0x168] sm:$0xff]
  %v60 = vld [vmem:[%s0 + $0x170] sm:$0xff]
  %v61 = vld [vmem:[%s0 + $0x178] sm:$0xff]
  %v62 = vld [vmem:[%s0 + $0x180] sm:$0xff]
  %v63 = vld [vmem:[%s0 + $0x188] sm:$0xff]
  %v64 = vld [vmem:[%s0 + $0x190] sm:$0xff]
  %v65 = vld [vmem:[%s0 + $0x198] sm:$0xff]
  %v66 = vld [vmem:[%s0 + $0x1a0] sm:$0xff]
  %v67 = vld [vmem:[%s0 + $0x1a8] sm:$0xff]
  %v68 = vld [vmem:[%s0 + $0x1b0] sm:$0xff]
  %v69 = vld [vmem:[%s0 + $0x1b8] sm:$0xff]
  %v70 = vld [vmem:[%s0 + $0x1c0] sm:$0xff]
  %v71 = vld [vmem:[%s0 + $0x1c8] sm:$0xff]
  %v72 = vld [vmem:[%s0 + $0x1d0] sm:$0xff]
  %v73 = vld [vmem:[%s0 + $0x1d8] sm:$0xff]
  %v74 = vld [vmem:[%s0 + $0x1e0] sm:$0xff]
  %v75 = vld [vmem:[%s0 + $0x1e8] sm:$0xff]
  %v76 = vld [vmem:[%s0 + $0x1f0] sm:$0xff]
  %v77 = vld [vmem:[%s0 + $0x1f8] sm:$0xff]
  %v78 = vld [vmem:[%s1] sm:$0x1]
  %v80 = vlaneseq
  %v81 = vshrl.u32 %v80, 7
  %v82 = vsub.s32 0, %v81
  %v83 = vrot.slane %v78, %v82
  %v85 = vmul.f32 %v14, %v83
  %v86 = vmul.f32 %v15, %v83
  %v87 = vmul.f32 %v16, %v83
  %v88 = vmul.f32 %v17, %v83
  %v89 = vmul.f32 %v18, %v83
  %v90 = vmul.f32 %v19, %v83
  %v91 = vmul.f32 %v20, %v83
  %v92 = vmul.f32 %v21, %v83
  %v93 = vmul.f32 %v22, %v83
  %v94 = vmul.f32 %v23, %v83
  %v95 = vmul.f32 %v24, %v83
  %v96 = vmul.f32 %v25, %v83
  %v97 = vmul.f32 %v26, %v83
  %v98 = vmul.f32 %v27, %v83
  %v99 = vmul.f32 %v28, %v83
  %v100 = vmul.f32 %v29, %v83
  %v101 = vmul.f32 %v30, %v83
  %v102 = vmul.f32 %v31, %v83
  %v103 = vmul.f32 %v32, %v83
  %v104 = vmul.f32 %v33, %v83
  %v105 = vmul.f32 %v34, %v83
  %v106 = vmul.f32 %v35, %v83
  %v107 = vmul.f32 %v36, %v83
  %v108 = vmul.f32 %v37, %v83
  %v109 = vmul.f32 %v38, %v83
  %v110 = vmul.f32 %v39, %v83
  %v111 = vmul.f32 %v40, %v83
  %v112 = vmul.f32 %v41, %v83
  %v113 = vmul.f32 %v42, %v83
  %v114 = vmul.f32 %v43, %v83
  %v115 = vmul.f32 %v44, %v83
  %v116 = vmul.f32 %v45, %v83
  %v117 = vmul.f32 %v46, %v83
  %v118 = vmul.f32 %v47, %v83
  %v119 = vmul.f32 %v48, %v83
  %v120 = vmul.f32 %v49, %v83
  %v121 = vmul.f32 %v50, %v83
  %v122 = vmul.f32 %v51, %v83
  %v123 = vmul.f32 %v52, %v83
  %v124 = vmul.f32 %v53, %v83
  %v125 = vmul.f32 %v54, %v83
  %v126 = vmul.f32 %v55, %v83
  %v127 = vmul.f32 %v56, %v83
  %v128 = vmul.f32 %v57, %v83
  %v129 = vmul.f32 %v58, %v83
  %v130 = vmul.f32 %v59, %v83
  %v131 = vmul.f32 %v60, %v83
  %v132 = vmul.f32 %v61, %v83
  %v133 = vmul.f32 %v62, %v83
  %v134 = vmul.f32 %v63, %v83
  %v135 = vmul.f32 %v64, %v83
  %v136 = vmul.f32 %v65, %v83
  %v137 = vmul.f32 %v66, %v83
  %v138 = vmul.f32 %v67, %v83
  %v139 = vmul.f32 %v68, %v83
  %v140 = vmul.f32 %v69, %v83
  %v141 = vmul.f32 %v70, %v83
  %v142 = vmul.f32 %v71, %v83
  %v143 = vmul.f32 %v72, %v83
  %v144 = vmul.f32 %v73, %v83
  %v145 = vmul.f32 %v74, %v83
  %v146 = vmul.f32 %v75, %v83
  %v147 = vmul.f32 %v76, %v83
  %v148 = vmul.f32 %v77, %v83
  %v149 = vld [vmem:[%s2] sm:$0x1]
  %v151 = vlaneseq
  %v152 = vshrl.u32 %v151, 7
  %v153 = vsub.s32 0, %v152
  %v154 = vrot.slane %v149, %v153
  %v156 = vadd.f32 %v85, %v154
  %v157 = vadd.f32 %v86, %v154
  %v158 = vadd.f32 %v87, %v154
  %v159 = vadd.f32 %v88, %v154
  %v160 = vadd.f32 %v89, %v154
  %v161 = vadd.f32 %v90, %v154
  %v162 = vadd.f32 %v91, %v154
  %v163 = vadd.f32 %v92, %v154
  %v164 = vadd.f32 %v93, %v154
  %v165 = vadd.f32 %v94, %v154
  %v166 = vadd.f32 %v95, %v154
  %v167 = vadd.f32 %v96, %v154
  %v168 = vadd.f32 %v97, %v154
  %v169 = vadd.f32 %v98, %v154
  %v170 = vadd.f32 %v99, %v154
  %v171 = vadd.f32 %v100, %v154
  %v172 = vadd.f32 %v101, %v154
  %v173 = vadd.f32 %v102, %v154
  %v174 = vadd.f32 %v103, %v154
  %v175 = vadd.f32 %v104, %v154
  %v176 = vadd.f32 %v105, %v154
  %v177 = vadd.f32 %v106, %v154
  %v178 = vadd.f32 %v107, %v154
  %v179 = vadd.f32 %v108, %v154
  %v180 = vadd.f32 %v109, %v154
  %v181 = vadd.f32 %v110, %v154
  %v182 = vadd.f32 %v111, %v154
  %v183 = vadd.f32 %v112, %v154
  %v184 = vadd.f32 %v113, %v154
  %v185 = vadd.f32 %v114, %v154
  %v186 = vadd.f32 %v115, %v154
  %v187 = vadd.f32 %v116, %v154
  %v188 = vadd.f32 %v117, %v154
  %v189 = vadd.f32 %v118, %v154
  %v190 = vadd.f32 %v119, %v154
  %v191 = vadd.f32 %v120, %v154
  %v192 = vadd.f32 %v121, %v154
  %v193 = vadd.f32 %v122, %v154
  %v194 = vadd.f32 %v123, %v154
  %v195 = vadd.f32 %v124, %v154
  %v196 = vadd.f32 %v125, %v154
  %v197 = vadd.f32 %v126, %v154
  %v198 = vadd.f32 %v127, %v154
  %v199 = vadd.f32 %v128, %v154
  %v200 = vadd.f32 %v129, %v154
  %v201 = vadd.f32 %v130, %v154
  %v202 = vadd.f32 %v131, %v154
  %v203 = vadd.f32 %v132, %v154
  %v204 = vadd.f32 %v133, %v154
  %v205 = vadd.f32 %v134, %v154
  %v206 = vadd.f32 %v135, %v154
  %v207 = vadd.f32 %v136, %v154
  %v208 = vadd.f32 %v137, %v154
  %v209 = vadd.f32 %v138, %v154
  %v210 = vadd.f32 %v139, %v154
  %v211 = vadd.f32 %v140, %v154
  %v212 = vadd.f32 %v141, %v154
  %v213 = vadd.f32 %v142, %v154
  %v214 = vadd.f32 %v143, %v154
  %v215 = vadd.f32 %v144, %v154
  %v216 = vadd.f32 %v145, %v154
  %v217 = vadd.f32 %v146, %v154
  %v218 = vadd.f32 %v147, %v154
  %v219 = vadd.f32 %v148, %v154
  %v220 = vmax.f32 %v156, 0.0
  %v221 = vmax.f32 %v157, 0.0
  %v222 = vmax.f32 %v158, 0.0
  %v223 = vmax.f32 %v159, 0.0
  %v224 = vmax.f32 %v160, 0.0
  %v225 = vmax.f32 %v161, 0.0
  %v226 = vmax.f32 %v162, 0.0
  %v227 = vmax.f32 %v163, 0.0
  %v228 = vmax.f32 %v164, 0.0
  %v229 = vmax.f32 %v165, 0.0
  %v230 = vmax.f32 %v166, 0.0
  %v231 = vmax.f32 %v167, 0.0
  %v232 = vmax.f32 %v168, 0.0
  %v233 = vmax.f32 %v169, 0.0
  %v234 = vmax.f32 %v170, 0.0
  %v235 = vmax.f32 %v171, 0.0
  %v236 = vmax.f32 %v172, 0.0
  %v237 = vmax.f32 %v173, 0.0
  %v238 = vmax.f32 %v174, 0.0
  %v239 = vmax.f32 %v175, 0.0
  %v240 = vmax.f32 %v176, 0.0
  %v241 = vmax.f32 %v177, 0.0
  %v242 = vmax.f32 %v178, 0.0
  %v243 = vmax.f32 %v179, 0.0
  %v244 = vmax.f32 %v180, 0.0
  %v245 = vmax.f32 %v181, 0.0
  %v246 = vmax.f32 %v182, 0.0
  %v247 = vmax.f32 %v183, 0.0
  %v248 = vmax.f32 %v184, 0.0
  %v249 = vmax.f32 %v185, 0.0
  %v250 = vmax.f32 %v186, 0.0
  %v251 = vmax.f32 %v187, 0.0
  %v252 = vmax.f32 %v188, 0.0
  %v253 = vmax.f32 %v189, 0.0
  %v254 = vmax.f32 %v190, 0.0
  %v255 = vmax.f32 %v191, 0.0
  %v256 = vmax.f32 %v192, 0.0
  %v257 = vmax.f32 %v193, 0.0
  %v258 = vmax.f32 %v194, 0.0
  %v259 = vmax.f32 %v195, 0.0
  %v260 = vmax.f32 %v196, 0.0
  %v261 = vmax.f32 %v197, 0.0
  %v262 = vmax.f32 %v198, 0.0
  %v263 = vmax.f32 %v199, 0.0
  %v264 = vmax.f32 %v200, 0.0
  %v265 = vmax.f32 %v201, 0.0
  %v266 = vmax.f32 %v202, 0.0
  %v267 = vmax.f32 %v203, 0.0
  %v268 = vmax.f32 %v204, 0.0
  %v269 = vmax.f32 %v205, 0.0
  %v270 = vmax.f32 %v206, 0.0
  %v271 = vmax.f32 %v207, 0.0
  %v272 = vmax.f32 %v208, 0.0
  %v273 = vmax.f32 %v209, 0.0
  %v274 = vmax.f32 %v210, 0.0
  %v275 = vmax.f32 %v211, 0.0
  %v276 = vmax.f32 %v212, 0.0
  %v277 = vmax.f32 %v213, 0.0
  %v278 = vmax.f32 %v214, 0.0
  %v279 = vmax.f32 %v215, 0.0
  %v280 = vmax.f32 %v216, 0.0
  %v281 = vmax.f32 %v217, 0.0
  %v282 = vmax.f32 %v218, 0.0
  %v283 = vmax.f32 %v219, 0.0
  %v284 = vpack.c.bf16 %v221, %v220
  %v285 = vpack.c.bf16 %v223, %v222
  %v286 = vpack.c.bf16 %v225, %v224
  %v287 = vpack.c.bf16 %v227, %v226
  %v288 = vpack.c.bf16 %v229, %v228
  %v289 = vpack.c.bf16 %v231, %v230
  %v290 = vpack.c.bf16 %v233, %v232
  %v291 = vpack.c.bf16 %v235, %v234
  %v292 = vpack.c.bf16 %v237, %v236
  %v293 = vpack.c.bf16 %v239, %v238
  %v294 = vpack.c.bf16 %v241, %v240
  %v295 = vpack.c.bf16 %v243, %v242
  %v296 = vpack.c.bf16 %v245, %v244
  %v297 = vpack.c.bf16 %v247, %v246
  %v298 = vpack.c.bf16 %v249, %v248
  %v299 = vpack.c.bf16 %v251, %v250
  %v300 = vpack.c.bf16 %v253, %v252
  %v301 = vpack.c.bf16 %v255, %v254
  %v302 = vpack.c.bf16 %v257, %v256
  %v303 = vpack.c.bf16 %v259, %v258
  %v304 = vpack.c.bf16 %v261, %v260
  %v305 = vpack.c.bf16 %v263, %v262
  %v306 = vpack.c.bf16 %v265, %v264
  %v307 = vpack.c.bf16 %v267, %v266
  %v308 = vpack.c.bf16 %v269, %v268
  %v309 = vpack.c.bf16 %v271, %v270
  %v310 = vpack.c.bf16 %v273, %v272
  %v311 = vpack.c.bf16 %v275, %v274
  %v312 = vpack.c.bf16 %v277, %v276
  %v313 = vpack.c.bf16 %v279, %v278
  %v314 = vpack.c.bf16 %v281, %v280
  %v315 = vpack.c.bf16 %v283, %v282
  %v348 = vunpack.c.l.b16 %v284
  %v349 = vunpack.c.h.b16 %v284
  %v350 = vunpack.c.l.b16 %v285
  %v351 = vunpack.c.h.b16 %v285
  %v352 = vunpack.c.l.b16 %v286
  %v353 = vunpack.c.h.b16 %v286
  %v354 = vunpack.c.l.b16 %v287
  %v355 = vunpack.c.h.b16 %v287
  %v356 = vunpack.c.l.b16 %v288
  %v357 = vunpack.c.h.b16 %v288
  %v358 = vunpack.c.l.b16 %v289
  %v359 = vunpack.c.h.b16 %v289
  %v360 = vunpack.c.l.b16 %v290
  %v361 = vunpack.c.h.b16 %v290
  %v362 = vunpack.c.l.b16 %v291
  %v363 = vunpack.c.h.b16 %v291
  %v364 = vunpack.c.l.b16 %v292
  %v365 = vunpack.c.h.b16 %v292
  %v366 = vunpack.c.l.b16 %v293
  %v367 = vunpack.c.h.b16 %v293
  %v368 = vunpack.c.l.b16 %v294
  %v369 = vunpack.c.h.b16 %v294
  %v370 = vunpack.c.l.b16 %v295
  %v371 = vunpack.c.h.b16 %v295
  %v372 = vunpack.c.l.b16 %v296
  %v373 = vunpack.c.h.b16 %v296
  %v374 = vunpack.c.l.b16 %v297
  %v375 = vunpack.c.h.b16 %v297
  %v376 = vunpack.c.l.b16 %v298
  %v377 = vunpack.c.h.b16 %v298
  %v378 = vunpack.c.l.b16 %v299
  %v379 = vunpack.c.h.b16 %v299
  %v380 = vunpack.c.l.b16 %v300
  %v381 = vunpack.c.h.b16 %v300
  %v382 = vunpack.c.l.b16 %v301
  %v383 = vunpack.c.h.b16 %v301
  %v384 = vunpack.c.l.b16 %v302
  %v385 = vunpack.c.h.b16 %v302
  %v386 = vunpack.c.l.b16 %v303
  %v387 = vunpack.c.h.b16 %v303
  %v388 = vunpack.c.l.b16 %v304
  %v389 = vunpack.c.h.b16 %v304
  %v390 = vunpack.c.l.b16 %v305
  %v391 = vunpack.c.h.b16 %v305
  %v392 = vunpack.c.l.b16 %v306
  %v393 = vunpack.c.h.b16 %v306
  %v394 = vunpack.c.l.b16 %v307
  %v395 = vunpack.c.h.b16 %v307
  %v396 = vunpack.c.l.b16 %v308
  %v397 = vunpack.c.h.b16 %v308
  %v398 = vunpack.c.l.b16 %v309
  %v399 = vunpack.c.h.b16 %v309
  %v400 = vunpack.c.l.b16 %v310
  %v401 = vunpack.c.h.b16 %v310
  %v402 = vunpack.c.l.b16 %v311
  %v403 = vunpack.c.h.b16 %v311
  %v404 = vunpack.c.l.b16 %v312
  %v405 = vunpack.c.h.b16 %v312
  %v406 = vunpack.c.l.b16 %v313
  %v407 = vunpack.c.h.b16 %v313
  %v408 = vunpack.c.l.b16 %v314
  %v409 = vunpack.c.h.b16 %v314
  %v410 = vunpack.c.l.b16 %v315
  %v411 = vunpack.c.h.b16 %v315
  %v412 = vpack.c.b16 %v348, %v348
  %v413 = vpack.c.b16 %v349, %v349
  %v414 = vpack.c.b16 %v350, %v350
  %v415 = vpack.c.b16 %v351, %v351
  %v416 = vpack.c.b16 %v352, %v352
  %v417 = vpack.c.b16 %v353, %v353
  %v418 = vpack.c.b16 %v354, %v354
  %v419 = vpack.c.b16 %v355, %v355
  %v420 = vpack.c.b16 %v356, %v356
  %v421 = vpack.c.b16 %v357, %v357
  %v422 = vpack.c.b16 %v358, %v358
  %v423 = vpack.c.b16 %v359, %v359
  %v424 = vpack.c.b16 %v360, %v360
  %v425 = vpack.c.b16 %v361, %v361
  %v426 = vpack.c.b16 %v362, %v362
  %v427 = vpack.c.b16 %v363, %v363
  %v428 = vpack.c.b16 %v364, %v364
  %v429 = vpack.c.b16 %v365, %v365
  %v430 = vpack.c.b16 %v366, %v366
  %v431 = vpack.c.b16 %v367, %v367
  %v432 = vpack.c.b16 %v368, %v368
  %v433 = vpack.c.b16 %v369, %v369
  %v434 = vpack.c.b16 %v370, %v370
  %v435 = vpack.c.b16 %v371, %v371
  %v436 = vpack.c.b16 %v372, %v372
  %v437 = vpack.c.b16 %v373, %v373
  %v438 = vpack.c.b16 %v374, %v374
  %v439 = vpack.c.b16 %v375, %v375
  %v440 = vpack.c.b16 %v376, %v376
  %v441 = vpack.c.b16 %v377, %v377
  %v442 = vpack.c.b16 %v378, %v378
  %v443 = vpack.c.b16 %v379, %v379
  %v444 = vpack.c.b16 %v380, %v380
  %v445 = vpack.c.b16 %v381, %v381
  %v446 = vpack.c.b16 %v382, %v382
  %v447 = vpack.c.b16 %v383, %v383
  %v448 = vpack.c.b16 %v384, %v384
  %v449 = vpack.c.b16 %v385, %v385
  %v450 = vpack.c.b16 %v386, %v386
  %v451 = vpack.c.b16 %v387, %v387
  %v452 = vpack.c.b16 %v388, %v388
  %v453 = vpack.c.b16 %v389, %v389
  %v454 = vpack.c.b16 %v390, %v390
  %v455 = vpack.c.b16 %v391, %v391
  %v456 = vpack.c.b16 %v392, %v392
  %v457 = vpack.c.b16 %v393, %v393
  %v458 = vpack.c.b16 %v394, %v394
  %v459 = vpack.c.b16 %v395, %v395
  %v460 = vpack.c.b16 %v396, %v396
  %v461 = vpack.c.b16 %v397, %v397
  %v462 = vpack.c.b16 %v398, %v398
  %v463 = vpack.c.b16 %v399, %v399
  %v464 = vpack.c.b16 %v400, %v400
  %v465 = vpack.c.b16 %v401, %v401
  %v466 = vpack.c.b16 %v402, %v402
  %v467 = vpack.c.b16 %v403, %v403
  %v468 = vpack.c.b16 %v404, %v404
  %v469 = vpack.c.b16 %v405, %v405
  %v470 = vpack.c.b16 %v406, %v406
  %v471 = vpack.c.b16 %v407, %v407
  %v472 = vpack.c.b16 %v408, %v408
  %v473 = vpack.c.b16 %v409, %v409
  %v474 = vpack.c.b16 %v410, %v410
  %v475 = vpack.c.b16 %v411, %v411
  %540 = vst [vmem:[%s3] sm:$0xf] %v412
  %541 = vst [vmem:[%s3 + $0x4] sm:$0xf] %v413
  %542 = vst [vmem:[%s3 + $0x8] sm:$0xf] %v414
  %543 = vst [vmem:[%s3 + $0xc] sm:$0xf] %v415
  %544 = vst [vmem:[%s3 + $0x10] sm:$0xf] %v416
  %545 = vst [vmem:[%s3 + $0x14] sm:$0xf] %v417
  %546 = vst [vmem:[%s3 + $0x18] sm:$0xf] %v418
  %547 = vst [vmem:[%s3 + $0x1c] sm:$0xf] %v419
  %548 = vst [vmem:[%s3 + $0x20] sm:$0xf] %v420
  %549 = vst [vmem:[%s3 + $0x24] sm:$0xf] %v421
  %550 = vst [vmem:[%s3 + $0x28] sm:$0xf] %v422
  %551 = vst [vmem:[%s3 + $0x2c] sm:$0xf] %v423
  %552 = vst [vmem:[%s3 + $0x30] sm:$0xf] %v424
  %553 = vst [vmem:[%s3 + $0x34] sm:$0xf] %v425
  %554 = vst [vmem:[%s3 + $0x38] sm:$0xf] %v426
  %555 = vst [vmem:[%s3 + $0x3c] sm:$0xf] %v427
  %556 = vst [vmem:[%s3 + $0x40] sm:$0xf] %v428
  %557 = vst [vmem:[%s3 + $0x44] sm:$0xf] %v429
  %558 = vst [vmem:[%s3 + $0x48] sm:$0xf] %v430
  %559 = vst [vmem:[%s3 + $0x4c] sm:$0xf] %v431
  %560 = vst [vmem:[%s3 + $0x50] sm:$0xf] %v432
  %561 = vst [vmem:[%s3 + $0x54] sm:$0xf] %v433
  %562 = vst [vmem:[%s3 + $0x58] sm:$0xf] %v434
  %563 = vst [vmem:[%s3 + $0x5c] sm:$0xf] %v435
  %564 = vst [vmem:[%s3 + $0x60] sm:$0xf] %v436
  %565 = vst [vmem:[%s3 + $0x64] sm:$0xf] %v437
  %566 = vst [vmem:[%s3 + $0x68] sm:$0xf] %v438
  %567 = vst [vmem:[%s3 + $0x6c] sm:$0xf] %v439
  %568 = vst [vmem:[%s3 + $0x70] sm:$0xf] %v440
  %569 = vst [vmem:[%s3 + $0x74] sm:$0xf] %v441
  %570 = vst [vmem:[%s3 + $0x78] sm:$0xf] %v442
  %571 = vst [vmem:[%s3 + $0x7c] sm:$0xf] %v443
  %572 = vst [vmem:[%s3 + $0x80] sm:$0xf] %v444
  %573 = vst [vmem:[%s3 + $0x84] sm:$0xf] %v445
  %574 = vst [vmem:[%s3 + $0x88] sm:$0xf] %v446
  %575 = vst [vmem:[%s3 + $0x8c] sm:$0xf] %v447
  %576 = vst [vmem:[%s3 + $0x90] sm:$0xf] %v448
  %577 = vst [vmem:[%s3 + $0x94] sm:$0xf] %v449
  %578 = vst [vmem:[%s3 + $0x98] sm:$0xf] %v450
  %579 = vst [vmem:[%s3 + $0x9c] sm:$0xf] %v451
  %580 = vst [vmem:[%s3 + $0xa0] sm:$0xf] %v452
  %581 = vst [vmem:[%s3 + $0xa4] sm:$0xf] %v453
  %582 = vst [vmem:[%s3 + $0xa8] sm:$0xf] %v454
  %583 = vst [vmem:[%s3 + $0xac] sm:$0xf] %v455
  %584 = vst [vmem:[%s3 + $0xb0] sm:$0xf] %v456
  %585 = vst [vmem:[%s3 + $0xb4] sm:$0xf] %v457
  %586 = vst [vmem:[%s3 + $0xb8] sm:$0xf] %v458
  %587 = vst [vmem:[%s3 + $0xbc] sm:$0xf] %v459
  %588 = vst [vmem:[%s3 + $0xc0] sm:$0xf] %v460
  %589 = vst [vmem:[%s3 + $0xc4] sm:$0xf] %v461
  %590 = vst [vmem:[%s3 + $0xc8] sm:$0xf] %v462
  %591 = vst [vmem:[%s3 + $0xcc] sm:$0xf] %v463
  %592 = vst [vmem:[%s3 + $0xd0] sm:$0xf] %v464
  %593 = vst [vmem:[%s3 + $0xd4] sm:$0xf] %v465
  %594 = vst [vmem:[%s3 + $0xd8] sm:$0xf] %v466
  %595 = vst [vmem:[%s3 + $0xdc] sm:$0xf] %v467
  %596 = vst [vmem:[%s3 + $0xe0] sm:$0xf] %v468
  %597 = vst [vmem:[%s3 + $0xe4] sm:$0xf] %v469
  %598 = vst [vmem:[%s3 + $0xe8] sm:$0xf] %v470
  %599 = vst [vmem:[%s3 + $0xec] sm:$0xf] %v471
  %600 = vst [vmem:[%s3 + $0xf0] sm:$0xf] %v472
  %601 = vst [vmem:[%s3 + $0xf4] sm:$0xf] %v473
  %602 = vst [vmem:[%s3 + $0xf8] sm:$0xf] %v474
  %603 = vst [vmem:[%s3 + $0xfc] sm:$0xf] %v475
  // Predicated region
  $region14: #{conv_block_forward.5} parent=0 // pred_check
    _
  $region15: #{conv_block_forward.5} parent=0 // pred_check_branch
    %605 = sbr.rel (0) target = $region17
  $region16: #{conv_block_forward.5} parent=0 // pred_region
    _
  $region17: #{conv_block_forward.5} parent=0 // pred_fallthru
    _
  // Predicated region
  $region18: #{conv_block_forward.5} parent=0 // pred_check
    _
  $region19: #{conv_block_forward.5} parent=0 // pred_check_branch
    %607 = sbr.rel (0) target = $region21
  $region20: #{conv_block_forward.5} parent=0 // pred_region
    _
  $region21: #{conv_block_forward.5} parent=0 // pred_fallthru
    _

// kernel: conv_block_forward.7
$region0: #{conv_block_forward.7}
  #allocation0 [shape = 'u32[]', space=smem, size = 0x4, offset = 0x4, fixed_abs, tag = 'smem constant byte address 0x4 - core index']
  #allocation1 [shape = 'u32[144,128]{1,0:T(1,128)}', space=vmem, size = 0x12000, scoped, tag = 'internal scratch']
  %s0 = inlined_call_operand.vmem [shape: f32[2,16,16,128], index: 0, kind: input, shape index: {}]
  %s1 = inlined_call_operand.vmem [shape: f32[1,1,1,128], index: 1, kind: input, shape index: {}]
  %s2 = inlined_call_operand.vmem [shape: f32[1,1,1,128], index: 2, kind: input, shape index: {}]
  %s3 = inlined_call_operand.vmem [shape: f32[2,16,16,128], index: 3, kind: output, shape index: {}]
  %s4 = sld [smem:[#allocation0]]
  $region22: #{conv_block_forward.7} parent=0
    _
  %s6 = ssub.s32 1, %s4
  %s7 = scalar_select 0, %s6, %s4
  // Predicated region
  $region2: #{conv_block_forward.7} parent=0 // pred_check
    _
  $region3: #{conv_block_forward.7} parent=0 // pred_check_branch
    %9 = sbr.rel (0) target = $region5
  $region4: #{conv_block_forward.7} parent=0 // pred_region
    _
  $region5: #{conv_block_forward.7} parent=0 // pred_fallthru
    _
  // Predicated region
  $region6: #{conv_block_forward.7} parent=0 // pred_check
    _
  $region7: #{conv_block_forward.7} parent=0 // pred_check_branch
    %11 = sbr.rel (0) target = $region9
  $region8: #{conv_block_forward.7} parent=0 // pred_region
    _
  $region9: #{conv_block_forward.7} parent=0 // pred_fallthru
    _
  // Predicated region
  $region10: #{conv_block_forward.7} parent=0 // pred_check
    _
  $region11: #{conv_block_forward.7} parent=0 // pred_check_branch
    %13 = sbr.rel (0) target = $region13
  $region12: #{conv_block_forward.7} parent=0 // pred_region
    _
  $region13: #{conv_block_forward.7} parent=0 // pred_fallthru
    _
  %v14 = vld [vmem:[%s0] sm:$0xff]
  %v15 = vld [vmem:[%s0 + $0x8] sm:$0xff]
  %v16 = vld [vmem:[%s0 + $0x10] sm:$0xff]
  %v17 = vld [vmem:[%s0 + $0x18] sm:$0xff]
  %v18 = vld [vmem:[%s0 + $0x20] sm:$0xff]
  %v19 = vld [vmem:[%s0 + $0x28] sm:$0xff]
  %v20 = vld [vmem:[%s0 + $0x30] sm:$0xff]
  %v21 = vld [vmem:[%s0 + $0x38] sm:$0xff]
  %v22 = vld [vmem:[%s0 + $0x40] sm:$0xff]
  %v23 = vld [vmem:[%s0 + $0x48] sm:$0xff]
  %v24 = vld [vmem:[%s0 + $0x50] sm:$0xff]
  %v25 = vld [vmem:[%s0 + $0x58] sm:$0xff]
  %v26 = vld [vmem:[%s0 + $0x60] sm:$0xff]
  %v27 = vld [vmem:[%s0 + $0x68] sm:$0xff]
  %v28 = vld [vmem:[%s0 + $0x70] sm:$0xff]
  %v29 = vld [vmem:[%s0 + $0x78] sm:$0xff]
  %v30 = vld [vmem:[%s0 + $0x80] sm:$0xff]
  %v31 = vld [vmem:[%s0 + $0x88] sm:$0xff]
  %v32 = vld [vmem:[%s0 + $0x90] sm:$0xff]
  %v33 = vld [vmem:[%s0 + $0x98] sm:$0xff]
  %v34 = vld [vmem:[%s0 + $0xa0] sm:$0xff]
  %v35 = vld [vmem:[%s0 + $0xa8] sm:$0xff]
  %v36 = vld [vmem:[%s0 + $0xb0] sm:$0xff]
  %v37 = vld [vmem:[%s0 + $0xb8] sm:$0xff]
  %v38 = vld [vmem:[%s0 + $0xc0] sm:$0xff]
  %v39 = vld [vmem:[%s0 + $0xc8] sm:$0xff]
  %v40 = vld [vmem:[%s0 + $0xd0] sm:$0xff]
  %v41 = vld [vmem:[%s0 + $0xd8] sm:$0xff]
  %v42 = vld [vmem:[%s0 + $0xe0] sm:$0xff]
  %v43 = vld [vmem:[%s0 + $0xe8] sm:$0xff]
  %v44 = vld [vmem:[%s0 + $0xf0] sm:$0xff]
  %v45 = vld [vmem:[%s0 + $0xf8] sm:$0xff]
  %v46 = vld [vmem:[%s0 + $0x100] sm:$0xff]
  %v47 = vld [vmem:[%s0 + $0x108] sm:$0xff]
  %v48 = vld [vmem:[%s0 + $0x110] sm:$0xff]
  %v49 = vld [vmem:[%s0 + $0x118] sm:$0xff]
  %v50 = vld [vmem:[%s0 + $0x120] sm:$0xff]
  %v51 = vld [vmem:[%s0 + $0x128] sm:$0xff]
  %v52 = vld [vmem:[%s0 + $0x130] sm:$0xff]
  %v53 = vld [vmem:[%s0 + $0x138] sm:$0xff]
  %v54 = vld [vmem:[%s0 + $0x140] sm:$0xff]
  %v55 = vld [vmem:[%s0 + $0x148] sm:$0xff]
  %v56 = vld [vmem:[%s0 + $0x150] sm:$0xff]
  %v57 = vld [vmem:[%s0 + $0x158] sm:$0xff]
  %v58 = vld [vmem:[%s0 + $0x160] sm:$0xff]
  %v59 = vld [vmem:[%s0 + $0x168] sm:$0xff]
  %v60 = vld [vmem:[%s0 + $0x170] sm:$0xff]
  %v61 = vld [vmem:[%s0 + $0x178] sm:$0xff]
  %v62 = vld [vmem:[%s0 + $0x180] sm:$0xff]
  %v63 = vld [vmem:[%s0 + $0x188] sm:$0xff]
  %v64 = vld [vmem:[%s0 + $0x190] sm:$0xff]
  %v65 = vld [vmem:[%s0 + $0x198] sm:$0xff]
  %v66 = vld [vmem:[%s0 + $0x1a0] sm:$0xff]
  %v67 = vld [vmem:[%s0 + $0x1a8] sm:$0xff]
  %v68 = vld [vmem:[%s0 + $0x1b0] sm:$0xff]
  %v69 = vld [vmem:[%s0 + $0x1b8] sm:$0xff]
  %v70 = vld [vmem:[%s0 + $0x1c0] sm:$0xff]
  %v71 = vld [vmem:[%s0 + $0x1c8] sm:$0xff]
  %v72 = vld [vmem:[%s0 + $0x1d0] sm:$0xff]
  %v73 = vld [vmem:[%s0 + $0x1d8] sm:$0xff]
  %v74 = vld [vmem:[%s0 + $0x1e0] sm:$0xff]
  %v75 = vld [vmem:[%s0 + $0x1e8] sm:$0xff]
  %v76 = vld [vmem:[%s0 + $0x1f0] sm:$0xff]
  %v77 = vld [vmem:[%s0 + $0x1f8] sm:$0xff]
  %v78 = vld [vmem:[%s1] sm:$0x1]
  %v80 = vlaneseq
  %v81 = vshrl.u32 %v80, 7
  %v82 = vsub.s32 0, %v81
  %v83 = vrot.slane %v78, %v82
  %v85 = vmul.f32 %v14, %v83
  %v86 = vmul.f32 %v15, %v83
  %v87 = vmul.f32 %v16, %v83
  %v88 = vmul.f32 %v17, %v83
  %v89 = vmul.f32 %v18, %v83
  %v90 = vmul.f32 %v19, %v83
  %v91 = vmul.f32 %v20, %v83
  %v92 = vmul.f32 %v21, %v83
  %v93 = vmul.f32 %v22, %v83
  %v94 = vmul.f32 %v23, %v83
  %v95 = vmul.f32 %v24, %v83
  %v96 = vmul.f32 %v25, %v83
  %v97 = vmul.f32 %v26, %v83
  %v98 = vmul.f32 %v27, %v83
  %v99 = vmul.f32 %v28, %v83
  %v100 = vmul.f32 %v29, %v83
  %v101 = vmul.f32 %v30, %v83
  %v102 = vmul.f32 %v31, %v83
  %v103 = vmul.f32 %v32, %v83
  %v104 = vmul.f32 %v33, %v83
  %v105 = vmul.f32 %v34, %v83
  %v106 = vmul.f32 %v35, %v83
  %v107 = vmul.f32 %v36, %v83
  %v108 = vmul.f32 %v37, %v83
  %v109 = vmul.f32 %v38, %v83
  %v110 = vmul.f32 %v39, %v83
  %v111 = vmul.f32 %v40, %v83
  %v112 = vmul.f32 %v41, %v83
  %v113 = vmul.f32 %v42, %v83
  %v114 = vmul.f32 %v43, %v83
  %v115 = vmul.f32 %v44, %v83
  %v116 = vmul.f32 %v45, %v83
  %v117 = vmul.f32 %v46, %v83
  %v118 = vmul.f32 %v47, %v83
  %v119 = vmul.f32 %v48, %v83
  %v120 = vmul.f32 %v49, %v83
  %v121 = vmul.f32 %v50, %v83
  %v122 = vmul.f32 %v51, %v83
  %v123 = vmul.f32 %v52, %v83
  %v124 = vmul.f32 %v53, %v83
  %v125 = vmul.f32 %v54, %v83
  %v126 = vmul.f32 %v55, %v83
  %v127 = vmul.f32 %v56, %v83
  %v128 = vmul.f32 %v57, %v83
  %v129 = vmul.f32 %v58, %v83
  %v130 = vmul.f32 %v59, %v83
  %v131 = vmul.f32 %v60, %v83
  %v132 = vmul.f32 %v61, %v83
  %v133 = vmul.f32 %v62, %v83
  %v134 = vmul.f32 %v63, %v83
  %v135 = vmul.f32 %v64, %v83
  %v136 = vmul.f32 %v65, %v83
  %v137 = vmul.f32 %v66, %v83
  %v138 = vmul.f32 %v67, %v83
  %v139 = vmul.f32 %v68, %v83
  %v140 = vmul.f32 %v69, %v83
  %v141 = vmul.f32 %v70, %v83
  %v142 = vmul.f32 %v71, %v83
  %v143 = vmul.f32 %v72, %v83
  %v144 = vmul.f32 %v73, %v83
  %v145 = vmul.f32 %v74, %v83
  %v146 = vmul.f32 %v75, %v83
  %v147 = vmul.f32 %v76, %v83
  %v148 = vmul.f32 %v77, %v83
  %v149 = vld [vmem:[%s2] sm:$0x1]
  %v151 = vlaneseq
  %v152 = vshrl.u32 %v151, 7
  %v153 = vsub.s32 0, %v152
  %v154 = vrot.slane %v149, %v153
  %v156 = vadd.f32 %v85, %v154
  %v157 = vadd.f32 %v86, %v154
  %v158 = vadd.f32 %v87, %v154
  %v159 = vadd.f32 %v88, %v154
  %v160 = vadd.f32 %v89, %v154
  %v161 = vadd.f32 %v90, %v154
  %v162 = vadd.f32 %v91, %v154
  %v163 = vadd.f32 %v92, %v154
  %v164 = vadd.f32 %v93, %v154
  %v165 = vadd.f32 %v94, %v154
  %v166 = vadd.f32 %v95, %v154
  %v167 = vadd.f32 %v96, %v154
  %v168 = vadd.f32 %v97, %v154
  %v169 = vadd.f32 %v98, %v154
  %v170 = vadd.f32 %v99, %v154
  %v171 = vadd.f32 %v100, %v154
  %v172 = vadd.f32 %v101, %v154
  %v173 = vadd.f32 %v102, %v154
  %v174 = vadd.f32 %v103, %v154
  %v175 = vadd.f32 %v104, %v154
  %v176 = vadd.f32 %v105, %v154
  %v177 = vadd.f32 %v106, %v154
  %v178 = vadd.f32 %v107, %v154
  %v179 = vadd.f32 %v108, %v154
  %v180 = vadd.f32 %v109, %v154
  %v181 = vadd.f32 %v110, %v154
  %v182 = vadd.f32 %v111, %v154
  %v183 = vadd.f32 %v112, %v154
  %v184 = vadd.f32 %v113, %v154
  %v185 = vadd.f32 %v114, %v154
  %v186 = vadd.f32 %v115, %v154
  %v187 = vadd.f32 %v116, %v154
  %v188 = vadd.f32 %v117, %v154
  %v189 = vadd.f32 %v118, %v154
  %v190 = vadd.f32 %v119, %v154
  %v191 = vadd.f32 %v120, %v154
  %v192 = vadd.f32 %v121, %v154
  %v193 = vadd.f32 %v122, %v154
  %v194 = vadd.f32 %v123, %v154
  %v195 = vadd.f32 %v124, %v154
  %v196 = vadd.f32 %v125, %v154
  %v197 = vadd.f32 %v126, %v154
  %v198 = vadd.f32 %v127, %v154
  %v199 = vadd.f32 %v128, %v154
  %v200 = vadd.f32 %v129, %v154
  %v201 = vadd.f32 %v130, %v154
  %v202 = vadd.f32 %v131, %v154
  %v203 = vadd.f32 %v132, %v154
  %v204 = vadd.f32 %v133, %v154
  %v205 = vadd.f32 %v134, %v154
  %v206 = vadd.f32 %v135, %v154
  %v207 = vadd.f32 %v136, %v154
  %v208 = vadd.f32 %v137, %v154
  %v209 = vadd.f32 %v138, %v154
  %v210 = vadd.f32 %v139, %v154
  %v211 = vadd.f32 %v140, %v154
  %v212 = vadd.f32 %v141, %v154
  %v213 = vadd.f32 %v142, %v154
  %v214 = vadd.f32 %v143, %v154
  %v215 = vadd.f32 %v144, %v154
  %v216 = vadd.f32 %v145, %v154
  %v217 = vadd.f32 %v146, %v154
  %v218 = vadd.f32 %v147, %v154
  %v219 = vadd.f32 %v148, %v154
  %v220 = vmax.f32 %v156, 0.0
  %v221 = vmax.f32 %v157, 0.0
  %v222 = vmax.f32 %v158, 0.0
  %v223 = vmax.f32 %v159, 0.0
  %v224 = vmax.f32 %v160, 0.0
  %v225 = vmax.f32 %v161, 0.0
  %v226 = vmax.f32 %v162, 0.0
  %v227 = vmax.f32 %v163, 0.0
  %v228 = vmax.f32 %v164, 0.0
  %v229 = vmax.f32 %v165, 0.0
  %v230 = vmax.f32 %v166, 0.0
  %v231 = vmax.f32 %v167, 0.0
  %v232 = vmax.f32 %v168, 0.0
  %v233 = vmax.f32 %v169, 0.0
  %v234 = vmax.f32 %v170, 0.0
  %v235 = vmax.f32 %v171, 0.0
  %v236 = vmax.f32 %v172, 0.0
  %v237 = vmax.f32 %v173, 0.0
  %v238 = vmax.f32 %v174, 0.0
  %v239 = vmax.f32 %v175, 0.0
  %v240 = vmax.f32 %v176, 0.0
  %v241 = vmax.f32 %v177, 0.0
  %v242 = vmax.f32 %v178, 0.0
  %v243 = vmax.f32 %v179, 0.0
  %v244 = vmax.f32 %v180, 0.0
  %v245 = vmax.f32 %v181, 0.0
  %v246 = vmax.f32 %v182, 0.0
  %v247 = vmax.f32 %v183, 0.0
  %v248 = vmax.f32 %v184, 0.0
  %v249 = vmax.f32 %v185, 0.0
  %v250 = vmax.f32 %v186, 0.0
  %v251 = vmax.f32 %v187, 0.0
  %v252 = vmax.f32 %v188, 0.0
  %v253 = vmax.f32 %v189, 0.0
  %v254 = vmax.f32 %v190, 0.0
  %v255 = vmax.f32 %v191, 0.0
  %v256 = vmax.f32 %v192, 0.0
  %v257 = vmax.f32 %v193, 0.0
  %v258 = vmax.f32 %v194, 0.0
  %v259 = vmax.f32 %v195, 0.0
  %v260 = vmax.f32 %v196, 0.0
  %v261 = vmax.f32 %v197, 0.0
  %v262 = vmax.f32 %v198, 0.0
  %v263 = vmax.f32 %v199, 0.0
  %v264 = vmax.f32 %v200, 0.0
  %v265 = vmax.f32 %v201, 0.0
  %v266 = vmax.f32 %v202, 0.0
  %v267 = vmax.f32 %v203, 0.0
  %v268 = vmax.f32 %v204, 0.0
  %v269 = vmax.f32 %v205, 0.0
  %v270 = vmax.f32 %v206, 0.0
  %v271 = vmax.f32 %v207, 0.0
  %v272 = vmax.f32 %v208, 0.0
  %v273 = vmax.f32 %v209, 0.0
  %v274 = vmax.f32 %v210, 0.0
  %v275 = vmax.f32 %v211, 0.0
  %v276 = vmax.f32 %v212, 0.0
  %v277 = vmax.f32 %v213, 0.0
  %v278 = vmax.f32 %v214, 0.0
  %v279 = vmax.f32 %v215, 0.0
  %v280 = vmax.f32 %v216, 0.0
  %v281 = vmax.f32 %v217, 0.0
  %v282 = vmax.f32 %v218, 0.0
  %v283 = vmax.f32 %v219, 0.0
  %284 = vst [vmem:[%s3] sm:$0xff] %v220
  %285 = vst [vmem:[%s3 + $0x8] sm:$0xff] %v221
  %286 = vst [vmem:[%s3 + $0x10] sm:$0xff] %v222
  %287 = vst [vmem:[%s3 + $0x18] sm:$0xff] %v223
  %288 = vst [vmem:[%s3 + $0x20] sm:$0xff] %v224
  %289 = vst [vmem:[%s3 + $0x28] sm:$0xff] %v225
  %290 = vst [vmem:[%s3 + $0x30] sm:$0xff] %v226
  %291 = vst [vmem:[%s3 + $0x38] sm:$0xff] %v227
  %292 = vst [vmem:[%s3 + $0x40] sm:$0xff] %v228
  %293 = vst [vmem:[%s3 + $0x48] sm:$0xff] %v229
  %294 = vst [vmem:[%s3 + $0x50] sm:$0xff] %v230
  %295 = vst [vmem:[%s3 + $0x58] sm:$0xff] %v231
  %296 = vst [vmem:[%s3 + $0x60] sm:$0xff] %v232
  %297 = vst [vmem:[%s3 + $0x68] sm:$0xff] %v233
  %298 = vst [vmem:[%s3 + $0x70] sm:$0xff] %v234
  %299 = vst [vmem:[%s3 + $0x78] sm:$0xff] %v235
  %300 = vst [vmem:[%s3 + $0x80] sm:$0xff] %v236
  %301 = vst [vmem:[%s3 + $0x88] sm:$0xff] %v237
  %302 = vst [vmem:[%s3 + $0x90] sm:$0xff] %v238
  %303 = vst [vmem:[%s3 + $0x98] sm:$0xff] %v239
  %304 = vst [vmem:[%s3 + $0xa0] sm:$0xff] %v240
  %305 = vst [vmem:[%s3 + $0xa8] sm:$0xff] %v241
  %306 = vst [vmem:[%s3 + $0xb0] sm:$0xff] %v242
  %307 = vst [vmem:[%s3 + $0xb8] sm:$0xff] %v243
  %308 = vst [vmem:[%s3 + $0xc0] sm:$0xff] %v244
  %309 = vst [vmem:[%s3 + $0xc8] sm:$0xff] %v245
  %310 = vst [vmem:[%s3 + $0xd0] sm:$0xff] %v246
  %311 = vst [vmem:[%s3 + $0xd8] sm:$0xff] %v247
  %312 = vst [vmem:[%s3 + $0xe0] sm:$0xff] %v248
  %313 = vst [vmem:[%s3 + $0xe8] sm:$0xff] %v249
  %314 = vst [vmem:[%s3 + $0xf0] sm:$0xff] %v250
  %315 = vst [vmem:[%s3 + $0xf8] sm:$0xff] %v251
  %316 = vst [vmem:[%s3 + $0x100] sm:$0xff] %v252
  %317 = vst [vmem:[%s3 + $0x108] sm:$0xff] %v253
  %318 = vst [vmem:[%s3 + $0x110] sm:$0xff] %v254
  %319 = vst [vmem:[%s3 + $0x118] sm:$0xff] %v255
  %320 = vst [vmem:[%s3 + $0x120] sm:$0xff] %v256
  %321 = vst [vmem:[%s3 + $0x128] sm:$0xff] %v257
  %322 = vst [vmem:[%s3 + $0x130] sm:$0xff] %v258
  %323 = vst [vmem:[%s3 + $0x138] sm:$0xff] %v259
  %324 = vst [vmem:[%s3 + $0x140] sm:$0xff] %v260
  %325 = vst [vmem:[%s3 + $0x148] sm:$0xff] %v261
  %326 = vst [vmem:[%s3 + $0x150] sm:$0xff] %v262
  %327 = vst [vmem:[%s3 + $0x158] sm:$0xff] %v263
  %328 = vst [vmem:[%s3 + $0x160] sm:$0xff] %v264
  %329 = vst [vmem:[%s3 + $0x168] sm:$0xff] %v265
  %330 = vst [vmem:[%s3 + $0x170] sm:$0xff] %v266
  %331 = vst [vmem:[%s3 + $0x178] sm:$0xff] %v267
  %332 = vst [vmem:[%s3 + $0x180] sm:$0xff] %v268
  %333 = vst [vmem:[%s3 + $0x188] sm:$0xff] %v269
  %334 = vst [vmem:[%s3 + $0x190] sm:$0xff] %v270
  %335 = vst [vmem:[%s3 + $0x198] sm:$0xff] %v271
  %336 = vst [vmem:[%s3 + $0x1a0] sm:$0xff] %v272
  %337 = vst [vmem:[%s3 + $0x1a8] sm:$0xff] %v273
  %338 = vst [vmem:[%s3 + $0x1b0] sm:$0xff] %v274
  %339 = vst [vmem:[%s3 + $0x1b8] sm:$0xff] %v275
  %340 = vst [vmem:[%s3 + $0x1c0] sm:$0xff] %v276
  %341 = vst [vmem:[%s3 + $0x1c8] sm:$0xff] %v277
  %342 = vst [vmem:[%s3 + $0x1d0] sm:$0xff] %v278
  %343 = vst [vmem:[%s3 + $0x1d8] sm:$0xff] %v279
  %344 = vst [vmem:[%s3 + $0x1e0] sm:$0xff] %v280
  %345 = vst [vmem:[%s3 + $0x1e8] sm:$0xff] %v281
  %346 = vst [vmem:[%s3 + $0x1f0] sm:$0xff] %v282
  %347 = vst [vmem:[%s3 + $0x1f8] sm:$0xff] %v283
  // Predicated region
  $region14: #{conv_block_forward.7} parent=0 // pred_check
    _
  $region15: #{conv_block_forward.7} parent=0 // pred_check_branch
    %349 = sbr.rel (0) target = $region17
  $region16: #{conv_block_forward.7} parent=0 // pred_region
    _
  $region17: #{conv_block_forward.7} parent=0 // pred_fallthru
    _
  // Predicated region
  $region18: #{conv_block_forward.7} parent=0 // pred_check
    _
  $region19: #{conv_block_forward.7} parent=0 // pred_check_branch
    %351 = sbr.rel (0) target = $region21
  $region20: #{conv_block_forward.7} parent=0 // pred_region
    _
  $region21: #{conv_block_forward.7} parent=0 // pred_fallthru
    _

// kernel: conv_block_forward.4
$region0: #{conv_block_forward.4}
  #allocation0 [shape = 'u32[]', space=smem, size = 0x4, offset = 0x4, fixed_abs, tag = 'smem constant byte address 0x4 - core index']
  #allocation1 [shape = 'u32[144,128]{1,0:T(1,128)}', space=vmem, size = 0x12000, scoped, tag = 'internal scratch']
  %s0 = inlined_call_operand.vmem [shape: bf16[2,18,18,128], index: 0, kind: input, shape index: {}, may-alias: {0,1,2}]
  %s1 = inlined_call_operand.vmem [shape: bf16[2,18,18,128], index: 1, kind: input, shape index: {}, may-alias: {0,1,2}]
  %s2 = inlined_call_operand.vmem [shape: bf16[2,18,18,128], index: 2, kind: input, shape index: {}, may-alias: {0,1,2}]
  %s3 = inlined_call_operand.vmem [shape: bf16[9,128,128], index: 3, kind: input, shape index: {}]
  %s4 = inlined_call_operand.vmem [shape: f32[2,16,16,128], index: 4, kind: output, shape index: {0}]
  %s5 = inlined_call_operand.vmem [shape: f32[16,2,128], index: 5, kind: output, shape index: {1}]
  %6 = xla_tuple %s4, %s5
  %s7 = sld [smem:[#allocation0]]
  $region214: #{conv_block_forward.4} parent=0
    _
  %s9 = ssub.s32 1, %s7
  %s10 = scalar_select 0, %s9, %s7
  $region1: #{conv_block_forward.4} parent=0
    #allocation2 [shape = 'u8[24576]{0}', space=vmem, size = 0x6000, scoped, tag = 'input window, operand 0']
    #allocation3 [shape = 'u8[24576]{0}', space=vmem, size = 0x6000, scoped, tag = 'input window, operand 1']
    #allocation4 [shape = 'u8[24576]{0}', space=vmem, size = 0x6000, scoped, tag = 'input window, operand 2']
    #allocation5 [shape = 'u8[32768]{0}', space=vmem, size = 0x8000, scoped, tag = 'output window, operand 0']
    loop: start=0, step=1, limit=18
    $region2: #{conv_block_forward.4} parent=1 // loop_pre_header
      _
    $region3: #{conv_block_forward.4} parent=1 // loop_header
      %s12 = sphi 0, %s16
      %p13 = scmp.ge.s32.totalorder %s12, 18
      %s22 = sphi 0, %s24
      %s25 = sphi 0, %s22
      %s26 = sphi 0, %s25
      %s42 = sphi 0, %s26
      %s50 = sphi 0, %s52
      %s53 = sphi 0, %s50
      %s54 = sphi 0, %s53
      %s70 = sphi 0, %s54
      %s78 = sphi 0, %s80
      %s81 = sphi 0, %s78
      %s82 = sphi 0, %s81
      %s98 = sphi 0, %s82
      %s102 = sphi 0, %s102
      %s104 = sphi 0, %s102
      %s105 = sphi 0, %s104
      %s119 = sphi 0, %s105
      %s125 = sphi 0, %s127
      %s128 = sphi 0, %s125
      %s129 = sphi 0, %s128
      %s145 = sphi 0, %s129
      %s151 = sphi 0, %s153
      %s154 = sphi 0, %s151
      %s155 = sphi 0, %s154
      %s171 = sphi 0, %s155
    $region4: #{conv_block_forward.4} parent=1 // loop_header_branch
      %15 = sbr.rel (%p13) target = $region8
    $region5: #{conv_block_forward.4} parent=1 // loop_body
      %s17 = ssub.s32 %s12, 1
      %s18 = ssub.s32 %s12, 2
      %s19 = sadd.s32 %s12, 1
      %s20 = ssub.s32 %s12, %s19
      %p21 = scmp.eq.s32.totalorder %s20, 0
      %s23 = sadd.s32 %s22, 1
      %s24 = scalar_select %p21, %s22, %s23
      %p27 = pneg %p21
      %p28 = scmp.eq.s32.totalorder %s12, 15
      %p29 = por %p27, %p28
      %p30 = scmp.ne.s32.totalorder %s22, %s25
      %p31 = scmp.eq.s32.totalorder %s12, 0
      %p32 = por %p30, %p31
      %p33 = scmp.ne.s32.totalorder %s22, %s25
      %p34 = scmp.eq.s32.totalorder %s17, 15
      %p35 = por %p33, %p34
      %p36 = scmp.ne.s32.totalorder %s25, %s26
      %p37 = scmp.eq.s32.totalorder %s17, 0
      %p38 = por %p36, %p37
      %p39 = scmp.ne.s32.totalorder %s25, %s26
      %p40 = scmp.eq.s32.totalorder %s18, 15
      %p41 = por %p39, %p40
      %p43 = scmp.ne.s32.totalorder %s26, %s42
      %p44 = scmp.eq.s32.totalorder %s18, 0
      %p45 = por %p43, %p44
      %s46 = sadd.s32 %s12, 1
      %s47 = sadd.s32 %s19, 1
      %s48 = ssub.s32 %s46, %s47
      %p49 = scmp.eq.s32.totalorder %s48, 0
      %s51 = sadd.s32 %s50, 1
      %s52 = scalar_select %p49, %s50, %s51
      %p55 = pneg %p49
      %p56 = scmp.eq.s32.totalorder %s12, 15
      %p57 = por %p55, %p56
      %p58 = scmp.ne.s32.totalorder %s50, %s53
      %p59 = scmp.eq.s32.totalorder %s12, 0
      %p60 = por %p58, %p59
      %p61 = scmp.ne.s32.totalorder %s50, %s53
      %p62 = scmp.eq.s32.totalorder %s17, 15
      %p63 = por %p61, %p62
      %p64 = scmp.ne.s32.totalorder %s53, %s54
      %p65 = scmp.eq.s32.totalorder %s17, 0
      %p66 = por %p64, %p65
      %p67 = scmp.ne.s32.totalorder %s53, %s54
      %p68 = scmp.eq.s32.totalorder %s18, 15
      %p69 = por %p67, %p68
      %p71 = scmp.ne.s32.totalorder %s54, %s70
      %p72 = scmp.eq.s32.totalorder %s18, 0
      %p73 = por %p71, %p72
      %s74 = sadd.s32 %s12, 2
      %s75 = sadd.s32 %s19, 2
      %s76 = ssub.s32 %s74, %s75
      %p77 = scmp.eq.s32.totalorder %s76, 0
      %s79 = sadd.s32 %s78, 1
      %s80 = scalar_select %p77, %s78, %s79
      %p83 = pneg %p77
      %p84 = scmp.eq.s32.totalorder %s12, 15
      %p85 = por %p83, %p84
      %p86 = scmp.ne.s32.totalorder %s78, %s81
      %p87 = scmp.eq.s32.totalorder %s12, 0
      %p88 = por %p86, %p87
      %p89 = scmp.ne.s32.totalorder %s78, %s81
      %p90 = scmp.eq.s32.totalorder %s17, 15
      %p91 = por %p89, %p90
      %p92 = scmp.ne.s32.totalorder %s81, %s82
      %p93 = scmp.eq.s32.totalorder %s17, 0
      %p94 = por %p92, %p93
      %p95 = scmp.ne.s32.totalorder %s81, %s82
      %p96 = scmp.eq.s32.totalorder %s18, 15
      %p97 = por %p95, %p96
      %p99 = scmp.ne.s32.totalorder %s82, %s98
      %p100 = scmp.eq.s32.totalorder %s18, 0
      %p101 = por %p99, %p100
      %s103 = sadd.s32 %s102, 1
      %p106 = scmp.eq.s32.totalorder %s12, 15
      %p107 = scmp.ne.s32.totalorder %s102, %s104
      %p108 = scmp.eq.s32.totalorder %s12, 0
      %p109 = por %p107, %p108
      %p110 = scmp.ne.s32.totalorder %s102, %s104
      %p111 = scmp.eq.s32.totalorder %s17, 15
      %p112 = por %p110, %p111
      %p113 = scmp.ne.s32.totalorder %s104, %s105
      %p114 = scmp.eq.s32.totalorder %s17, 0
      %p115 = por %p113, %p114
      %p116 = scmp.ne.s32.totalorder %s104, %s105
      %p117 = scmp.eq.s32.totalorder %s18, 15
      %p118 = por %p116, %p117
      %p120 = scmp.ne.s32.totalorder %s105, %s119
      %p121 = scmp.eq.s32.totalorder %s18, 0
      %p122 = por %p120, %p121
      %s123 = ssub.s32 %s12, %s19
      %p124 = scmp.eq.s32.totalorder %s123, 0
      %s126 = sadd.s32 %s125, 1
      %s127 = scalar_select %p124, %s125, %s126
      %p130 = pneg %p124
      %p131 = scmp.eq.s32.totalorder %s12, 15
      %p132 = por %p130, %p131
      %p133 = scmp.ne.s32.totalorder %s125, %s128
      %p134 = scmp.eq.s32.totalorder %s12, 0
      %p135 = por %p133, %p134
      %p136 = scmp.ne.s32.totalorder %s125, %s128
      %p137 = scmp.eq.s32.totalorder %s17, 15
      %p138 = por %p136, %p137
      %p139 = scmp.ne.s32.totalorder %s128, %s129
      %p140 = scmp.eq.s32.totalorder %s17, 0
      %p141 = por %p139, %p140
      %p142 = scmp.ne.s32.totalorder %s128, %s129
      %p143 = scmp.eq.s32.totalorder %s18, 15
      %p144 = por %p142, %p143
      %p146 = scmp.ne.s32.totalorder %s129, %s145
      %p147 = scmp.eq.s32.totalorder %s18, 0
      %p148 = por %p146, %p147
      %s149 = ssub.s32 %s12, %s19
      %p150 = scmp.eq.s32.totalorder %s149, 0
      %s152 = sadd.s32 %s151, 1
      %s153 = scalar_select %p150, %s151, %s152
      %p156 = pneg %p150
      %p157 = scmp.eq.s32.totalorder %s12, 15
      %p158 = por %p156, %p157
      %p159 = scmp.ne.s32.totalorder %s151, %s154
      %p160 = scmp.eq.s32.totalorder %s12, 0
      %p161 = por %p159, %p160
      %p162 = scmp.ne.s32.totalorder %s151, %s154
      %p163 = scmp.eq.s32.totalorder %s17, 15
      %p164 = por %p162, %p163
      %p165 = scmp.ne.s32.totalorder %s154, %s155
      %p166 = scmp.eq.s32.totalorder %s17, 0
      %p167 = por %p165, %p166
      %p168 = scmp.ne.s32.totalorder %s154, %s155
      %p169 = scmp.eq.s32.totalorder %s18, 15
      %p170 = por %p168, %p169
      %p172 = scmp.ne.s32.totalorder %s155, %s171
      %p173 = scmp.eq.s32.totalorder %s18, 0
      %p174 = por %p172, %p173
      %p175 = scmp.le.s32.totalorder 1, %s12
      %p176 = scmp.lt.s32.totalorder %s12, 17
      %p177 = pnand %p175, %p176
      %p178 = pneg %p177
      // Predicated region
      $region9: #{conv_block_forward.4} parent=5 // pred_check
        _
      $region10: #{conv_block_forward.4} parent=5 // pred_check_branch
        %180 = sbr.rel (%p177) target = $region12
      $region11: #{conv_block_forward.4} parent=5 // pred_region
        %s181 = ssub.s32 %s12, 1
        // Predicated region
        $region13: #{conv_block_forward.4} parent=11 // pred_check
          %p182 = pneg %p115
        $region14: #{conv_block_forward.4} parent=11 // pred_check_branch
          %184 = sbr.rel (%p182) target = $region16
        $region15: #{conv_block_forward.4} parent=11 // pred_region
          _
        $region16: #{conv_block_forward.4} parent=11 // pred_fallthru
          _
      $region12: #{conv_block_forward.4} parent=5 // pred_fallthru
        _
      %p185 = scmp.lt.s32.totalorder %s12, 16
      // Predicated region
      $region17: #{conv_block_forward.4} parent=5 // pred_check
        %p186 = pneg %p185
      $region18: #{conv_block_forward.4} parent=5 // pred_check_branch
        %188 = sbr.rel (%p186) target = $region20
      $region19: #{conv_block_forward.4} parent=5 // pred_region
        // Predicated region
        $region21: #{conv_block_forward.4} parent=19 // pred_check
          %p189 = pneg %p32
        $region22: #{conv_block_forward.4} parent=19 // pred_check_branch
          %191 = sbr.rel (%p189) target = $region24
        $region23: #{conv_block_forward.4} parent=19 // pred_region
          %s192 = sand.u32 %s22, 1
          %s193 = sand.u32 %s22, 1
          %s194 = smul.addr %s193, 24
          %s195 = scalar_lea.vmem [#allocation2], %s194
          %s196 = smul.addr %s12, 3
          %s197 = smul.addr %s196, 4
          %s198 = scalar_lea.vmem %s0, %s197
          // Predicated region
          $region25: #{conv_block_forward.4} parent=23 // pred_check
            _
          $region26: #{conv_block_forward.4} parent=23 // pred_check_branch
            %200 = sbr.rel (0) target = $region28
          $region27: #{conv_block_forward.4} parent=23 // pred_region
            // Predicated region
            $region29: #{conv_block_forward.4} parent=27 // pred_check
              _
            $region30: #{conv_block_forward.4} parent=27 // pred_check_branch
              %202 = sbr.rel target = $region32
            $region31: #{conv_block_forward.4} parent=27 // pred_region
              // Predicated region
              $region44: #{conv_block_forward.4} parent=31 // pred_check
                _
              $region45: #{conv_block_forward.4} parent=31 // pred_check_branch
                %228 = sbr.rel (0) target = $region47
              $region46: #{conv_block_forward.4} parent=31 // pred_region
                loop: start=0, step=1, limit=1
                $region48: #{conv_block_forward.4} parent=46 // loop_pre_header
                  _
                $region49: #{conv_block_forward.4} parent=46 // loop_header
                  %s230 = sphi 0, %s234
                  %p231 = scmp.ge.s32.totalorder %s230, 1
                  %s235 = sphi %s198, %s198
                  %s236 = sphi %s195, %s195
                $region50: #{conv_block_forward.4} parent=46 // loop_header_branch
                  %233 = sbr.rel (%p231) target = $region54
                $region51: #{conv_block_forward.4} parent=46 // loop_body
                  _
                $region52: #{conv_block_forward.4} parent=46 // loop_footer
                  %s234 = sadd.s32 1, %s230
                $region53: #{conv_block_forward.4} parent=46 // loop_footer_branch
                  %229 = sbr.rel target = $region49
                $region54: #{conv_block_forward.4} parent=46 // loop_exit
                  _
                %s238 = ssub.s32 16, 1
                loop: start=0, step=1, limit=1
                $region55: #{conv_block_forward.4} parent=46 // loop_pre_header
                  _
                $region56: #{conv_block_forward.4} parent=46 // loop_header
                  %s240 = sphi 0, %s244
                  %p241 = scmp.ge.s32.totalorder %s240, 1
                  %s245 = sphi %s198, %s198
                  %s246 = sphi %s195, %s195
                $region57: #{conv_block_forward.4} parent=46 // loop_header_branch
                  %243 = sbr.rel (%p241) target = $region61
                $region58: #{conv_block_forward.4} parent=46 // loop_body
                  %v247 = vld [vmem:[%s245] sm:%s238]
                  %248 = vst [vmem:[%s246] sm:%s238] %v247
                  %v249 = vld [vmem:[%s245 + $0x4] sm:%s238]
                  %250 = vst [vmem:[%s246 + $0x4] sm:%s238] %v249
                  %v251 = vld [vmem:[%s245 + $0x8] sm:%s238]
                  %252 = vst [vmem:[%s246 + $0x8] sm:%s238] %v251
                  %v253 = vld [vmem:[%s245 + $0xd8] sm:%s238]
                  %254 = vst [vmem:[%s246 + $0xc] sm:%s238] %v253
                  %v255 = vld [vmem:[%s245 + $0xdc] sm:%s238]
                  %256 = vst [vmem:[%s246 + $0x10] sm:%s238] %v255
                  %v257 = vld [vmem:[%s245 + $0xe0] sm:%s238]
                  %258 = vst [vmem:[%s246 + $0x14] sm:%s238] %v257
                $region59: #{conv_block_forward.4} parent=46 // loop_footer
                  %s244 = sadd.s32 1, %s240
                $region60: #{conv_block_forward.4} parent=46 // loop_footer_branch
                  %239 = sbr.rel target = $region56
                $region61: #{conv_block_forward.4} parent=46 // loop_exit
                  _
              $region47: #{conv_block_forward.4} parent=31 // pred_fallthru
                _
            $region32: #{conv_block_forward.4} parent=27 // pred_fallthru
              _
            // Predicated region
            $region33: #{conv_block_forward.4} parent=27 // pred_check
              _
            $region34: #{conv_block_forward.4} parent=27 // pred_check_branch
              %204 = sbr.rel (0) target = $region36
            $region35: #{conv_block_forward.4} parent=27 // pred_region
              %s206 = ssub.s32 16, 1
              loop: start=0, step=1, limit=1
              $region37: #{conv_block_forward.4} parent=35 // loop_pre_header
                _
              $region38: #{conv_block_forward.4} parent=35 // loop_header
                %s208 = sphi 0, %s212
                %p209 = scmp.ge.s32.totalorder %s208, 1
                %s213 = sphi %s198, %s198
                %s214 = sphi %s195, %s195
              $region39: #{conv_block_forward.4} parent=35 // loop_header_branch
                %211 = sbr.rel (%p209) target = $region43
              $region40: #{conv_block_forward.4} parent=35 // loop_body
                %v215 = vld [vmem:[%s213] sm:%s206]
                %216 = vst [vmem:[%s214] sm:%s206] %v215
                %v217 = vld [vmem:[%s213 + $0x4] sm:%s206]
                %218 = vst [vmem:[%s214 + $0x4] sm:%s206] %v217
                %v219 = vld [vmem:[%s213 + $0x8] sm:%s206]
                %220 = vst [vmem:[%s214 + $0x8] sm:%s206] %v219
                %v221 = vld [vmem:[%s213 + $0xd8] sm:%s206]
                %222 = vst [vmem:[%s214 + $0xc] sm:%s206] %v221
                %v223 = vld [vmem:[%s213 + $0xdc] sm:%s206]
                %224 = vst [vmem:[%s214 + $0x10] sm:%s206] %v223
                %v225 = vld [vmem:[%s213 + $0xe0] sm:%s206]
                %226 = vst [vmem:[%s214 + $0x14] sm:%s206] %v225
              $region41: #{conv_block_forward.4} parent=35 // loop_footer
                %s212 = sadd.s32 1, %s208
              $region42: #{conv_block_forward.4} parent=35 // loop_footer_branch
                %207 = sbr.rel target = $region38
              $region43: #{conv_block_forward.4} parent=35 // loop_exit
                _
            $region36: #{conv_block_forward.4} parent=27 // pred_fallthru
              _
          $region28: #{conv_block_forward.4} parent=23 // pred_fallthru
            _
          %259 = vnop
        $region24: #{conv_block_forward.4} parent=19 // pred_fallthru
          _
        // Predicated region
        $region62: #{conv_block_forward.4} parent=19 // pred_check
          %p260 = pneg %p60
        $region63: #{conv_block_forward.4} parent=19 // pred_check_branch
          %262 = sbr.rel (%p260) target = $region65
        $region64: #{conv_block_forward.4} parent=19 // pred_region
          %s263 = sand.u32 %s50, 1
          %s264 = sand.u32 %s50, 1
          %s265 = smul.addr %s264, 24
          %s266 = scalar_lea.vmem [#allocation3], %s265
          %s267 = sadd.s32 %s12, 1
          %s268 = smul.addr %s267, 3
          %s269 = smul.addr %s268, 4
          %s270 = scalar_lea.vmem %s1, %s269
          // Predicated region
          $region66: #{conv_block_forward.4} parent=64 // pred_check
            _
          $region67: #{conv_block_forward.4} parent=64 // pred_check_branch
            %272 = sbr.rel (0) target = $region69
          $region68: #{conv_block_forward.4} parent=64 // pred_region
            // Predicated region
            $region70: #{conv_block_forward.4} parent=68 // pred_check
              _
            $region71: #{conv_block_forward.4} parent=68 // pred_check_branch
              %274 = sbr.rel target = $region73
            $region72: #{conv_block_forward.4} parent=68 // pred_region
              // Predicated region
              $region85: #{conv_block_forward.4} parent=72 // pred_check
                _
              $region86: #{conv_block_forward.4} parent=72 // pred_check_branch
                %300 = sbr.rel (0) target = $region88
              $region87: #{conv_block_forward.4} parent=72 // pred_region
                loop: start=0, step=1, limit=1
                $region89: #{conv_block_forward.4} parent=87 // loop_pre_header
                  _
                $region90: #{conv_block_forward.4} parent=87 // loop_header
                  %s302 = sphi 0, %s306
                  %p303 = scmp.ge.s32.totalorder %s302, 1
                  %s307 = sphi %s270, %s270
                  %s308 = sphi %s266, %s266
                $region91: #{conv_block_forward.4} parent=87 // loop_header_branch
                  %305 = sbr.rel (%p303) target = $region95
                $region92: #{conv_block_forward.4} parent=87 // loop_body
                  _
                $region93: #{conv_block_forward.4} parent=87 // loop_footer
                  %s306 = sadd.s32 1, %s302
                $region94: #{conv_block_forward.4} parent=87 // loop_footer_branch
                  %301 = sbr.rel target = $region90
                $region95: #{conv_block_forward.4} parent=87 // loop_exit
                  _
                %s310 = ssub.s32 16, 1
                loop: start=0, step=1, limit=1
                $region96: #{conv_block_forward.4} parent=87 // loop_pre_header
                  _
                $region97: #{conv_block_forward.4} parent=87 // loop_header
                  %s312 = sphi 0, %s316
                  %p313 = scmp.ge.s32.totalorder %s312, 1
                  %s317 = sphi %s270, %s270
                  %s318 = sphi %s266, %s266
                $region98: #{conv_block_forward.4} parent=87 // loop_header_branch
                  %315 = sbr.rel (%p313) target = $region102
                $region99: #{conv_block_forward.4} parent=87 // loop_body
                  %v319 = vld [vmem:[%s317] sm:%s310]
                  %320 = vst [vmem:[%s318] sm:%s310] %v319
                  %v321 = vld [vmem:[%s317 + $0x4] sm:%s310]
                  %322 = vst [vmem:[%s318 + $0x4] sm:%s310] %v321
                  %v323 = vld [vmem:[%s317 + $0x8] sm:%s310]
                  %324 = vst [vmem:[%s318 + $0x8] sm:%s310] %v323
                  %v325 = vld [vmem:[%s317 + $0xd8] sm:%s310]
                  %326 = vst [vmem:[%s318 + $0xc] sm:%s310] %v325
                  %v327 = vld [vmem:[%s317 + $0xdc] sm:%s310]
                  %328 = vst [vmem:[%s318 + $0x10] sm:%s310] %v327
                  %v329 = vld [vmem:[%s317 + $0xe0] sm:%s310]
                  %330 = vst [vmem:[%s318 + $0x14] sm:%s310] %v329
                $region100: #{conv_block_forward.4} parent=87 // loop_footer
                  %s316 = sadd.s32 1, %s312
                $region101: #{conv_block_forward.4} parent=87 // loop_footer_branch
                  %311 = sbr.rel target = $region97
                $region102: #{conv_block_forward.4} parent=87 // loop_exit
                  _
              $region88: #{conv_block_forward.4} parent=72 // pred_fallthru
                _
            $region73: #{conv_block_forward.4} parent=68 // pred_fallthru
              _
            // Predicated region
            $region74: #{conv_block_forward.4} parent=68 // pred_check
              _
            $region75: #{conv_block_forward.4} parent=68 // pred_check_branch
              %276 = sbr.rel (0) target = $region77
            $region76: #{conv_block_forward.4} parent=68 // pred_region
              %s278 = ssub.s32 16, 1
              loop: start=0, step=1, limit=1
              $region78: #{conv_block_forward.4} parent=76 // loop_pre_header
                _
              $region79: #{conv_block_forward.4} parent=76 // loop_header
                %s280 = sphi 0, %s284
                %p281 = scmp.ge.s32.totalorder %s280, 1
                %s285 = sphi %s270, %s270
                %s286 = sphi %s266, %s266
              $region80: #{conv_block_forward.4} parent=76 // loop_header_branch
                %283 = sbr.rel (%p281) target = $region84
              $region81: #{conv_block_forward.4} parent=76 // loop_body
                %v287 = vld [vmem:[%s285] sm:%s278]
                %288 = vst [vmem:[%s286] sm:%s278] %v287
                %v289 = vld [vmem:[%s285 + $0x4] sm:%s278]
                %290 = vst [vmem:[%s286 + $0x4] sm:%s278] %v289
                %v291 = vld [vmem:[%s285 + $0x8] sm:%s278]
                %292 = vst [vmem:[%s286 + $0x8] sm:%s278] %v291
                %v293 = vld [vmem:[%s285 + $0xd8] sm:%s278]
                %294 = vst [vmem:[%s286 + $0xc] sm:%s278] %v293
                %v295 = vld [vmem:[%s285 + $0xdc] sm:%s278]
                %296 = vst [vmem:[%s286 + $0x10] sm:%s278] %v295
                %v297 = vld [vmem:[%s285 + $0xe0] sm:%s278]
                %298 = vst [vmem:[%s286 + $0x14] sm:%s278] %v297
              $region82: #{conv_block_forward.4} parent=76 // loop_footer
                %s284 = sadd.s32 1, %s280
              $region83: #{conv_block_forward.4} parent=76 // loop_footer_branch
                %279 = sbr.rel target = $region79
              $region84: #{conv_block_forward.4} parent=76 // loop_exit
                _
            $region77: #{conv_block_forward.4} parent=68 // pred_fallthru
              _
          $region69: #{conv_block_forward.4} parent=64 // pred_fallthru
            _
          %331 = vnop
        $region65: #{conv_block_forward.4} parent=19 // pred_fallthru
          _
        // Predicated region
        $region103: #{conv_block_forward.4} parent=19 // pred_check
          %p332 = pneg %p88
        $region104: #{conv_block_forward.4} parent=19 // pred_check_branch
          %334 = sbr.rel (%p332) target = $region106
        $region105: #{conv_block_forward.4} parent=19 // pred_region
          %s335 = sand.u32 %s78, 1
          %s336 = sand.u32 %s78, 1
          %s337 = smul.addr %s336, 24
          %s338 = scalar_lea.vmem [#allocation4], %s337
          %s339 = sadd.s32 %s12, 2
          %s340 = smul.addr %s339, 3
          %s341 = smul.addr %s340, 4
          %s342 = scalar_lea.vmem %s2, %s341
          // Predicated region
          $region107: #{conv_block_forward.4} parent=105 // pred_check
            _
          $region108: #{conv_block_forward.4} parent=105 // pred_check_branch
            %344 = sbr.rel (0) target = $region110
          $region109: #{conv_block_forward.4} parent=105 // pred_region
            // Predicated region
            $region111: #{conv_block_forward.4} parent=109 // pred_check
              _
            $region112: #{conv_block_forward.4} parent=109 // pred_check_branch
              %346 = sbr.rel target = $region114
            $region113: #{conv_block_forward.4} parent=109 // pred_region
              // Predicated region
              $region126: #{conv_block_forward.4} parent=113 // pred_check
                _
              $region127: #{conv_block_forward.4} parent=113 // pred_check_branch
                %372 = sbr.rel (0) target = $region129
              $region128: #{conv_block_forward.4} parent=113 // pred_region
                loop: start=0, step=1, limit=1
                $region130: #{conv_block_forward.4} parent=128 // loop_pre_header
                  _
                $region131: #{conv_block_forward.4} parent=128 // loop_header
                  %s374 = sphi 0, %s378
                  %p375 = scmp.ge.s32.totalorder %s374, 1
                  %s379 = sphi %s342, %s342
                  %s380 = sphi %s338, %s338
                $region132: #{conv_block_forward.4} parent=128 // loop_header_branch
                  %377 = sbr.rel (%p375) target = $region136
                $region133: #{conv_block_forward.4} parent=128 // loop_body
                  _
                $region134: #{conv_block_forward.4} parent=128 // loop_footer
                  %s378 = sadd.s32 1, %s374
                $region135: #{conv_block_forward.4} parent=128 // loop_footer_branch
                  %373 = sbr.rel target = $region131
                $region136: #{conv_block_forward.4} parent=128 // loop_exit
                  _
                %s382 = ssub.s32 16, 1
                loop: start=0, step=1, limit=1
                $region137: #{conv_block_forward.4} parent=128 // loop_pre_header
                  _
                $region138: #{conv_block_forward.4} parent=128 // loop_header
                  %s384 = sphi 0, %s388
                  %p385 = scmp.ge.s32.totalorder %s384, 1
                  %s389 = sphi %s342, %s342
                  %s390 = sphi %s338, %s338
                $region139: #{conv_block_forward.4} parent=128 // loop_header_branch
                  %387 = sbr.rel (%p385) target = $region143
                $region140: #{conv_block_forward.4} parent=128 // loop_body
                  %v391 = vld [vmem:[%s389] sm:%s382]
                  %392 = vst [vmem:[%s390] sm:%s382] %v391
                  %v393 = vld [vmem:[%s389 + $0x4] sm:%s382]
                  %394 = vst [vmem:[%s390 + $0x4] sm:%s382] %v393
                  %v395 = vld [vmem:[%s389 + $0x8] sm:%s382]
                  %396 = vst [vmem:[%s390 + $0x8] sm:%s382] %v395
                  %v397 = vld [vmem:[%s389 + $0xd8] sm:%s382]
                  %398 = vst [vmem:[%s390 + $0xc] sm:%s382] %v397
                  %v399 = vld [vmem:[%s389 + $0xdc] sm:%s382]
                  %400 = vst [vmem:[%s390 + $0x10] sm:%s382] %v399
                  %v401 = vld [vmem:[%s389 + $0xe0] sm:%s382]
                  %402 = vst [vmem:[%s390 + $0x14] sm:%s382] %v401
                $region141: #{conv_block_forward.4} parent=128 // loop_footer
                  %s388 = sadd.s32 1, %s384
                $region142: #{conv_block_forward.4} parent=128 // loop_footer_branch
                  %383 = sbr.rel target = $region138
                $region143: #{conv_block_forward.4} parent=128 // loop_exit
                  _
              $region129: #{conv_block_forward.4} parent=113 // pred_fallthru
                _
            $region114: #{conv_block_forward.4} parent=109 // pred_fallthru
              _
            // Predicated region
            $region115: #{conv_block_forward.4} parent=109 // pred_check
              _
            $region116: #{conv_block_forward.4} parent=109 // pred_check_branch
              %348 = sbr.rel (0) target = $region118
            $region117: #{conv_block_forward.4} parent=109 // pred_region
              %s350 = ssub.s32 16, 1
              loop: start=0, step=1, limit=1
              $region119: #{conv_block_forward.4} parent=117 // loop_pre_header
                _
              $region120: #{conv_block_forward.4} parent=117 // loop_header
                %s352 = sphi 0, %s356
                %p353 = scmp.ge.s32.totalorder %s352, 1
                %s357 = sphi %s342, %s342
                %s358 = sphi %s338, %s338
              $region121: #{conv_block_forward.4} parent=117 // loop_header_branch
                %355 = sbr.rel (%p353) target = $region125
              $region122: #{conv_block_forward.4} parent=117 // loop_body
                %v359 = vld [vmem:[%s357] sm:%s350]
                %360 = vst [vmem:[%s358] sm:%s350] %v359
                %v361 = vld [vmem:[%s357 + $0x4] sm:%s350]
                %362 = vst [vmem:[%s358 + $0x4] sm:%s350] %v361
                %v363 = vld [vmem:[%s357 + $0x8] sm:%s350]
                %364 = vst [vmem:[%s358 + $0x8] sm:%s350] %v363
                %v365 = vld [vmem:[%s357 + $0xd8] sm:%s350]
                %366 = vst [vmem:[%s358 + $0xc] sm:%s350] %v365
                %v367 = vld [vmem:[%s357 + $0xdc] sm:%s350]
                %368 = vst [vmem:[%s358 + $0x10] sm:%s350] %v367
                %v369 = vld [vmem:[%s357 + $0xe0] sm:%s350]
                %370 = vst [vmem:[%s358 + $0x14] sm:%s350] %v369
              $region123: #{conv_block_forward.4} parent=117 // loop_footer
                %s356 = sadd.s32 1, %s352
              $region124: #{conv_block_forward.4} parent=117 // loop_footer_branch
                %351 = sbr.rel target = $region120
              $region125: #{conv_block_forward.4} parent=117 // loop_exit
                _
            $region118: #{conv_block_forward.4} parent=109 // pred_fallthru
              _
          $region110: #{conv_block_forward.4} parent=105 // pred_fallthru
            _
          %403 = vnop
        $region106: #{conv_block_forward.4} parent=19 // pred_fallthru
          _
      $region20: #{conv_block_forward.4} parent=5 // pred_fallthru
        _
      %p404 = scmp.le.s32.totalorder 1, %s12
      %p405 = scmp.lt.s32.totalorder %s12, 17
      %p406 = pnand %p404, %p405
      %p407 = pneg %p406
      // Predicated region
      $region144: #{conv_block_forward.4} parent=5 // pred_check
        _
      $region145: #{conv_block_forward.4} parent=5 // pred_check_branch
        %409 = sbr.rel (%p406) target = $region147
      $region146: #{conv_block_forward.4} parent=5 // pred_region
        %s410 = ssub.s32 %s12, 1
        %s411 = sand.u32 %s25, 1
        %s412 = sand.u32 %s25, 1
        %s413 = smul.addr %s412, 24
        %s414 = scalar_lea.vmem [#allocation2], %s413
        // Predicated region
        $region148: #{conv_block_forward.4} parent=146 // pred_check
          %p415 = pneg %p38
        $region149: #{conv_block_forward.4} parent=146 // pred_check_branch
          %417 = sbr.rel (%p415) target = $region151
        $region150: #{conv_block_forward.4} parent=146 // pred_region
          _
        $region151: #{conv_block_forward.4} parent=146 // pred_fallthru
          _
        %s418 = sand.u32 %s53, 1
        %s419 = sand.u32 %s53, 1
        %s420 = smul.addr %s419, 24
        %s421 = scalar_lea.vmem [#allocation3], %s420
        // Predicated region
        $region152: #{conv_block_forward.4} parent=146 // pred_check
          %p422 = pneg %p66
        $region153: #{conv_block_forward.4} parent=146 // pred_check_branch
          %424 = sbr.rel (%p422) target = $region155
        $region154: #{conv_block_forward.4} parent=146 // pred_region
          _
        $region155: #{conv_block_forward.4} parent=146 // pred_fallthru
          _
        %s425 = sand.u32 %s81, 1
        %s426 = sand.u32 %s81, 1
        %s427 = smul.addr %s426, 24
        %s428 = scalar_lea.vmem [#allocation4], %s427
        // Predicated region
        $region156: #{conv_block_forward.4} parent=146 // pred_check
          %p429 = pneg %p94
        $region157: #{conv_block_forward.4} parent=146 // pred_check_branch
          %431 = sbr.rel (%p429) target = $region159
        $region158: #{conv_block_forward.4} parent=146 // pred_region
          _
        $region159: #{conv_block_forward.4} parent=146 // pred_fallthru
          _
        %s432 = sand.u32 %s25, 1
        %s433 = sand.u32 %s25, 1
        %s434 = smul.addr %s433, 24
        %s435 = scalar_lea.vmem [#allocation2], %s434
        %p436 = pneg %p38
        %p437 = pneg %p35
        %s438 = sand.u32 %s53, 1
        %s439 = sand.u32 %s53, 1
        %s440 = smul.addr %s439, 24
        %s441 = scalar_lea.vmem [#allocation3], %s440
        %p442 = pneg %p66
        %p443 = pneg %p63
        %s444 = sand.u32 %s81, 1
        %s445 = sand.u32 %s81, 1
        %s446 = smul.addr %s445, 24
        %s447 = scalar_lea.vmem [#allocation4], %s446
        %p448 = pneg %p94
        %p449 = pneg %p91
        %p450 = pneg %p115
        %p451 = pneg %p112
        %p452 = pneg %p141
        %p453 = pneg %p138
        %s454 = sand.u32 %s128, 1
        %s455 = sand.u32 %s128, 1
        %s456 = smul.addr %s455, 32
        %s457 = scalar_lea.vmem [#allocation5], %s456
        %p458 = pneg %p167
        %p459 = pneg %p164
        %p460 = scmp.lt.s32.totalorder %s17, 15
        %s461 = scalar_select %p460, %s17, 15
        %s462 = smul.addr %s461, 2
        %s463 = scalar_lea.vmem %s5, %s462
        %s464 = sadd.s32 %s17, 1
        %s465 = sadd.s32 %s17, 2
        %p466 = scmp.lt.s32.totalorder %s17, 15
        %s467 = scalar_select %p466, %s17, 15
        %s468 = smul.addr %s467, 2
        %s469 = scalar_lea.vmem %s5, %s468
        %v471 = vld [vmem:[%s414] sm:$0xf]
        %v472 = vld [vmem:[%s414 + $0x4] sm:$0xf]
        %v473 = vld [vmem:[%s414 + $0x8] sm:$0x1]
        %v474 = vld [vmem:[%s414 + $0xc] sm:$0xf]
        %v475 = vld [vmem:[%s414 + $0x10] sm:$0xf]
        %v476 = vld [vmem:[%s414 + $0x14] sm:$0x1]
        %v477 = vld [vmem:[%s421] sm:$0xf]
        %v478 = vld [vmem:[%s421 + $0x4] sm:$0xf]
        %v479 = vld [vmem:[%s421 + $0x8] sm:$0x1]
        %v480 = vld [vmem:[%s421 + $0xc] sm:$0xf]
        %v481 = vld [vmem:[%s421 + $0x10] sm:$0xf]
        %v482 = vld [vmem:[%s421 + $0x14] sm:$0x1]
        %v483 = vld [vmem:[%s428] sm:$0xf]
        %v484 = vld [vmem:[%s428 + $0x4] sm:$0xf]
        %v485 = vld [vmem:[%s428 + $0x8] sm:$0x1]
        %v486 = vld [vmem:[%s428 + $0xc] sm:$0xf]
        %v487 = vld [vmem:[%s428 + $0x10] sm:$0xf]
        %v488 = vld [vmem:[%s428 + $0x14] sm:$0x1]
        %v489 = vld [vmem:[%s3] sm:$0xf]
        %v490 = vld [vmem:[%s3 + $0x4] sm:$0xf]
        %v491 = vld [vmem:[%s3 + $0x8] sm:$0xf]
        %v492 = vld [vmem:[%s3 + $0xc] sm:$0xf]
        %v493 = vld [vmem:[%s3 + $0x10] sm:$0xf]
        %v494 = vld [vmem:[%s3 + $0x14] sm:$0xf]
        %v495 = vld [vmem:[%s3 + $0x18] sm:$0xf]
        %v496 = vld [vmem:[%s3 + $0x1c] sm:$0xf]
        %v497 = vld [vmem:[%s3 + $0x20] sm:$0xf]
        %v498 = vld [vmem:[%s3 + $0x24] sm:$0xf]
        %v499 = vld [vmem:[%s3 + $0x28] sm:$0xf]
        %v500 = vld [vmem:[%s3 + $0x2c] sm:$0xf]
        %v501 = vld [vmem:[%s3 + $0x30] sm:$0xf]
        %v502 = vld [vmem:[%s3 + $0x34] sm:$0xf]
        %v503 = vld [vmem:[%s3 + $0x38] sm:$0xf]
        %v504 = vld [vmem:[%s3 + $0x3c] sm:$0xf]
        %vm505 = vsmask.f32 3328
        %vm506 = vsmask.f32 7440
        %vm507 = vmor %vm505, %vm506
        %v509 = vshrl.u32 %v471, 16
        %v511 = vrot.slane %v509, 4
        %v512 = vshll.u32 %v471, 16
        %v514 = vrot.slane %v512, 5
        %v515 = vor.u32 %v511, %v514
        %v516 = vrot.slane %v515, 4
        %v518 = vshll.u32 %v472, 16
        %v520 = vrot.slane %v518, 5
        %v521 = vsel %vm507, %v516, %v520
        %v522 = vshrl.u32 %v472, 16
        %v524 = vrot.slane %v522, 4
        %v525 = vor.u32 %v524, %v520
        %v526 = vrot.slane %v525, 4
        %v528 = vshll.u32 %v473, 16
        %v530 = vrot.slane %v528, 5
        %v531 = vsel %vm507, %v526, %v530
        %v533 = vshrl.u32 %v474, 16
        %v535 = vrot.slane %v533, 4
        %v536 = vshll.u32 %v474, 16
        %v538 = vrot.slane %v536, 5
        %v539 = vor.u32 %v535, %v538
        %v540 = vrot.slane %v539, 4
        %v542 = vshll.u32 %v475, 16
        %v544 = vrot.slane %v542, 5
        %v545 = vsel %vm507, %v540, %v544
        %v546 = vshrl.u32 %v475, 16
        %v548 = vrot.slane %v546, 4
        %v549 = vor.u32 %v548, %v544
        %v550 = vrot.slane %v549, 4
        %v552 = vshll.u32 %v476, 16
        %v554 = vrot.slane %v552, 5
        %v555 = vsel %vm507, %v550, %v554
        %s556 = scalar_lea.vmem %s3, 64
        %v557 = vld [vmem:[%s556] sm:$0xf]
        %v558 = vld [vmem:[%s556 + $0x4] sm:$0xf]
        %v559 = vld [vmem:[%s556 + $0x8] sm:$0xf]
        %v560 = vld [vmem:[%s556 + $0xc] sm:$0xf]
        %v561 = vld [vmem:[%s556 + $0x10] sm:$0xf]
        %v562 = vld [vmem:[%s556 + $0x14] sm:$0xf]
        %v563 = vld [vmem:[%s556 + $0x18] sm:$0xf]
        %v564 = vld [vmem:[%s556 + $0x1c] sm:$0xf]
        %v565 = vld [vmem:[%s556 + $0x20] sm:$0xf]
        %v566 = vld [vmem:[%s556 + $0x24] sm:$0xf]
        %v567 = vld [vmem:[%s556 + $0x28] sm:$0xf]
        %v568 = vld [vmem:[%s556 + $0x2c] sm:$0xf]
        %v569 = vld [vmem:[%s556 + $0x30] sm:$0xf]
        %v570 = vld [vmem:[%s556 + $0x34] sm:$0xf]
        %v571 = vld [vmem:[%s556 + $0x38] sm:$0xf]
        %v572 = vld [vmem:[%s556 + $0x3c] sm:$0xf]
        %v573 = vunpack.c.l.b16 %v521
        %v574 = vunpack.c.l.b16 %v531
        %v575 = vunpack.c.l.b16 %v545
        %v576 = vunpack.c.l.b16 %v555
        %v577 = vpack.c.b16 %v574, %v573
        %v578 = vpack.c.b16 %v576, %v575
        %v597 = vunpack.c.l.b16 %v557
        %v598 = vunpack.c.l.b16 %v558
        %v599 = vunpack.c.l.b16 %v559
        %v600 = vunpack.c.l.b16 %v560
        %v601 = vunpack.c.l.b16 %v561
        %v602 = vunpack.c.l.b16 %v562
        %v603 = vunpack.c.l.b16 %v563
        %v604 = vunpack.c.l.b16 %v564
        %v605 = vunpack.c.l.b16 %v565
        %v606 = vunpack.c.l.b16 %v566
        %v607 = vunpack.c.l.b16 %v567
        %v608 = vunpack.c.l.b16 %v568
        %v609 = vunpack.c.l.b16 %v569
        %v610 = vunpack.c.l.b16 %v570
        %v611 = vunpack.c.l.b16 %v571
        %v612 = vunpack.c.l.b16 %v572
        %v613 = vpack.c.b16 %v598, %v597
        %v614 = vpack.c.b16 %v600, %v599
        %v615 = vpack.c.b16 %v602, %v601
        %v616 = vpack.c.b16 %v604, %v603
        %v617 = vpack.c.b16 %v606, %v605
        %v618 = vpack.c.b16 %v608, %v607
        %v619 = vpack.c.b16 %v610, %v609
        %v620 = vpack.c.b16 %v612, %v611
        %629 = vmatprep.subr.bf16.mxu0 0
        %630 = vmatpush1.bf16.msra.mxu0 %v620
        %631 = vmatprep.subr.bf16.mxu0 0
        %632 = vmatpush1.bf16.msra.mxu0 %v619
        %633 = vmatprep.subr.bf16.mxu0 0
        %634 = vmatpush1.bf16.msra.mxu0 %v618
        %635 = vmatprep.subr.bf16.mxu0 0
        %636 = vmatpush1.bf16.msra.mxu0 %v617
        %637 = vmatprep.subr.bf16.mxu0 0
        %638 = vmatpush1.bf16.msra.mxu0 %v616
        %639 = vmatprep.subr.bf16.mxu0 0
        %640 = vmatpush1.bf16.msra.mxu0 %v615
        %641 = vmatprep.subr.bf16.mxu0 0
        %642 = vmatpush1.bf16.msra.mxu0 %v614
        %643 = vmatprep.subr.bf16.mxu0 0
        %644 = vmatpush1.bf16.msra.mxu0 %v613
        %645 = vmatprep.subr.bf16.mxu0 0
        %646 = vmatpush2.bf16.msra.mxu0 0
        %647 = vmatprep.subr.bf16.mxu0 0
        %648 = vmatpush2.bf16.msra.mxu0 0
        %649 = vmatprep.subr.bf16.mxu0 0
        %650 = vmatpush2.bf16.msra.mxu0 0
        %651 = vmatprep.subr.bf16.mxu0 0
        %652 = vmatpush2.bf16.msra.mxu0 0
        %653 = vmatprep.subr.bf16.mxu0 0
        %654 = vmatpush2.bf16.msra.mxu0 0
        %655 = vmatprep.subr.bf16.mxu0 0
        %656 = vmatpush2.bf16.msra.mxu0 0
        %657 = vmatprep.subr.bf16.mxu0 0
        %658 = vmatpush2.bf16.msra.mxu0 0
        %659 = vmatprep.subr.bf16.mxu0 0
        %660 = vmatpush2.bf16.msra.mxu0 0
        %661 = vmatprep.mubr.bf16.mxu0 0
        %662 = vmatmul.mubr.bf16.gmra.mxu0 %v577
        %v663 = vpop.f32.mrf.mxu0
        %v664 = vadd.f32 0.0, %v663
        %v665 = vpop.f32.mrf.mxu0
        %v666 = vpop.f32.mrf.mxu0
        %v667 = vadd.f32 0.0, %v666
        %v668 = vpop.f32.mrf.mxu0
        %669 = vmatprep.mubr.bf16.mxu0 0
        %670 = vmatmul.mubr.bf16.gmra.mxu0 %v578
        %v671 = vpop.f32.mrf.mxu0
        %v672 = vadd.f32 0.0, %v671
        %v673 = vpop.f32.mrf.mxu0
        %v674 = vpop.f32.mrf.mxu0
        %v675 = vadd.f32 0.0, %v674
        %v676 = vpop.f32.mrf.mxu0
        %677 = vdwg.mxu0
        %v682 = vunpack.c.l.b16 %v471
        %v683 = vunpack.c.l.b16 %v472
        %v684 = vunpack.c.l.b16 %v474
        %v685 = vunpack.c.l.b16 %v475
        %v686 = vpack.c.b16 %v683, %v682
        %v687 = vpack.c.b16 %v685, %v684
        %v706 = vunpack.c.l.b16 %v489
        %v707 = vunpack.c.l.b16 %v490
        %v708 = vunpack.c.l.b16 %v491
        %v709 = vunpack.c.l.b16 %v492
        %v710 = vunpack.c.l.b16 %v493
        %v711 = vunpack.c.l.b16 %v494
        %v712 = vunpack.c.l.b16 %v495
        %v713 = vunpack.c.l.b16 %v496
        %v714 = vunpack.c.l.b16 %v497
        %v715 = vunpack.c.l.b16 %v498
        %v716 = vunpack.c.l.b16 %v499
        %v717 = vunpack.c.l.b16 %v500
        %v718 = vunpack.c.l.b16 %v501
        %v719 = vunpack.c.l.b16 %v502
        %v720 = vunpack.c.l.b16 %v503
        %v721 = vunpack.c.l.b16 %v504
        %v722 = vpack.c.b16 %v707, %v706
        %v723 = vpack.c.b16 %v709, %v708
        %v724 = vpack.c.b16 %v711, %v710
        %v725 = vpack.c.b16 %v713, %v712
        %v726 = vpack.c.b16 %v715, %v714
        %v727 = vpack.c.b16 %v717, %v716
        %v728 = vpack.c.b16 %v719, %v718
        %v729 = vpack.c.b16 %v721, %v720
        %738 = vmatprep.subr.bf16.mxu0 0
        %739 = vmatpush1.bf16.msra.mxu0 %v729
        %740 = vmatprep.subr.bf16.mxu0 0
        %741 = vmatpush1.bf16.msra.mxu0 %v728
        %742 = vmatprep.subr.bf16.mxu0 0
        %743 = vmatpush1.bf16.msra.mxu0 %v727
        %744 = vmatprep.subr.bf16.mxu0 0
        %745 = vmatpush1.bf16.msra.mxu0 %v726
        %746 = vmatprep.subr.bf16.mxu0 0
        %747 = vmatpush1.bf16.msra.mxu0 %v725
        %748 = vmatprep.subr.bf16.mxu0 0
        %749 = vmatpush1.bf16.msra.mxu0 %v724
        %750 = vmatprep.subr.bf16.mxu0 0
        %751 = vmatpush1.bf16.msra.mxu0 %v723
        %752 = vmatprep.subr.bf16.mxu0 0
        %753 = vmatpush1.bf16.msra.mxu0 %v722
        %754 = vmatprep.subr.bf16.mxu0 0
        %755 = vmatpush2.bf16.msra.mxu0 0
        %756 = vmatprep.subr.bf16.mxu0 0
        %757 = vmatpush2.bf16.msra.mxu0 0
        %758 = vmatprep.subr.bf16.mxu0 0
        %759 = vmatpush2.bf16.msra.mxu0 0
        %760 = vmatprep.subr.bf16.mxu0 0
        %761 = vmatpush2.bf16.msra.mxu0 0
        %762 = vmatprep.subr.bf16.mxu0 0
        %763 = vmatpush2.bf16.msra.mxu0 0
        %764 = vmatprep.subr.bf16.mxu0 0
        %765 = vmatpush2.bf16.msra.mxu0 0
        %766 = vmatprep.subr.bf16.mxu0 0
        %767 = vmatpush2.bf16.msra.mxu0 0
        %768 = vmatprep.subr.bf16.mxu0 0
        %769 = vmatpush2.bf16.msra.mxu0 0
        %770 = vmatprep.mubr.bf16.mxu0 0
        %771 = vmatmul.mubr.bf16.gmra.mxu0 %v686
        %v772 = vpop.f32.mrf.mxu0
        %v773 = vadd.f32 %v664, %v772
        %v774 = vpop.f32.mrf.mxu0
        %v775 = vpop.f32.mrf.mxu0
        %v776 = vadd.f32 %v667, %v775
        %v777 = vpop.f32.mrf.mxu0
        %778 = vmatprep.mubr.bf16.mxu0 0
        %779 = vmatmul.mubr.bf16.gmra.mxu0 %v687
        %v780 = vpop.f32.mrf.mxu0
        %v781 = vadd.f32 %v672, %v780
        %v782 = vpop.f32.mrf.mxu0
        %v783 = vpop.f32.mrf.mxu0
        %v784 = vadd.f32 %v675, %v783
        %v785 = vpop.f32.mrf.mxu0
        %786 = vdwg.mxu0
        %vm789 = vcmask 1042432
        %vm790 = vcmask 1046532
        %vm791 = vmor %vm789, %vm790
        %v792 = vrot.slane %v471, 5
        %v793 = vrot.slane %v792, 4
        %v794 = vrot.slane %v472, 5
        %v795 = vsel %vm791, %v793, %v794
        %v796 = vrot.slane %v794, 4
        %v797 = vrot.slane %v473, 5
        %v798 = vsel %vm791, %v796, %v797
        %v799 = vrot.slane %v474, 5
        %v800 = vrot.slane %v799, 4
        %v801 = vrot.slane %v475, 5
        %v802 = vsel %vm791, %v800, %v801
        %v803 = vrot.slane %v801, 4
        %v804 = vrot.slane %v476, 5
        %v805 = vsel %vm791, %v803, %v804
        %s806 = scalar_lea.vmem %s3, 128
        %v807 = vld [vmem:[%s806] sm:$0xf]
        %v808 = vld [vmem:[%s806 + $0x4] sm:$0xf]
        %v809 = vld [vmem:[%s806 + $0x8] sm:$0xf]
        %v810 = vld [vmem:[%s806 + $0xc] sm:$0xf]
        %v811 = vld [vmem:[%s806 + $0x10] sm:$0xf]
        %v812 = vld [vmem:[%s806 + $0x14] sm:$0xf]
        %v813 = vld [vmem:[%s806 + $0x18] sm:$0xf]
        %v814 = vld [vmem:[%s806 + $0x1c] sm:$0xf]
        %v815 = vld [vmem:[%s806 + $0x20] sm:$0xf]
        %v816 = vld [vmem:[%s806 + $0x24] sm:$0xf]
        %v817 = vld [vmem:[%s806 + $0x28] sm:$0xf]
        %v818 = vld [vmem:[%s806 + $0x2c] sm:$0xf]
        %v819 = vld [vmem:[%s806 + $0x30] sm:$0xf]
        %v820 = vld [vmem:[%s806 + $0x34] sm:$0xf]
        %v821 = vld [vmem:[%s806 + $0x38] sm:$0xf]
        %v822 = vld [vmem:[%s806 + $0x3c] sm:$0xf]
        %v823 = vunpack.c.l.b16 %v795
        %v824 = vunpack.c.l.b16 %v798
        %v825 = vunpack.c.l.b16 %v802
        %v826 = vunpack.c.l.b16 %v805
        %v827 = vpack.c.b16 %v824, %v823
        %v828 = vpack.c.b16 %v826, %v825
        %v847 = vunpack.c.l.b16 %v807
        %v848 = vunpack.c.l.b16 %v808
        %v849 = vunpack.c.l.b16 %v809
        %v850 = vunpack.c.l.b16 %v810
        %v851 = vunpack.c.l.b16 %v811
        %v852 = vunpack.c.l.b16 %v812
        %v853 = vunpack.c.l.b16 %v813
        %v854 = vunpack.c.l.b16 %v814
        %v855 = vunpack.c.l.b16 %v815
        %v856 = vunpack.c.l.b16 %v816
        %v857 = vunpack.c.l.b16 %v817
        %v858 = vunpack.c.l.b16 %v818
        %v859 = vunpack.c.l.b16 %v819
        %v860 = vunpack.c.l.b16 %v820
        %v861 = vunpack.c.l.b16 %v821
        %v862 = vunpack.c.l.b16 %v822
        %v863 = vpack.c.b16 %v848, %v847
        %v864 = vpack.c.b16 %v850, %v849
        %v865 = vpack.c.b16 %v852, %v851
        %v866 = vpack.c.b16 %v854, %v853
        %v867 = vpack.c.b16 %v856, %v855
        %v868 = vpack.c.b16 %v858, %v857
        %v869 = vpack.c.b16 %v860, %v859
        %v870 = vpack.c.b16 %v862, %v861
        %879 = vmatprep.subr.bf16.mxu0 0
        %880 = vmatpush1.bf16.msra.mxu0 %v870
        %881 = vmatprep.subr.bf16.mxu0 0
        %882 = vmatpush1.bf16.msra.mxu0 %v869
        %883 = vmatprep.subr.bf16.mxu0 0
        %884 = vmatpush1.bf16.msra.mxu0 %v868
        %885 = vmatprep.subr.bf16.mxu0 0
        %886 = vmatpush1.bf16.msra.mxu0 %v867
        %887 = vmatprep.subr.bf16.mxu0 0
        %888 = vmatpush1.bf16.msra.mxu0 %v866
        %889 = vmatprep.subr.bf16.mxu0 0
        %890 = vmatpush1.bf16.msra.mxu0 %v865
        %891 = vmatprep.subr.bf16.mxu0 0
        %892 = vmatpush1.bf16.msra.mxu0 %v864
        %893 = vmatprep.subr.bf16.mxu0 0
        %894 = vmatpush1.bf16.msra.mxu0 %v863
        %895 = vmatprep.subr.bf16.mxu0 0
        %896 = vmatpush2.bf16.msra.mxu0 0
        %897 = vmatprep.subr.bf16.mxu0 0
        %898 = vmatpush2.bf16.msra.mxu0 0
        %899 = vmatprep.subr.bf16.mxu0 0
        %900 = vmatpush2.bf16.msra.mxu0 0
        %901 = vmatprep.subr.bf16.mxu0 0
        %902 = vmatpush2.bf16.msra.mxu0 0
        %903 = vmatprep.subr.bf16.mxu0 0
        %904 = vmatpush2.bf16.msra.mxu0 0
        %905 = vmatprep.subr.bf16.mxu0 0
        %906 = vmatpush2.bf16.msra.mxu0 0
        %907 = vmatprep.subr.bf16.mxu0 0
        %908 = vmatpush2.bf16.msra.mxu0 0
        %909 = vmatprep.subr.bf16.mxu0 0
        %910 = vmatpush2.bf16.msra.mxu0 0
        %911 = vmatprep.mubr.bf16.mxu0 0
        %912 = vmatmul.mubr.bf16.gmra.mxu0 %v827
        %v913 = vpop.f32.mrf.mxu0
        %v914 = vadd.f32 0.0, %v913
        %v915 = vpop.f32.mrf.mxu0
        %v916 = vpop.f32.mrf.mxu0
        %v917 = vadd.f32 0.0, %v916
        %v918 = vpop.f32.mrf.mxu0
        %919 = vmatprep.mubr.bf16.mxu0 0
        %920 = vmatmul.mubr.bf16.gmra.mxu0 %v828
        %v921 = vpop.f32.mrf.mxu0
        %v922 = vadd.f32 0.0, %v921
        %v923 = vpop.f32.mrf.mxu0
        %v924 = vpop.f32.mrf.mxu0
        %v925 = vadd.f32 0.0, %v924
        %v926 = vpop.f32.mrf.mxu0
        %927 = vdwg.mxu0
        %v928 = vadd.f32 %v773, %v914
        %v929 = vadd.f32 %v776, %v917
        %v930 = vadd.f32 %v781, %v922
        %v931 = vadd.f32 %v784, %v925
        %s932 = scalar_lea.vmem %s3, 192
        %v933 = vld [vmem:[%s932] sm:$0xf]
        %v934 = vld [vmem:[%s932 + $0x4] sm:$0xf]
        %v935 = vld [vmem:[%s932 + $0x8] sm:$0xf]
        %v936 = vld [vmem:[%s932 + $0xc] sm:$0xf]
        %v937 = vld [vmem:[%s932 + $0x10] sm:$0xf]
        %v938 = vld [vmem:[%s932 + $0x14] sm:$0xf]
        %v939 = vld [vmem:[%s932 + $0x18] sm:$0xf]
        %v940 = vld [vmem:[%s932 + $0x1c] sm:$0xf]
        %v941 = vld [vmem:[%s932 + $0x20] sm:$0xf]
        %v942 = vld [vmem:[%s932 + $0x24] sm:$0xf]
        %v943 = vld [vmem:[%s932 + $0x28] sm:$0xf]
        %v944 = vld [vmem:[%s932 + $0x2c] sm:$0xf]
        %v945 = vld [vmem:[%s932 + $0x30] sm:$0xf]
        %v946 = vld [vmem:[%s932 + $0x34] sm:$0xf]
        %v947 = vld [vmem:[%s932 + $0x38] sm:$0xf]
        %v948 = vld [vmem:[%s932 + $0x3c] sm:$0xf]
        %v953 = vunpack.c.l.b16 %v477
        %v954 = vunpack.c.l.b16 %v478
        %v955 = vunpack.c.l.b16 %v480
        %v956 = vunpack.c.l.b16 %v481
        %v957 = vpack.c.b16 %v954, %v953
        %v958 = vpack.c.b16 %v956, %v955
        %v977 = vunpack.c.l.b16 %v933
        %v978 = vunpack.c.l.b16 %v934
        %v979 = vunpack.c.l.b16 %v935
        %v980 = vunpack.c.l.b16 %v936
        %v981 = vunpack.c.l.b16 %v937
        %v982 = vunpack.c.l.b16 %v938
        %v983 = vunpack.c.l.b16 %v939
        %v984 = vunpack.c.l.b16 %v940
        %v985 = vunpack.c.l.b16 %v941
        %v986 = vunpack.c.l.b16 %v942
        %v987 = vunpack.c.l.b16 %v943
        %v988 = vunpack.c.l.b16 %v944
        %v989 = vunpack.c.l.b16 %v945
        %v990 = vunpack.c.l.b16 %v946
        %v991 = vunpack.c.l.b16 %v947
        %v992 = vunpack.c.l.b16 %v948
        %v993 = vpack.c.b16 %v978, %v977
        %v994 = vpack.c.b16 %v980, %v979
        %v995 = vpack.c.b16 %v982, %v981
        %v996 = vpack.c.b16 %v984, %v983
        %v997 = vpack.c.b16 %v986, %v985
        %v998 = vpack.c.b16 %v988, %v987
        %v999 = vpack.c.b16 %v990, %v989
        %v1000 = vpack.c.b16 %v992, %v991
        %1009 = vmatprep.subr.bf16.mxu0 0
        %1010 = vmatpush1.bf16.msra.mxu0 %v1000
        %1011 = vmatprep.subr.bf16.mxu0 0
        %1012 = vmatpush1.bf16.msra.mxu0 %v999
        %1013 = vmatprep.subr.bf16.mxu0 0
        %1014 = vmatpush1.bf16.msra.mxu0 %v998
        %1015 = vmatprep.subr.bf16.mxu0 0
        %1016 = vmatpush1.bf16.msra.mxu0 %v997
        %1017 = vmatprep.subr.bf16.mxu0 0
        %1018 = vmatpush1.bf16.msra.mxu0 %v996
        %1019 = vmatprep.subr.bf16.mxu0 0
        %1020 = vmatpush1.bf16.msra.mxu0 %v995
        %1021 = vmatprep.subr.bf16.mxu0 0
        %1022 = vmatpush1.bf16.msra.mxu0 %v994
        %1023 = vmatprep.subr.bf16.mxu0 0
        %1024 = vmatpush1.bf16.msra.mxu0 %v993
        %1025 = vmatprep.subr.bf16.mxu0 0
        %1026 = vmatpush2.bf16.msra.mxu0 0
        %1027 = vmatprep.subr.bf16.mxu0 0
        %1028 = vmatpush2.bf16.msra.mxu0 0
        %1029 = vmatprep.subr.bf16.mxu0 0
        %1030 = vmatpush2.bf16.msra.mxu0 0
        %1031 = vmatprep.subr.bf16.mxu0 0
        %1032 = vmatpush2.bf16.msra.mxu0 0
        %1033 = vmatprep.subr.bf16.mxu0 0
        %1034 = vmatpush2.bf16.msra.mxu0 0
        %1035 = vmatprep.subr.bf16.mxu0 0
        %1036 = vmatpush2.bf16.msra.mxu0 0
        %1037 = vmatprep.subr.bf16.mxu0 0
        %1038 = vmatpush2.bf16.msra.mxu0 0
        %1039 = vmatprep.subr.bf16.mxu0 0
        %1040 = vmatpush2.bf16.msra.mxu0 0
        %1041 = vmatprep.mubr.bf16.mxu0 0
        %1042 = vmatmul.mubr.bf16.gmra.mxu0 %v957
        %v1043 = vpop.f32.mrf.mxu0
        %v1044 = vadd.f32 0.0, %v1043
        %v1045 = vpop.f32.mrf.mxu0
        %v1046 = vpop.f32.mrf.mxu0
        %v1047 = vadd.f32 0.0, %v1046
        %v1048 = vpop.f32.mrf.mxu0
        %1049 = vmatprep.mubr.bf16.mxu0 0
        %1050 = vmatmul.mubr.bf16.gmra.mxu0 %v958
        %v1051 = vpop.f32.mrf.mxu0
        %v1052 = vadd.f32 0.0, %v1051
        %v1053 = vpop.f32.mrf.mxu0
        %v1054 = vpop.f32.mrf.mxu0
        %v1055 = vadd.f32 0.0, %v1054
        %v1056 = vpop.f32.mrf.mxu0
        %1057 = vdwg.mxu0
        %v1058 = vadd.f32 %v928, %v1044
        %v1059 = vadd.f32 %v929, %v1047
        %v1060 = vadd.f32 %v930, %v1052
        %v1061 = vadd.f32 %v931, %v1055
        %v1063 = vshrl.u32 %v477, 16
        %v1065 = vrot.slane %v1063, 4
        %v1066 = vshll.u32 %v477, 16
        %v1068 = vrot.slane %v1066, 5
        %v1069 = vor.u32 %v1065, %v1068
        %v1070 = vrot.slane %v1069, 4
        %v1072 = vshll.u32 %v478, 16
        %v1074 = vrot.slane %v1072, 5
        %v1075 = vsel %vm507, %v1070, %v1074
        %v1076 = vshrl.u32 %v478, 16
        %v1078 = vrot.slane %v1076, 4
        %v1079 = vor.u32 %v1078, %v1074
        %v1080 = vrot.slane %v1079, 4
        %v1082 = vshll.u32 %v479, 16
        %v1084 = vrot.slane %v1082, 5
        %v1085 = vsel %vm507, %v1080, %v1084
        %v1087 = vshrl.u32 %v480, 16
        %v1089 = vrot.slane %v1087, 4
        %v1090 = vshll.u32 %v480, 16
        %v1092 = vrot.slane %v1090, 5
        %v1093 = vor.u32 %v1089, %v1092
        %v1094 = vrot.slane %v1093, 4
        %v1096 = vshll.u32 %v481, 16
        %v1098 = vrot.slane %v1096, 5
        %v1099 = vsel %vm507, %v1094, %v1098
        %v1100 = vshrl.u32 %v481, 16
        %v1102 = vrot.slane %v1100, 4
        %v1103 = vor.u32 %v1102, %v1098
        %v1104 = vrot.slane %v1103, 4
        %v1106 = vshll.u32 %v482, 16
        %v1108 = vrot.slane %v1106, 5
        %v1109 = vsel %vm507, %v1104, %v1108
        %s1110 = scalar_lea.vmem %s3, 256
        %v1111 = vld [vmem:[%s1110] sm:$0xf]
        %v1112 = vld [vmem:[%s1110 + $0x4] sm:$0xf]
        %v1113 = vld [vmem:[%s1110 + $0x8] sm:$0xf]
        %v1114 = vld [vmem:[%s1110 + $0xc] sm:$0xf]
        %v1115 = vld [vmem:[%s1110 + $0x10] sm:$0xf]
        %v1116 = vld [vmem:[%s1110 + $0x14] sm:$0xf]
        %v1117 = vld [vmem:[%s1110 + $0x18] sm:$0xf]
        %v1118 = vld [vmem:[%s1110 + $0x1c] sm:$0xf]
        %v1119 = vld [vmem:[%s1110 + $0x20] sm:$0xf]
        %v1120 = vld [vmem:[%s1110 + $0x24] sm:$0xf]
        %v1121 = vld [vmem:[%s1110 + $0x28] sm:$0xf]
        %v1122 = vld [vmem:[%s1110 + $0x2c] sm:$0xf]
        %v1123 = vld [vmem:[%s1110 + $0x30] sm:$0xf]
        %v1124 = vld [vmem:[%s1110 + $0x34] sm:$0xf]
        %v1125 = vld [vmem:[%s1110 + $0x38] sm:$0xf]
        %v1126 = vld [vmem:[%s1110 + $0x3c] sm:$0xf]
        %v1127 = vunpack.c.l.b16 %v1075
        %v1128 = vunpack.c.l.b16 %v1085
        %v1129 = vunpack.c.l.b16 %v1099
        %v1130 = vunpack.c.l.b16 %v1109
        %v1131 = vpack.c.b16 %v1128, %v1127
        %v1132 = vpack.c.b16 %v1130, %v1129
        %v1151 = vunpack.c.l.b16 %v1111
        %v1152 = vunpack.c.l.b16 %v1112
        %v1153 = vunpack.c.l.b16 %v1113
        %v1154 = vunpack.c.l.b16 %v1114
        %v1155 = vunpack.c.l.b16 %v1115
        %v1156 = vunpack.c.l.b16 %v1116
        %v1157 = vunpack.c.l.b16 %v1117
        %v1158 = vunpack.c.l.b16 %v1118
        %v1159 = vunpack.c.l.b16 %v1119
        %v1160 = vunpack.c.l.b16 %v1120
        %v1161 = vunpack.c.l.b16 %v1121
        %v1162 = vunpack.c.l.b16 %v1122
        %v1163 = vunpack.c.l.b16 %v1123
        %v1164 = vunpack.c.l.b16 %v1124
        %v1165 = vunpack.c.l.b16 %v1125
        %v1166 = vunpack.c.l.b16 %v1126
        %v1167 = vpack.c.b16 %v1152, %v1151
        %v1168 = vpack.c.b16 %v1154, %v1153
        %v1169 = vpack.c.b16 %v1156, %v1155
        %v1170 = vpack.c.b16 %v1158, %v1157
        %v1171 = vpack.c.b16 %v1160, %v1159
        %v1172 = vpack.c.b16 %v1162, %v1161
        %v1173 = vpack.c.b16 %v1164, %v1163
        %v1174 = vpack.c.b16 %v1166, %v1165
        %1183 = vmatprep.subr.bf16.mxu0 0
        %1184 = vmatpush1.bf16.msra.mxu0 %v1174
        %1185 = vmatprep.subr.bf16.mxu0 0
        %1186 = vmatpush1.bf16.msra.mxu0 %v1173
        %1187 = vmatprep.subr.bf16.mxu0 0
        %1188 = vmatpush1.bf16.msra.mxu0 %v1172
        %1189 = vmatprep.subr.bf16.mxu0 0
        %1190 = vmatpush1.bf16.msra.mxu0 %v1171
        %1191 = vmatprep.subr.bf16.mxu0 0
        %1192 = vmatpush1.bf16.msra.mxu0 %v1170
        %1193 = vmatprep.subr.bf16.mxu0 0
        %1194 = vmatpush1.bf16.msra.mxu0 %v1169
        %1195 = vmatprep.subr.bf16.mxu0 0
        %1196 = vmatpush1.bf16.msra.mxu0 %v1168
        %1197 = vmatprep.subr.bf16.mxu0 0
        %1198 = vmatpush1.bf16.msra.mxu0 %v1167
        %1199 = vmatprep.subr.bf16.mxu0 0
        %1200 = vmatpush2.bf16.msra.mxu0 0
        %1201 = vmatprep.subr.bf16.mxu0 0
        %1202 = vmatpush2.bf16.msra.mxu0 0
        %1203 = vmatprep.subr.bf16.mxu0 0
        %1204 = vmatpush2.bf16.msra.mxu0 0
        %1205 = vmatprep.subr.bf16.mxu0 0
        %1206 = vmatpush2.bf16.msra.mxu0 0
        %1207 = vmatprep.subr.bf16.mxu0 0
        %1208 = vmatpush2.bf16.msra.mxu0 0
        %1209 = vmatprep.subr.bf16.mxu0 0
        %1210 = vmatpush2.bf16.msra.mxu0 0
        %1211 = vmatprep.subr.bf16.mxu0 0
        %1212 = vmatpush2.bf16.msra.mxu0 0
        %1213 = vmatprep.subr.bf16.mxu0 0
        %1214 = vmatpush2.bf16.msra.mxu0 0
        %1215 = vmatprep.mubr.bf16.mxu0 0
        %1216 = vmatmul.mubr.bf16.gmra.mxu0 %v1131
        %v1217 = vpop.f32.mrf.mxu0
        %v1218 = vadd.f32 0.0, %v1217
        %v1219 = vpop.f32.mrf.mxu0
        %v1220 = vpop.f32.mrf.mxu0
        %v1221 = vadd.f32 0.0, %v1220
        %v1222 = vpop.f32.mrf.mxu0
        %1223 = vmatprep.mubr.bf16.mxu0 0
        %1224 = vmatmul.mubr.bf16.gmra.mxu0 %v1132
        %v1225 = vpop.f32.mrf.mxu0
        %v1226 = vadd.f32 0.0, %v1225
        %v1227 = vpop.f32.mrf.mxu0
        %v1228 = vpop.f32.mrf.mxu0
        %v1229 = vadd.f32 0.0, %v1228
        %v1230 = vpop.f32.mrf.mxu0
        %1231 = vdwg.mxu0
        %v1232 = vadd.f32 %v1058, %v1218
        %v1233 = vadd.f32 %v1059, %v1221
        %v1234 = vadd.f32 %v1060, %v1226
        %v1235 = vadd.f32 %v1061, %v1229
        %v1238 = vrot.slane %v477, 5
        %v1239 = vrot.slane %v1238, 4
        %v1240 = vrot.slane %v478, 5
        %v1241 = vsel %vm791, %v1239, %v1240
        %v1242 = vrot.slane %v1240, 4
        %v1243 = vrot.slane %v479, 5
        %v1244 = vsel %vm791, %v1242, %v1243
        %v1245 = vrot.slane %v480, 5
        %v1246 = vrot.slane %v1245, 4
        %v1247 = vrot.slane %v481, 5
        %v1248 = vsel %vm791, %v1246, %v1247
        %v1249 = vrot.slane %v1247, 4
        %v1250 = vrot.slane %v482, 5
        %v1251 = vsel %vm791, %v1249, %v1250
        %s1252 = scalar_lea.vmem %s3, 320
        %v1253 = vld [vmem:[%s1252] sm:$0xf]
        %v1254 = vld [vmem:[%s1252 + $0x4] sm:$0xf]
        %v1255 = vld [vmem:[%s1252 + $0x8] sm:$0xf]
        %v1256 = vld [vmem:[%s1252 + $0xc] sm:$0xf]
        %v1257 = vld [vmem:[%s1252 + $0x10] sm:$0xf]
        %v1258 = vld [vmem:[%s1252 + $0x14] sm:$0xf]
        %v1259 = vld [vmem:[%s1252 + $0x18] sm:$0xf]
        %v1260 = vld [vmem:[%s1252 + $0x1c] sm:$0xf]
        %v1261 = vld [vmem:[%s1252 + $0x20] sm:$0xf]
        %v1262 = vld [vmem:[%s1252 + $0x24] sm:$0xf]
        %v1263 = vld [vmem:[%s1252 + $0x28] sm:$0xf]
        %v1264 = vld [vmem:[%s1252 + $0x2c] sm:$0xf]
        %v1265 = vld [vmem:[%s1252 + $0x30] sm:$0xf]
        %v1266 = vld [vmem:[%s1252 + $0x34] sm:$0xf]
        %v1267 = vld [vmem:[%s1252 + $0x38] sm:$0xf]
        %v1268 = vld [vmem:[%s1252 + $0x3c] sm:$0xf]
        %v1269 = vunpack.c.l.b16 %v1241
        %v1270 = vunpack.c.l.b16 %v1244
        %v1271 = vunpack.c.l.b16 %v1248
        %v1272 = vunpack.c.l.b16 %v1251
        %v1273 = vpack.c.b16 %v1270, %v1269
        %v1274 = vpack.c.b16 %v1272, %v1271
        %v1293 = vunpack.c.l.b16 %v1253
        %v1294 = vunpack.c.l.b16 %v1254
        %v1295 = vunpack.c.l.b16 %v1255
        %v1296 = vunpack.c.l.b16 %v1256
        %v1297 = vunpack.c.l.b16 %v1257
        %v1298 = vunpack.c.l.b16 %v1258
        %v1299 = vunpack.c.l.b16 %v1259
        %v1300 = vunpack.c.l.b16 %v1260
        %v1301 = vunpack.c.l.b16 %v1261
        %v1302 = vunpack.c.l.b16 %v1262
        %v1303 = vunpack.c.l.b16 %v1263
        %v1304 = vunpack.c.l.b16 %v1264
        %v1305 = vunpack.c.l.b16 %v1265
        %v1306 = vunpack.c.l.b16 %v1266
        %v1307 = vunpack.c.l.b16 %v1267
        %v1308 = vunpack.c.l.b16 %v1268
        %v1309 = vpack.c.b16 %v1294, %v1293
        %v1310 = vpack.c.b16 %v1296, %v1295
        %v1311 = vpack.c.b16 %v1298, %v1297
        %v1312 = vpack.c.b16 %v1300, %v1299
        %v1313 = vpack.c.b16 %v1302, %v1301
        %v1314 = vpack.c.b16 %v1304, %v1303
        %v1315 = vpack.c.b16 %v1306, %v1305
        %v1316 = vpack.c.b16 %v1308, %v1307
        %1325 = vmatprep.subr.bf16.mxu0 0
        %1326 = vmatpush1.bf16.msra.mxu0 %v1316
        %1327 = vmatprep.subr.bf16.mxu0 0
        %1328 = vmatpush1.bf16.msra.mxu0 %v1315
        %1329 = vmatprep.subr.bf16.mxu0 0
        %1330 = vmatpush1.bf16.msra.mxu0 %v1314
        %1331 = vmatprep.subr.bf16.mxu0 0
        %1332 = vmatpush1.bf16.msra.mxu0 %v1313
        %1333 = vmatprep.subr.bf16.mxu0 0
        %1334 = vmatpush1.bf16.msra.mxu0 %v1312
        %1335 = vmatprep.subr.bf16.mxu0 0
        %1336 = vmatpush1.bf16.msra.mxu0 %v1311
        %1337 = vmatprep.subr.bf16.mxu0 0
        %1338 = vmatpush1.bf16.msra.mxu0 %v1310
        %1339 = vmatprep.subr.bf16.mxu0 0
        %1340 = vmatpush1.bf16.msra.mxu0 %v1309
        %1341 = vmatprep.subr.bf16.mxu0 0
        %1342 = vmatpush2.bf16.msra.mxu0 0
        %1343 = vmatprep.subr.bf16.mxu0 0
        %1344 = vmatpush2.bf16.msra.mxu0 0
        %1345 = vmatprep.subr.bf16.mxu0 0
        %1346 = vmatpush2.bf16.msra.mxu0 0
        %1347 = vmatprep.subr.bf16.mxu0 0
        %1348 = vmatpush2.bf16.msra.mxu0 0
        %1349 = vmatprep.subr.bf16.mxu0 0
        %1350 = vmatpush2.bf16.msra.mxu0 0
        %1351 = vmatprep.subr.bf16.mxu0 0
        %1352 = vmatpush2.bf16.msra.mxu0 0
        %1353 = vmatprep.subr.bf16.mxu0 0
        %1354 = vmatpush2.bf16.msra.mxu0 0
        %1355 = vmatprep.subr.bf16.mxu0 0
        %1356 = vmatpush2.bf16.msra.mxu0 0
        %1357 = vmatprep.mubr.bf16.mxu0 0
        %1358 = vmatmul.mubr.bf16.gmra.mxu0 %v1273
        %v1359 = vpop.f32.mrf.mxu0
        %v1360 = vadd.f32 0.0, %v1359
        %v1361 = vpop.f32.mrf.mxu0
        %v1362 = vpop.f32.mrf.mxu0
        %v1363 = vadd.f32 0.0, %v1362
        %v1364 = vpop.f32.mrf.mxu0
        %1365 = vmatprep.mubr.bf16.mxu0 0
        %1366 = vmatmul.mubr.bf16.gmra.mxu0 %v1274
        %v1367 = vpop.f32.mrf.mxu0
        %v1368 = vadd.f32 0.0, %v1367
        %v1369 = vpop.f32.mrf.mxu0
        %v1370 = vpop.f32.mrf.mxu0
        %v1371 = vadd.f32 0.0, %v1370
        %v1372 = vpop.f32.mrf.mxu0
        %1373 = vdwg.mxu0
        %v1374 = vadd.f32 %v1232, %v1360
        %v1375 = vadd.f32 %v1233, %v1363
        %v1376 = vadd.f32 %v1234, %v1368
        %v1377 = vadd.f32 %v1235, %v1371
        %s1378 = scalar_lea.vmem %s3, 384
        %v1379 = vld [vmem:[%s1378] sm:$0xf]
        %v1380 = vld [vmem:[%s1378 + $0x4] sm:$0xf]
        %v1381 = vld [vmem:[%s1378 + $0x8] sm:$0xf]
        %v1382 = vld [vmem:[%s1378 + $0xc] sm:$0xf]
        %v1383 = vld [vmem:[%s1378 + $0x10] sm:$0xf]
        %v1384 = vld [vmem:[%s1378 + $0x14] sm:$0xf]
        %v1385 = vld [vmem:[%s1378 + $0x18] sm:$0xf]
        %v1386 = vld [vmem:[%s1378 + $0x1c] sm:$0xf]
        %v1387 = vld [vmem:[%s1378 + $0x20] sm:$0xf]
        %v1388 = vld [vmem:[%s1378 + $0x24] sm:$0xf]
        %v1389 = vld [vmem:[%s1378 + $0x28] sm:$0xf]
        %v1390 = vld [vmem:[%s1378 + $0x2c] sm:$0xf]
        %v1391 = vld [vmem:[%s1378 + $0x30] sm:$0xf]
        %v1392 = vld [vmem:[%s1378 + $0x34] sm:$0xf]
        %v1393 = vld [vmem:[%s1378 + $0x38] sm:$0xf]
        %v1394 = vld [vmem:[%s1378 + $0x3c] sm:$0xf]
        %v1399 = vunpack.c.l.b16 %v483
        %v1400 = vunpack.c.l.b16 %v484
        %v1401 = vunpack.c.l.b16 %v486
        %v1402 = vunpack.c.l.b16 %v487
        %v1403 = vpack.c.b16 %v1400, %v1399
        %v1404 = vpack.c.b16 %v1402, %v1401
        %v1423 = vunpack.c.l.b16 %v1379
        %v1424 = vunpack.c.l.b16 %v1380
        %v1425 = vunpack.c.l.b16 %v1381
        %v1426 = vunpack.c.l.b16 %v1382
        %v1427 = vunpack.c.l.b16 %v1383
        %v1428 = vunpack.c.l.b16 %v1384
        %v1429 = vunpack.c.l.b16 %v1385
        %v1430 = vunpack.c.l.b16 %v1386
        %v1431 = vunpack.c.l.b16 %v1387
        %v1432 = vunpack.c.l.b16 %v1388
        %v1433 = vunpack.c.l.b16 %v1389
        %v1434 = vunpack.c.l.b16 %v1390
        %v1435 = vunpack.c.l.b16 %v1391
        %v1436 = vunpack.c.l.b16 %v1392
        %v1437 = vunpack.c.l.b16 %v1393
        %v1438 = vunpack.c.l.b16 %v1394
        %v1439 = vpack.c.b16 %v1424, %v1423
        %v1440 = vpack.c.b16 %v1426, %v1425
        %v1441 = vpack.c.b16 %v1428, %v1427
        %v1442 = vpack.c.b16 %v1430, %v1429
        %v1443 = vpack.c.b16 %v1432, %v1431
        %v1444 = vpack.c.b16 %v1434, %v1433
        %v1445 = vpack.c.b16 %v1436, %v1435
        %v1446 = vpack.c.b16 %v1438, %v1437
        %1455 = vmatprep.subr.bf16.mxu0 0
        %1456 = vmatpush1.bf16.msra.mxu0 %v1446
        %1457 = vmatprep.subr.bf16.mxu0 0
        %1458 = vmatpush1.bf16.msra.mxu0 %v1445
        %1459 = vmatprep.subr.bf16.mxu0 0
        %1460 = vmatpush1.bf16.msra.mxu0 %v1444
        %1461 = vmatprep.subr.bf16.mxu0 0
        %1462 = vmatpush1.bf16.msra.mxu0 %v1443
        %1463 = vmatprep.subr.bf16.mxu0 0
        %1464 = vmatpush1.bf16.msra.mxu0 %v1442
        %1465 = vmatprep.subr.bf16.mxu0 0
        %1466 = vmatpush1.bf16.msra.mxu0 %v1441
        %1467 = vmatprep.subr.bf16.mxu0 0
        %1468 = vmatpush1.bf16.msra.mxu0 %v1440
        %1469 = vmatprep.subr.bf16.mxu0 0
        %1470 = vmatpush1.bf16.msra.mxu0 %v1439
        %1471 = vmatprep.subr.bf16.mxu0 0
        %1472 = vmatpush2.bf16.msra.mxu0 0
        %1473 = vmatprep.subr.bf16.mxu0 0
        %1474 = vmatpush2.bf16.msra.mxu0 0
        %1475 = vmatprep.subr.bf16.mxu0 0
        %1476 = vmatpush2.bf16.msra.mxu0 0
        %1477 = vmatprep.subr.bf16.mxu0 0
        %1478 = vmatpush2.bf16.msra.mxu0 0
        %1479 = vmatprep.subr.bf16.mxu0 0
        %1480 = vmatpush2.bf16.msra.mxu0 0
        %1481 = vmatprep.subr.bf16.mxu0 0
        %1482 = vmatpush2.bf16.msra.mxu0 0
        %1483 = vmatprep.subr.bf16.mxu0 0
        %1484 = vmatpush2.bf16.msra.mxu0 0
        %1485 = vmatprep.subr.bf16.mxu0 0
        %1486 = vmatpush2.bf16.msra.mxu0 0
        %1487 = vmatprep.mubr.bf16.mxu0 0
        %1488 = vmatmul.mubr.bf16.gmra.mxu0 %v1403
        %v1489 = vpop.f32.mrf.mxu0
        %v1490 = vadd.f32 0.0, %v1489
        %v1491 = vpop.f32.mrf.mxu0
        %v1492 = vpop.f32.mrf.mxu0
        %v1493 = vadd.f32 0.0, %v1492
        %v1494 = vpop.f32.mrf.mxu0
        %1495 = vmatprep.mubr.bf16.mxu0 0
        %1496 = vmatmul.mubr.bf16.gmra.mxu0 %v1404
        %v1497 = vpop.f32.mrf.mxu0
        %v1498 = vadd.f32 0.0, %v1497
        %v1499 = vpop.f32.mrf.mxu0
        %v1500 = vpop.f32.mrf.mxu0
        %v1501 = vadd.f32 0.0, %v1500
        %v1502 = vpop.f32.mrf.mxu0
        %1503 = vdwg.mxu0
        %v1504 = vadd.f32 %v1374, %v1490
        %v1505 = vadd.f32 %v1375, %v1493
        %v1506 = vadd.f32 %v1376, %v1498
        %v1507 = vadd.f32 %v1377, %v1501
        %v1509 = vshrl.u32 %v483, 16
        %v1511 = vrot.slane %v1509, 4
        %v1512 = vshll.u32 %v483, 16
        %v1514 = vrot.slane %v1512, 5
        %v1515 = vor.u32 %v1511, %v1514
        %v1516 = vrot.slane %v1515, 4
        %v1518 = vshll.u32 %v484, 16
        %v1520 = vrot.slane %v1518, 5
        %v1521 = vsel %vm507, %v1516, %v1520
        %v1522 = vshrl.u32 %v484, 16
        %v1524 = vrot.slane %v1522, 4
        %v1525 = vor.u32 %v1524, %v1520
        %v1526 = vrot.slane %v1525, 4
        %v1528 = vshll.u32 %v485, 16
        %v1530 = vrot.slane %v1528, 5
        %v1531 = vsel %vm507, %v1526, %v1530
        %v1533 = vshrl.u32 %v486, 16
        %v1535 = vrot.slane %v1533, 4
        %v1536 = vshll.u32 %v486, 16
        %v1538 = vrot.slane %v1536, 5
        %v1539 = vor.u32 %v1535, %v1538
        %v1540 = vrot.slane %v1539, 4
        %v1542 = vshll.u32 %v487, 16
        %v1544 = vrot.slane %v1542, 5
        %v1545 = vsel %vm507, %v1540, %v1544
        %v1546 = vshrl.u32 %v487, 16
        %v1548 = vrot.slane %v1546, 4
        %v1549 = vor.u32 %v1548, %v1544
        %v1550 = vrot.slane %v1549, 4
        %v1552 = vshll.u32 %v488, 16
        %v1554 = vrot.slane %v1552, 5
        %v1555 = vsel %vm507, %v1550, %v1554
        %s1556 = scalar_lea.vmem %s3, 448
        %v1557 = vld [vmem:[%s1556] sm:$0xf]
        %v1558 = vld [vmem:[%s1556 + $0x4] sm:$0xf]
        %v1559 = vld [vmem:[%s1556 + $0x8] sm:$0xf]
        %v1560 = vld [vmem:[%s1556 + $0xc] sm:$0xf]
        %v1561 = vld [vmem:[%s1556 + $0x10] sm:$0xf]
        %v1562 = vld [vmem:[%s1556 + $0x14] sm:$0xf]
        %v1563 = vld [vmem:[%s1556 + $0x18] sm:$0xf]
        %v1564 = vld [vmem:[%s1556 + $0x1c] sm:$0xf]
        %v1565 = vld [vmem:[%s1556 + $0x20] sm:$0xf]
        %v1566 = vld [vmem:[%s1556 + $0x24] sm:$0xf]
        %v1567 = vld [vmem:[%s1556 + $0x28] sm:$0xf]
        %v1568 = vld [vmem:[%s1556 + $0x2c] sm:$0xf]
        %v1569 = vld [vmem:[%s1556 + $0x30] sm:$0xf]
        %v1570 = vld [vmem:[%s1556 + $0x34] sm:$0xf]
        %v1571 = vld [vmem:[%s1556 + $0x38] sm:$0xf]
        %v1572 = vld [vmem:[%s1556 + $0x3c] sm:$0xf]
        %v1573 = vunpack.c.l.b16 %v1521
        %v1574 = vunpack.c.l.b16 %v1531
        %v1575 = vunpack.c.l.b16 %v1545
        %v1576 = vunpack.c.l.b16 %v1555
        %v1577 = vpack.c.b16 %v1574, %v1573
        %v1578 = vpack.c.b16 %v1576, %v1575
        %v1597 = vunpack.c.l.b16 %v1557
        %v1598 = vunpack.c.l.b16 %v1558
        %v1599 = vunpack.c.l.b16 %v1559
        %v1600 = vunpack.c.l.b16 %v1560
        %v1601 = vunpack.c.l.b16 %v1561
        %v1602 = vunpack.c.l.b16 %v1562
        %v1603 = vunpack.c.l.b16 %v1563
        %v1604 = vunpack.c.l.b16 %v1564
        %v1605 = vunpack.c.l.b16 %v1565
        %v1606 = vunpack.c.l.b16 %v1566
        %v1607 = vunpack.c.l.b16 %v1567
        %v1608 = vunpack.c.l.b16 %v1568
        %v1609 = vunpack.c.l.b16 %v1569
        %v1610 = vunpack.c.l.b16 %v1570
        %v1611 = vunpack.c.l.b16 %v1571
        %v1612 = vunpack.c.l.b16 %v1572
        %v1613 = vpack.c.b16 %v1598, %v1597
        %v1614 = vpack.c.b16 %v1600, %v1599
        %v1615 = vpack.c.b16 %v1602, %v1601
        %v1616 = vpack.c.b16 %v1604, %v1603
        %v1617 = vpack.c.b16 %v1606, %v1605
        %v1618 = vpack.c.b16 %v1608, %v1607
        %v1619 = vpack.c.b16 %v1610, %v1609
        %v1620 = vpack.c.b16 %v1612, %v1611
        %1629 = vmatprep.subr.bf16.mxu0 0
        %1630 = vmatpush1.bf16.msra.mxu0 %v1620
        %1631 = vmatprep.subr.bf16.mxu0 0
        %1632 = vmatpush1.bf16.msra.mxu0 %v1619
        %1633 = vmatprep.subr.bf16.mxu0 0
        %1634 = vmatpush1.bf16.msra.mxu0 %v1618
        %1635 = vmatprep.subr.bf16.mxu0 0
        %1636 = vmatpush1.bf16.msra.mxu0 %v1617
        %1637 = vmatprep.subr.bf16.mxu0 0
        %1638 = vmatpush1.bf16.msra.mxu0 %v1616
        %1639 = vmatprep.subr.bf16.mxu0 0
        %1640 = vmatpush1.bf16.msra.mxu0 %v1615
        %1641 = vmatprep.subr.bf16.mxu0 0
        %1642 = vmatpush1.bf16.msra.mxu0 %v1614
        %1643 = vmatprep.subr.bf16.mxu0 0
        %1644 = vmatpush1.bf16.msra.mxu0 %v1613
        %1645 = vmatprep.subr.bf16.mxu0 0
        %1646 = vmatpush2.bf16.msra.mxu0 0
        %1647 = vmatprep.subr.bf16.mxu0 0
        %1648 = vmatpush2.bf16.msra.mxu0 0
        %1649 = vmatprep.subr.bf16.mxu0 0
        %1650 = vmatpush2.bf16.msra.mxu0 0
        %1651 = vmatprep.subr.bf16.mxu0 0
        %1652 = vmatpush2.bf16.msra.mxu0 0
        %1653 = vmatprep.subr.bf16.mxu0 0
        %1654 = vmatpush2.bf16.msra.mxu0 0
        %1655 = vmatprep.subr.bf16.mxu0 0
        %1656 = vmatpush2.bf16.msra.mxu0 0
        %1657 = vmatprep.subr.bf16.mxu0 0
        %1658 = vmatpush2.bf16.msra.mxu0 0
        %1659 = vmatprep.subr.bf16.mxu0 0
        %1660 = vmatpush2.bf16.msra.mxu0 0
        %1661 = vmatprep.mubr.bf16.mxu0 0
        %1662 = vmatmul.mubr.bf16.gmra.mxu0 %v1577
        %v1663 = vpop.f32.mrf.mxu0
        %v1664 = vadd.f32 0.0, %v1663
        %v1665 = vpop.f32.mrf.mxu0
        %v1666 = vpop.f32.mrf.mxu0
        %v1667 = vadd.f32 0.0, %v1666
        %v1668 = vpop.f32.mrf.mxu0
        %1669 = vmatprep.mubr.bf16.mxu0 0
        %1670 = vmatmul.mubr.bf16.gmra.mxu0 %v1578
        %v1671 = vpop.f32.mrf.mxu0
        %v1672 = vadd.f32 0.0, %v1671
        %v1673 = vpop.f32.mrf.mxu0
        %v1674 = vpop.f32.mrf.mxu0
        %v1675 = vadd.f32 0.0, %v1674
        %v1676 = vpop.f32.mrf.mxu0
        %1677 = vdwg.mxu0
        %v1678 = vadd.f32 %v1504, %v1664
        %v1679 = vadd.f32 %v1505, %v1667
        %v1680 = vadd.f32 %v1506, %v1672
        %v1681 = vadd.f32 %v1507, %v1675
        %v1684 = vrot.slane %v483, 5
        %v1685 = vrot.slane %v1684, 4
        %v1686 = vrot.slane %v484, 5
        %v1687 = vsel %vm791, %v1685, %v1686
        %v1688 = vrot.slane %v1686, 4
        %v1689 = vrot.slane %v485, 5
        %v1690 = vsel %vm791, %v1688, %v1689
        %v1691 = vrot.slane %v486, 5
        %v1692 = vrot.slane %v1691, 4
        %v1693 = vrot.slane %v487, 5
        %v1694 = vsel %vm791, %v1692, %v1693
        %v1695 = vrot.slane %v1693, 4
        %v1696 = vrot.slane %v488, 5
        %v1697 = vsel %vm791, %v1695, %v1696
        %s1698 = scalar_lea.vmem %s3, 512
        %v1699 = vld [vmem:[%s1698] sm:$0xf]
        %v1700 = vld [vmem:[%s1698 + $0x4] sm:$0xf]
        %v1701 = vld [vmem:[%s1698 + $0x8] sm:$0xf]
        %v1702 = vld [vmem:[%s1698 + $0xc] sm:$0xf]
        %v1703 = vld [vmem:[%s1698 + $0x10] sm:$0xf]
        %v1704 = vld [vmem:[%s1698 + $0x14] sm:$0xf]
        %v1705 = vld [vmem:[%s1698 + $0x18] sm:$0xf]
        %v1706 = vld [vmem:[%s1698 + $0x1c] sm:$0xf]
        %v1707 = vld [vmem:[%s1698 + $0x20] sm:$0xf]
        %v1708 = vld [vmem:[%s1698 + $0x24] sm:$0xf]
        %v1709 = vld [vmem:[%s1698 + $0x28] sm:$0xf]
        %v1710 = vld [vmem:[%s1698 + $0x2c] sm:$0xf]
        %v1711 = vld [vmem:[%s1698 + $0x30] sm:$0xf]
        %v1712 = vld [vmem:[%s1698 + $0x34] sm:$0xf]
        %v1713 = vld [vmem:[%s1698 + $0x38] sm:$0xf]
        %v1714 = vld [vmem:[%s1698 + $0x3c] sm:$0xf]
        %v1715 = vunpack.c.l.b16 %v1687
        %v1716 = vunpack.c.l.b16 %v1690
        %v1717 = vunpack.c.l.b16 %v1694
        %v1718 = vunpack.c.l.b16 %v1697
        %v1719 = vpack.c.b16 %v1716, %v1715
        %v1720 = vpack.c.b16 %v1718, %v1717
        %v1739 = vunpack.c.l.b16 %v1699
        %v1740 = vunpack.c.l.b16 %v1700
        %v1741 = vunpack.c.l.b16 %v1701
        %v1742 = vunpack.c.l.b16 %v1702
        %v1743 = vunpack.c.l.b16 %v1703
        %v1744 = vunpack.c.l.b16 %v1704
        %v1745 = vunpack.c.l.b16 %v1705
        %v1746 = vunpack.c.l.b16 %v1706
        %v1747 = vunpack.c.l.b16 %v1707
        %v1748 = vunpack.c.l.b16 %v1708
        %v1749 = vunpack.c.l.b16 %v1709
        %v1750 = vunpack.c.l.b16 %v1710
        %v1751 = vunpack.c.l.b16 %v1711
        %v1752 = vunpack.c.l.b16 %v1712
        %v1753 = vunpack.c.l.b16 %v1713
        %v1754 = vunpack.c.l.b16 %v1714
        %v1755 = vpack.c.b16 %v1740, %v1739
        %v1756 = vpack.c.b16 %v1742, %v1741
        %v1757 = vpack.c.b16 %v1744, %v1743
        %v1758 = vpack.c.b16 %v1746, %v1745
        %v1759 = vpack.c.b16 %v1748, %v1747
        %v1760 = vpack.c.b16 %v1750, %v1749
        %v1761 = vpack.c.b16 %v1752, %v1751
        %v1762 = vpack.c.b16 %v1754, %v1753
        %1771 = vmatprep.subr.bf16.mxu0 0
        %1772 = vmatpush1.bf16.msra.mxu0 %v1762
        %1773 = vmatprep.subr.bf16.mxu0 0
        %1774 = vmatpush1.bf16.msra.mxu0 %v1761
        %1775 = vmatprep.subr.bf16.mxu0 0
        %1776 = vmatpush1.bf16.msra.mxu0 %v1760
        %1777 = vmatprep.subr.bf16.mxu0 0
        %1778 = vmatpush1.bf16.msra.mxu0 %v1759
        %1779 = vmatprep.subr.bf16.mxu0 0
        %1780 = vmatpush1.bf16.msra.mxu0 %v1758
        %1781 = vmatprep.subr.bf16.mxu0 0
        %1782 = vmatpush1.bf16.msra.mxu0 %v1757
        %1783 = vmatprep.subr.bf16.mxu0 0
        %1784 = vmatpush1.bf16.msra.mxu0 %v1756
        %1785 = vmatprep.subr.bf16.mxu0 0
        %1786 = vmatpush1.bf16.msra.mxu0 %v1755
        %1787 = vmatprep.subr.bf16.mxu0 0
        %1788 = vmatpush2.bf16.msra.mxu0 0
        %1789 = vmatprep.subr.bf16.mxu0 0
        %1790 = vmatpush2.bf16.msra.mxu0 0
        %1791 = vmatprep.subr.bf16.mxu0 0
        %1792 = vmatpush2.bf16.msra.mxu0 0
        %1793 = vmatprep.subr.bf16.mxu0 0
        %1794 = vmatpush2.bf16.msra.mxu0 0
        %1795 = vmatprep.subr.bf16.mxu0 0
        %1796 = vmatpush2.bf16.msra.mxu0 0
        %1797 = vmatprep.subr.bf16.mxu0 0
        %1798 = vmatpush2.bf16.msra.mxu0 0
        %1799 = vmatprep.subr.bf16.mxu0 0
        %1800 = vmatpush2.bf16.msra.mxu0 0
        %1801 = vmatprep.subr.bf16.mxu0 0
        %1802 = vmatpush2.bf16.msra.mxu0 0
        %1803 = vmatprep.mubr.bf16.mxu0 0
        %1804 = vmatmul.mubr.bf16.gmra.mxu0 %v1719
        %v1805 = vpop.f32.mrf.mxu0
        %v1806 = vadd.f32 0.0, %v1805
        %v1807 = vpop.f32.mrf.mxu0
        %v1808 = vpop.f32.mrf.mxu0
        %v1809 = vadd.f32 0.0, %v1808
        %v1810 = vpop.f32.mrf.mxu0
        %1811 = vmatprep.mubr.bf16.mxu0 0
        %1812 = vmatmul.mubr.bf16.gmra.mxu0 %v1720
        %v1813 = vpop.f32.mrf.mxu0
        %v1814 = vadd.f32 0.0, %v1813
        %v1815 = vpop.f32.mrf.mxu0
        %v1816 = vpop.f32.mrf.mxu0
        %v1817 = vadd.f32 0.0, %v1816
        %v1818 = vpop.f32.mrf.mxu0
        %1819 = vdwg.mxu0
        %v1820 = vadd.f32 %v1678, %v1806
        %v1821 = vadd.f32 %v1679, %v1809
        %v1822 = vadd.f32 %v1680, %v1814
        %v1823 = vadd.f32 %v1681, %v1817
        %1824 = vst [vmem:[%s457] sm:$0xff] %v1820
        %1825 = vst [vmem:[%s457 + $0x8] sm:$0xff] %v1821
        %1826 = vst [vmem:[%s457 + $0x10] sm:$0xff] %v1822
        %1827 = vst [vmem:[%s457 + $0x18] sm:$0xff] %v1823
        %v1828 = vadd.f32 %v1820, %v1821
        %v1829 = vadd.f32 %v1828, %v1822
        %v1830 = vadd.f32 %v1829, %v1823
        %v1831 = vrot.slane %v1830, 4
        %v1832 = vadd.f32 %v1830, %v1831
        %v1833 = vrot.slane %v1832, 2
        %v1834 = vadd.f32 %v1832, %v1833
        %v1835 = vrot.slane %v1834, 1
        %v1836 = vadd.f32 %v1834, %v1835
        %v1837 = vmul.f32 %v1820, %v1820
        %v1838 = vmul.f32 %v1821, %v1821
        %v1839 = vmul.f32 %v1822, %v1822
        %v1840 = vmul.f32 %v1823, %v1823
        %v1841 = vadd.f32 %v1837, %v1838
        %v1842 = vadd.f32 %v1841, %v1839
        %v1843 = vadd.f32 %v1842, %v1840
        %v1844 = vrot.slane %v1843, 4
        %v1845 = vadd.f32 %v1843, %v1844
        %v1846 = vrot.slane %v1845, 2
        %v1847 = vadd.f32 %v1845, %v1846
        %v1848 = vrot.slane %v1847, 1
        %v1849 = vadd.f32 %v1847, %v1848
        %vm1850 = vcmask 1040384
        %v1851 = vsel %vm1850, %v1836, %v1849
        %1852 = vst [vmem:[%s469] sm:$0x3] %v1851
        %s1853 = sand.u32 %s128, 1
        %s1854 = sand.u32 %s128, 1
        %s1855 = smul.addr %s1854, 32
        %s1856 = scalar_lea.vmem [#allocation5], %s1855
        %p1857 = scmp.lt.s32.totalorder %s17, 15
        %s1858 = scalar_select %p1857, %s17, 15
        %s1859 = smul.addr %s1858, 2
        %s1860 = scalar_lea.vmem %s5, %s1859
        // Predicated region
        $region160: #{conv_block_forward.4} parent=146 // pred_check
          %p1861 = pneg %p138
        $region161: #{conv_block_forward.4} parent=146 // pred_check_branch
          %1863 = sbr.rel (%p1861) target = $region163
        $region162: #{conv_block_forward.4} parent=146 // pred_region
          %s1864 = smul.addr %s17, 2
          %s1865 = smul.addr %s1864, 8
          %s1866 = scalar_lea.vmem %s4, %s1865
          // Predicated region
          $region164: #{conv_block_forward.4} parent=162 // pred_check
            _
          $region165: #{conv_block_forward.4} parent=162 // pred_check_branch
            %1868 = sbr.rel (0) target = $region167
          $region166: #{conv_block_forward.4} parent=162 // pred_region
            // Predicated region
            $region168: #{conv_block_forward.4} parent=166 // pred_check
              _
            $region169: #{conv_block_forward.4} parent=166 // pred_check_branch
              %1870 = sbr.rel (0) target = $region171
            $region170: #{conv_block_forward.4} parent=166 // pred_region
              // Predicated region
              $region183: #{conv_block_forward.4} parent=170 // pred_check
                _
              $region184: #{conv_block_forward.4} parent=170 // pred_check_branch
                %1892 = sbr.rel (0) target = $region186
              $region185: #{conv_block_forward.4} parent=170 // pred_region
                loop: start=0, step=1, limit=1
                $region187: #{conv_block_forward.4} parent=185 // loop_pre_header
                  _
                $region188: #{conv_block_forward.4} parent=185 // loop_header
                  %s1894 = sphi 0, %s1898
                  %p1895 = scmp.ge.s32.totalorder %s1894, 1
                  %s1899 = sphi %s1856, %s1856
                  %s1900 = sphi %s1866, %s1866
                $region189: #{conv_block_forward.4} parent=185 // loop_header_branch
                  %1897 = sbr.rel (%p1895) target = $region193
                $region190: #{conv_block_forward.4} parent=185 // loop_body
                  %v1901 = vld [vmem:[%s1899] sm:$0xff]
                  %1902 = vst [vmem:[%s1900] sm:$0xff] %v1901
                  %v1903 = vld [vmem:[%s1899 + $0x8] sm:$0xff]
                  %1904 = vst [vmem:[%s1900 + $0x8] sm:$0xff] %v1903
                  %v1905 = vld [vmem:[%s1899 + $0x10] sm:$0xff]
                  %1906 = vst [vmem:[%s1900 + $0x100] sm:$0xff] %v1905
                  %v1907 = vld [vmem:[%s1899 + $0x18] sm:$0xff]
                  %1908 = vst [vmem:[%s1900 + $0x108] sm:$0xff] %v1907
                $region191: #{conv_block_forward.4} parent=185 // loop_footer
                  %s1898 = sadd.s32 1, %s1894
                $region192: #{conv_block_forward.4} parent=185 // loop_footer_branch
                  %1893 = sbr.rel target = $region188
                $region193: #{conv_block_forward.4} parent=185 // loop_exit
                  _
              $region186: #{conv_block_forward.4} parent=170 // pred_fallthru
                _
              // Predicated region
              $region194: #{conv_block_forward.4} parent=170 // pred_check
                _
              $region195: #{conv_block_forward.4} parent=170 // pred_check_branch
                %1910 = sbr.rel target = $region197
              $region196: #{conv_block_forward.4} parent=170 // pred_region
                _
              $region197: #{conv_block_forward.4} parent=170 // pred_fallthru
                _
            $region171: #{conv_block_forward.4} parent=166 // pred_fallthru
              _
            // Predicated region
            $region172: #{conv_block_forward.4} parent=166 // pred_check
              _
            $region173: #{conv_block_forward.4} parent=166 // pred_check_branch
              %1872 = sbr.rel target = $region175
            $region174: #{conv_block_forward.4} parent=166 // pred_region
              %s1874 = ssub.s32 256, 1
              loop: start=0, step=1, limit=1
              $region176: #{conv_block_forward.4} parent=174 // loop_pre_header
                _
              $region177: #{conv_block_forward.4} parent=174 // loop_header
                %s1876 = sphi 0, %s1880
                %p1877 = scmp.ge.s32.totalorder %s1876, 1
                %s1881 = sphi %s1856, %s1856
                %s1882 = sphi %s1866, %s1866
              $region178: #{conv_block_forward.4} parent=174 // loop_header_branch
                %1879 = sbr.rel (%p1877) target = $region182
              $region179: #{conv_block_forward.4} parent=174 // loop_body
                %v1883 = vld [vmem:[%s1881] sm:%s1874]
                %1884 = vst [vmem:[%s1882] sm:%s1874] %v1883
                %v1885 = vld [vmem:[%s1881 + $0x8] sm:%s1874]
                %1886 = vst [vmem:[%s1882 + $0x8] sm:%s1874] %v1885
                %v1887 = vld [vmem:[%s1881 + $0x10] sm:%s1874]
                %1888 = vst [vmem:[%s1882 + $0x100] sm:%s1874] %v1887
                %v1889 = vld [vmem:[%s1881 + $0x18] sm:%s1874]
                %1890 = vst [vmem:[%s1882 + $0x108] sm:%s1874] %v1889
              $region180: #{conv_block_forward.4} parent=174 // loop_footer
                %s1880 = sadd.s32 1, %s1876
              $region181: #{conv_block_forward.4} parent=174 // loop_footer_branch
                %1875 = sbr.rel target = $region177
              $region182: #{conv_block_forward.4} parent=174 // loop_exit
                _
            $region175: #{conv_block_forward.4} parent=166 // pred_fallthru
              _
          $region167: #{conv_block_forward.4} parent=162 // pred_fallthru
            _
          %1911 = vnop
        $region163: #{conv_block_forward.4} parent=146 // pred_fallthru
          _
        // Predicated region
        $region198: #{conv_block_forward.4} parent=146 // pred_check
          %p1912 = pneg %p164
        $region199: #{conv_block_forward.4} parent=146 // pred_check_branch
          %1914 = sbr.rel (%p1912) target = $region201
        $region200: #{conv_block_forward.4} parent=146 // pred_region
          _
        $region201: #{conv_block_forward.4} parent=146 // pred_fallthru
          _
      $region147: #{conv_block_forward.4} parent=5 // pred_fallthru
        _
      %p1915 = scmp.le.s32.totalorder 2, %s12
      // Predicated region
      $region202: #{conv_block_forward.4} parent=5 // pred_check
        %p1916 = pneg %p1915
      $region203: #{conv_block_forward.4} parent=5 // pred_check_branch
        %1918 = sbr.rel (%p1916) target = $region205
      $region204: #{conv_block_forward.4} parent=5 // pred_region
        %s1919 = ssub.s32 %s12, 2
        // Predicated region
        $region206: #{conv_block_forward.4} parent=204 // pred_check
          %p1920 = pneg %p144
        $region207: #{conv_block_forward.4} parent=204 // pred_check_branch
          %1922 = sbr.rel (%p1920) target = $region209
        $region208: #{conv_block_forward.4} parent=204 // pred_region
          %s1923 = sand.u32 %s129, 1
          %s1924 = sand.u32 %s129, 1
          %s1925 = smul.addr %s1924, 32
          %s1926 = scalar_lea.vmem [#allocation5], %s1925
        $region209: #{conv_block_forward.4} parent=204 // pred_fallthru
          _
        // Predicated region
        $region210: #{conv_block_forward.4} parent=204 // pred_check
          %p1927 = pneg %p170
        $region211: #{conv_block_forward.4} parent=204 // pred_check_branch
          %1929 = sbr.rel (%p1927) target = $region213
        $region212: #{conv_block_forward.4} parent=204 // pred_region
          %p1930 = scmp.lt.s32.totalorder %s18, 15
          %s1931 = scalar_select %p1930, %s18, 15
          %s1932 = smul.addr %s1931, 2
          %s1933 = scalar_lea.vmem %s5, %s1932
        $region213: #{conv_block_forward.4} parent=204 // pred_fallthru
          _
      $region205: #{conv_block_forward.4} parent=5 // pred_fallthru
        _
    $region6: #{conv_block_forward.4} parent=1 // loop_footer
      %s16 = sadd.s32 1, %s12
    $region7: #{conv_block_forward.4} parent=1 // loop_footer_branch
      %11 = sbr.rel target = $region3
    $region8: #{conv_block_forward.4} parent=1 // loop_exit
      _

</llo_original>
